<compile_context>
chip_gen: v7x
topology: tpu7x:2x2x1
jax: 0.10.0
libtpu: 0.0.40
codegen_flags: <defaults>
</compile_context>

<pallas_src>
import numpy as np
import jax
import jax.numpy as jnp
from jax.experimental import pallas as pl
from jax.experimental.pallas import tpu as pltpu

# ---- config matching NGPNetwork(scale=0.5, dataset_name='nerf_synthetic') ----
SCALE = 0.5
L = 16                 # hash-grid levels
F = 2                  # features per level
LOG2_T = 19
T = 1 << LOG2_T        # hash table size per level
N_MIN = 16
B = float(np.exp(np.log(2048.0 * SCALE / N_MIN) / (L - 1)))  # per-level scale
TN = 1024              # points per grid step (lane axis); sweep 1024-4096 for big N

_PRIMES = np.array([1, 2654435761, 805459861], dtype=np.uint32)


# ----------------------------- Pallas kernel ---------------------------------
def _ngp_kernel(enc_ref, d_ref, wx1t_ref, wx2t_ref, wr1t_ref, wr2t_ref,
                wr3t_ref, out_ref):
    # Feature-major layout: features on sublanes, points (TN) on lanes, so every
    # VPU op, matmul output and the store are lane-dense.

    # xyz MLP (FullyFusedMLP, no bias): 32 -> 64 (ReLU) -> 16
    h1 = jnp.maximum(
        jnp.dot(wx1t_ref[...], enc_ref[...],
                preferred_element_type=jnp.float32), 0.0)            # (64, TN) f32
    h = jnp.dot(wx2t_ref[...], h1.astype(jnp.bfloat16),
                preferred_element_type=jnp.float32)                  # (16, TN) f32

    # sigma = TruncExp(h[0, :])  (forward of TruncExp is exp), single live row.
    sigma = jnp.exp(h[0:1, :])                                       # (1, TN)

    # direction normalization + spherical harmonics (degree 4 -> 16), f32 VPU.
    # TODO(synk): SH rows are (1, TN) single-sublane ops (1/8 VALU vreg use);
    # batch into sublane-stacked groups only if the bundle shows VALU binding.
    d = d_ref[...]                                                   # (3, TN) f32
    x, y, z = d[0:1, :], d[1:2, :], d[2:3, :]
    inv_norm = jax.lax.rsqrt(x * x + y * y + z * z)
    x, y, z = x * inv_norm, y * inv_norm, z * inv_norm
    xy, xz, yz = x * y, x * z, y * z
    x2, y2, z2 = x * x, y * y, z * z
    sh = jnp.concatenate([
        jnp.full_like(x, 0.28209479177387814),
        -0.48860251190291987 * y,
        0.48860251190291987 * z,
        -0.48860251190291987 * x,
        1.0925484305920792 * xy,
        -1.0925484305920792 * yz,
        0.94617469575755997 * z2 - 0.31539156525251999,
        -1.0925484305920792 * xz,
        0.54627421529603959 * (x2 - y2),
        0.59004358992664352 * y * (-3.0 * x2 + y2),
        2.8906114426405538 * xy * z,
        0.45704579946446572 * y * (1.0 - 5.0 * z2),
        0.3731763325901154 * z * (5.0 * z2 - 3.0),
        0.45704579946446572 * x * (1.0 - 5.0 * z2),
        1.4453057213202769 * z * (x2 - y2),
        0.59004358992664352 * x * (-x2 + 3.0 * y2),
    ], axis=0)                                                       # (16, TN) f32

    # rgb MLP: [sh, h] -> 64(ReLU) -> 64(ReLU) -> 3 (Sigmoid).
    # sh and h are 16-row bf16 slabs -> sublane stack into one (32, TN)
    # activation, single K=32 dot against the original wr1^T.
    a1 = jnp.concatenate([sh.astype(jnp.bfloat16), h.astype(jnp.bfloat16)],
                         axis=0)                                     # (32, TN) bf16
    r1 = jnp.maximum(
        jnp.dot(wr1t_ref[...], a1, preferred_element_type=jnp.float32),
        0.0)                                                         # (64, TN)
    r2 = jnp.maximum(
        jnp.dot(wr2t_ref[...], r1.astype(jnp.bfloat16),
                preferred_element_type=jnp.float32), 0.0)            # (64, TN)
    r3 = jnp.dot(wr3t_ref[...], r2.astype(jnp.bfloat16),
                 preferred_element_type=jnp.float32)                 # (8, TN), rows 3..7 pad
    rgb = jax.nn.sigmoid(r3[0:3, :])                                 # (3, TN) live rows only

    # One packed, lane-dense, full-vreg store: [sigma, rgb, pad(4)] -> (8, TN).
    out_ref[...] = jnp.concatenate(
        [sigma, rgb, jnp.zeros((4, sigma.shape[1]), jnp.float32)], axis=0)


def _ngp_pallas(enc_t, d_t, wx1t, wx2t, wr1t, wr2t, wr3t):
    n = enc_t.shape[1]
    col = lambda i: (0, i)
    full = lambda i: (0, 0)
    return pl.pallas_call(
        _ngp_kernel,
        out_shape=jax.ShapeDtypeStruct((8, n), jnp.float32),
        grid_spec=pltpu.PrefetchScalarGridSpec(
            num_scalar_prefetch=0,
            grid=(n // TN,),
            in_specs=[
                pl.BlockSpec((32, TN), col),   # hash-encoded features (bf16, feature-major)
                pl.BlockSpec((3, TN), col),    # raw directions (f32, feature-major)
                pl.BlockSpec((64, 32), full),  # xyz MLP W1^T
                pl.BlockSpec((16, 64), full),  # xyz MLP W2^T
                pl.BlockSpec((64, 32), full),  # rgb MLP W1^T (merged sh|h)
                pl.BlockSpec((64, 64), full),  # rgb MLP W2^T
                pl.BlockSpec((8, 64), full),   # rgb MLP W3^T (zero-padded 3 -> 8 rows)
            ],
            out_specs=pl.BlockSpec((8, TN), col),   # packed [sigma, rgb, pad] per point
        ),
        compiler_params=pltpu.CompilerParams(
            dimension_semantics=("parallel",)),
    )(enc_t, d_t, wx1t, wx2t, wr1t, wr2t, wr3t)


# ------------------------- hash-grid encoding (JAX glue) ---------------------
# TODO(synk): tcnn uses dense (non-hashed) indexing at coarse levels and a
# +0.5 grid offset; here the standard xor-prime hash is used at every level.
def hash_grid_encode_t(x01, table):
    """x01: (N, 3) in [0, 1]; table: (L, T, F) bf16 -> (L*F, N) bf16, feature-major."""
    n = x01.shape[0]
    feats = []
    for lvl in range(L):
        res = int(np.floor(N_MIN * (B ** lvl)))
        pos = x01 * res
        pos_f = jnp.floor(pos)
        w = pos - pos_f                                    # (N, 3) trilinear weights
        pos_i = pos_f.astype(jnp.uint32)
        acc = jnp.zeros((F, n), jnp.float32)
        for corner in range(8):
            off = np.array([(corner >> k) & 1 for k in range(3)], dtype=np.uint32)
            c = pos_i + off[None, :]
            idx = ((c[:, 0] * _PRIMES[0])
                   ^ (c[:, 1] * _PRIMES[1])
                   ^ (c[:, 2] * _PRIMES[2]))
            idx = (idx & jnp.uint32(T - 1)).astype(jnp.int32)
            wsel = jnp.where(off[None, :] == 1, w, 1.0 - w)
            weight = jnp.prod(wsel, axis=1)                # (N,)
            vals = table[lvl][idx]                         # (N, F) bf16 gather
            acc = acc + weight[None, :] * vals.T           # (F, N) f32 accumulate
        feats.append(acc)
    # Produced directly feature-major and bf16: no wrapper-side relayout pass.
    return jnp.concatenate(feats, axis=0).astype(jnp.bfloat16)   # (32, N)


# ------------------------------- full forward --------------------------------
def ngp_forward(x, d, table, wx1, wx2, wr1, wr2, wr3):
    """x, d: (N, 3).  table: (L, T, F) bf16.  Returns sigmas (N,), rgb (N, 3)."""
    n = x.shape[0]
    # (x - xyz_min) / (xyz_max - xyz_min) with xyz_min = -scale, xyz_max = scale
    x01 = (x + SCALE) / (2.0 * SCALE)
    enc_t = hash_grid_encode_t(x01, table)                 # (32, n) bf16, feature-major
    d_t = d.T.astype(jnp.float32)                          # (3, n)  SH math stays f32

    n_pad = int(np.ceil(n / TN)) * TN
    if n_pad != n:
        enc_t = jnp.pad(enc_t, ((0, 0), (0, n_pad - n)))
        d_t = jnp.pad(d_t, ((0, 0), (0, n_pad - n)), constant_values=1.0)

    # Weights: bf16 MXU operands (accumulation stays f32 inside the kernel).
    wx1t = wx1.T.astype(jnp.bfloat16)                      # (64, 32)
    wx2t = wx2.T.astype(jnp.bfloat16)                      # (16, 64)
    wr1t = wr1.T.astype(jnp.bfloat16)                      # (64, 32)  acts on [sh; h]
    wr2t = wr2.T.astype(jnp.bfloat16)                      # (64, 64)
    wr3t = jnp.pad(wr3.T, ((0, 5), (0, 0))).astype(jnp.bfloat16)   # (8, 64), zero rows 3..7

    out = _ngp_pallas(enc_t, d_t, wx1t, wx2t, wr1t, wr2t, wr3t)    # (8, n_pad)
    sigmas = out[0, :n]
    rgb = out[1:4, :n].T
    return sigmas, rgb


# ----------------------------------- main -------------------------------------
if __name__ == "__main__":
    key = jax.random.PRNGKey(0)
    k1, k2, k3, k4, k5, k6, k7, k8 = jax.random.split(key, 8)

    N = 8192   # grid = N // TN = 8 steps: both v7x TensorCores get >=4 steps each
    x = jax.random.uniform(k1, (N, 3), jnp.float32, -SCALE, SCALE)
    d = jax.random.normal(k2, (N, 3), jnp.float32)

    # deterministic synthetic parameters (tcnn hash table init: U(-1e-4, 1e-4));
    # table stored in bf16 to halve gather bytes.
    table = jax.random.uniform(k3, (L, T, F), jnp.float32, -1e-4, 1e-4).astype(jnp.bfloat16)
    wx1 = jax.random.normal(k4, (32, 64), jnp.float32) * (1.0 / np.sqrt(32.0))
    wx2 = jax.random.normal(k5, (64, 16), jnp.float32) * (1.0 / np.sqrt(64.0))
    wr1 = jax.random.normal(k6, (32, 64), jnp.float32) * (1.0 / np.sqrt(32.0))
    wr2 = jax.random.normal(k7, (64, 64), jnp.float32) * (1.0 / np.sqrt(64.0))
    wr3 = jax.random.normal(k8, (64, 3), jnp.float32) * (1.0 / np.sqrt(64.0))

    sigmas, rgb = jax.jit(ngp_forward)(x, d, table, wx1, wx2, wr1, wr2, wr3)
    jax.block_until_ready((sigmas, rgb))

    assert sigmas.shape == (N,) and sigmas.dtype == jnp.float32
    assert rgb.shape == (N, 3) and rgb.dtype == jnp.float32
    assert bool(jnp.all(jnp.isfinite(sigmas))) and bool(jnp.all(jnp.isfinite(rgb)))
    assert bool(jnp.all((rgb >= 0.0) & (rgb <= 1.0)))
    print("KERNEL_OK")
</pallas_src>

<mosaic_0001>
module attributes {stable_mosaic.version = 11 : i64} {
  func.func @_ngp_kernel(%arg0: i32, %arg1: memref<32x1024xbf16, #tpu.memory_space<vmem>>, %arg2: memref<3x1024xf32, #tpu.memory_space<vmem>>, %arg3: memref<64x32xbf16, #tpu.memory_space<vmem>>, %arg4: memref<16x64xbf16, #tpu.memory_space<vmem>>, %arg5: memref<64x32xbf16, #tpu.memory_space<vmem>>, %arg6: memref<64x64xbf16, #tpu.memory_space<vmem>>, %arg7: memref<8x64xbf16, #tpu.memory_space<vmem>>, %arg8: memref<8x1024xf32, #tpu.memory_space<vmem>>) attributes {dimension_semantics = [#tpu.dimension_semantics<parallel>], iteration_bounds = array<i64: 8>, scalar_prefetch = 0 : i64, scratch_operands = 0 : i64, tpu.core_type = #tpu.core_type<tc>, window_params = [{transform_indices = @transform_0, window_bounds = array<i64: 32, 1024>}, {transform_indices = @transform_1, window_bounds = array<i64: 3, 1024>}, {pipeline_mode = #tpu.pipeline_mode<synchronous>, transform_indices = @transform_2, window_bounds = array<i64: 64, 32>}, {pipeline_mode = #tpu.pipeline_mode<synchronous>, transform_indices = @transform_3, window_bounds = array<i64: 16, 64>}, {pipeline_mode = #tpu.pipeline_mode<synchronous>, transform_indices = @transform_4, window_bounds = array<i64: 64, 32>}, {pipeline_mode = #tpu.pipeline_mode<synchronous>, transform_indices = @transform_5, window_bounds = array<i64: 64, 64>}, {pipeline_mode = #tpu.pipeline_mode<synchronous>, transform_indices = @transform_6, window_bounds = array<i64: 8, 64>}, {transform_indices = @transform_7, window_bounds = array<i64: 8, 1024>}]} {
    %c0 = arith.constant 0 : index
    %c0_0 = arith.constant 0 : index
    %0 = vector.load %arg3[%c0, %c0_0] : memref<64x32xbf16, #tpu.memory_space<vmem>>, vector<64x32xbf16>
    %c0_1 = arith.constant 0 : index
    %c0_2 = arith.constant 0 : index
    %1 = vector.load %arg1[%c0_1, %c0_2] : memref<32x1024xbf16, #tpu.memory_space<vmem>>, vector<32x1024xbf16>
    %cst = arith.constant dense<0.000000e+00> : vector<64x1024xf32>
    %2 = tpu.matmul %0, %1, %cst {dimension_numbers = #tpu.dot_dimension_numbers<[1], [0], [0], [1], [0, 0, 1, 1], [], []>} : vector<64x32xbf16>, vector<32x1024xbf16>, vector<64x1024xf32> -> vector<64x1024xf32>
    %cst_3 = arith.constant 0.000000e+00 : f32
    %3 = vector.broadcast %cst_3 : f32 to vector<64x1024xf32>
    %4 = arith.maximumf %2, %3 : vector<64x1024xf32>
    %c0_4 = arith.constant 0 : index
    %c0_5 = arith.constant 0 : index
    %5 = vector.load %arg4[%c0_4, %c0_5] : memref<16x64xbf16, #tpu.memory_space<vmem>>, vector<16x64xbf16>
    %6 = arith.truncf %4 : vector<64x1024xf32> to vector<64x1024xbf16>
    %cst_6 = arith.constant dense<0.000000e+00> : vector<16x1024xf32>
    %7 = tpu.matmul %5, %6, %cst_6 {dimension_numbers = #tpu.dot_dimension_numbers<[1], [0], [0], [1], [0, 0, 1, 1], [], []>} : vector<16x64xbf16>, vector<64x1024xbf16>, vector<16x1024xf32> -> vector<16x1024xf32>
    %8 = vector.extract_strided_slice %7 {offsets = [0, 0], sizes = [1, 1024], strides = [1, 1]} : vector<16x1024xf32> to vector<1x1024xf32>
    %9 = math.exp %8 : vector<1x1024xf32>
    %c0_7 = arith.constant 0 : index
    %c0_8 = arith.constant 0 : index
    %10 = vector.load %arg2[%c0_7, %c0_8] : memref<3x1024xf32, #tpu.memory_space<vmem>>, vector<3x1024xf32>
    %11 = vector.extract_strided_slice %10 {offsets = [0, 0], sizes = [1, 1024], strides = [1, 1]} : vector<3x1024xf32> to vector<1x1024xf32>
    %12 = vector.extract_strided_slice %10 {offsets = [1, 0], sizes = [1, 1024], strides = [1, 1]} : vector<3x1024xf32> to vector<1x1024xf32>
    %13 = vector.extract_strided_slice %10 {offsets = [2, 0], sizes = [1, 1024], strides = [1, 1]} : vector<3x1024xf32> to vector<1x1024xf32>
    %14 = arith.mulf %11, %11 : vector<1x1024xf32>
    %15 = arith.mulf %12, %12 : vector<1x1024xf32>
    %16 = arith.addf %14, %15 : vector<1x1024xf32>
    %17 = arith.mulf %13, %13 : vector<1x1024xf32>
    %18 = arith.addf %16, %17 : vector<1x1024xf32>
    %19 = math.rsqrt %18 : vector<1x1024xf32>
    %20 = arith.mulf %11, %19 : vector<1x1024xf32>
    %21 = arith.mulf %12, %19 : vector<1x1024xf32>
    %22 = arith.mulf %13, %19 : vector<1x1024xf32>
    %23 = arith.mulf %20, %21 : vector<1x1024xf32>
    %24 = arith.mulf %20, %22 : vector<1x1024xf32>
    %25 = arith.mulf %21, %22 : vector<1x1024xf32>
    %26 = arith.mulf %20, %20 : vector<1x1024xf32>
    %27 = arith.mulf %21, %21 : vector<1x1024xf32>
    %28 = arith.mulf %22, %22 : vector<1x1024xf32>
    %cst_9 = arith.constant 0.282094806 : f32
    %29 = vector.broadcast %cst_9 : f32 to vector<1x1024xf32>
    %cst_10 = arith.constant -0.488602519 : f32
    %30 = vector.broadcast %cst_10 : f32 to vector<1x1024xf32>
    %31 = arith.mulf %30, %21 : vector<1x1024xf32>
    %cst_11 = arith.constant 0.488602519 : f32
    %32 = vector.broadcast %cst_11 : f32 to vector<1x1024xf32>
    %33 = arith.mulf %32, %22 : vector<1x1024xf32>
    %cst_12 = arith.constant -0.488602519 : f32
    %34 = vector.broadcast %cst_12 : f32 to vector<1x1024xf32>
    %35 = arith.mulf %34, %20 : vector<1x1024xf32>
    %cst_13 = arith.constant 1.09254849 : f32
    %36 = vector.broadcast %cst_13 : f32 to vector<1x1024xf32>
    %37 = arith.mulf %36, %23 : vector<1x1024xf32>
    %cst_14 = arith.constant -1.09254849 : f32
    %38 = vector.broadcast %cst_14 : f32 to vector<1x1024xf32>
    %39 = arith.mulf %38, %25 : vector<1x1024xf32>
    %cst_15 = arith.constant 0.946174681 : f32
    %40 = vector.broadcast %cst_15 : f32 to vector<1x1024xf32>
    %41 = arith.mulf %40, %28 : vector<1x1024xf32>
    %cst_16 = arith.constant 0.31539157 : f32
    %42 = vector.broadcast %cst_16 : f32 to vector<1x1024xf32>
    %43 = arith.subf %41, %42 : vector<1x1024xf32>
    %cst_17 = arith.constant -1.09254849 : f32
    %44 = vector.broadcast %cst_17 : f32 to vector<1x1024xf32>
    %45 = arith.mulf %44, %24 : vector<1x1024xf32>
    %46 = arith.subf %26, %27 : vector<1x1024xf32>
    %cst_18 = arith.constant 0.546274245 : f32
    %47 = vector.broadcast %cst_18 : f32 to vector<1x1024xf32>
    %48 = arith.mulf %47, %46 : vector<1x1024xf32>
    %cst_19 = arith.constant 0.590043604 : f32
    %49 = vector.broadcast %cst_19 : f32 to vector<1x1024xf32>
    %50 = arith.mulf %49, %21 : vector<1x1024xf32>
    %cst_20 = arith.constant -3.000000e+00 : f32
    %51 = vector.broadcast %cst_20 : f32 to vector<1x1024xf32>
    %52 = arith.mulf %51, %26 : vector<1x1024xf32>
    %53 = arith.addf %52, %27 : vector<1x1024xf32>
    %54 = arith.mulf %50, %53 : vector<1x1024xf32>
    %cst_21 = arith.constant 2.89061141 : f32
    %55 = vector.broadcast %cst_21 : f32 to vector<1x1024xf32>
    %56 = arith.mulf %55, %23 : vector<1x1024xf32>
    %57 = arith.mulf %56, %22 : vector<1x1024xf32>
    %cst_22 = arith.constant 0.457045794 : f32
    %58 = vector.broadcast %cst_22 : f32 to vector<1x1024xf32>
    %59 = arith.mulf %58, %21 : vector<1x1024xf32>
    %cst_23 = arith.constant 5.000000e+00 : f32
    %60 = vector.broadcast %cst_23 : f32 to vector<1x1024xf32>
    %61 = arith.mulf %60, %28 : vector<1x1024xf32>
    %cst_24 = arith.constant 1.000000e+00 : f32
    %62 = vector.broadcast %cst_24 : f32 to vector<1x1024xf32>
    %63 = arith.subf %62, %61 : vector<1x1024xf32>
    %64 = arith.mulf %59, %63 : vector<1x1024xf32>
    %cst_25 = arith.constant 0.373176336 : f32
    %65 = vector.broadcast %cst_25 : f32 to vector<1x1024xf32>
    %66 = arith.mulf %65, %22 : vector<1x1024xf32>
    %cst_26 = arith.constant 5.000000e+00 : f32
    %67 = vector.broadcast %cst_26 : f32 to vector<1x1024xf32>
    %68 = arith.mulf %67, %28 : vector<1x1024xf32>
    %cst_27 = arith.constant 3.000000e+00 : f32
    %69 = vector.broadcast %cst_27 : f32 to vector<1x1024xf32>
    %70 = arith.subf %68, %69 : vector<1x1024xf32>
    %71 = arith.mulf %66, %70 : vector<1x1024xf32>
    %cst_28 = arith.constant 0.457045794 : f32
    %72 = vector.broadcast %cst_28 : f32 to vector<1x1024xf32>
    %73 = arith.mulf %72, %20 : vector<1x1024xf32>
    %cst_29 = arith.constant 5.000000e+00 : f32
    %74 = vector.broadcast %cst_29 : f32 to vector<1x1024xf32>
    %75 = arith.mulf %74, %28 : vector<1x1024xf32>
    %cst_30 = arith.constant 1.000000e+00 : f32
    %76 = vector.broadcast %cst_30 : f32 to vector<1x1024xf32>
    %77 = arith.subf %76, %75 : vector<1x1024xf32>
    %78 = arith.mulf %73, %77 : vector<1x1024xf32>
    %cst_31 = arith.constant 1.44530571 : f32
    %79 = vector.broadcast %cst_31 : f32 to vector<1x1024xf32>
    %80 = arith.mulf %79, %22 : vector<1x1024xf32>
    %81 = arith.subf %26, %27 : vector<1x1024xf32>
    %82 = arith.mulf %80, %81 : vector<1x1024xf32>
    %cst_32 = arith.constant 0.590043604 : f32
    %83 = vector.broadcast %cst_32 : f32 to vector<1x1024xf32>
    %84 = arith.mulf %83, %20 : vector<1x1024xf32>
    %cst_33 = arith.constant 0.000000e+00 : f32
    %85 = vector.broadcast %cst_33 : f32 to vector<1x1024xf32>
    %86 = arith.subf %85, %26 : vector<1x1024xf32>
    %cst_34 = arith.constant 3.000000e+00 : f32
    %87 = vector.broadcast %cst_34 : f32 to vector<1x1024xf32>
    %88 = arith.mulf %87, %27 : vector<1x1024xf32>
    %89 = arith.addf %86, %88 : vector<1x1024xf32>
    %90 = arith.mulf %84, %89 : vector<1x1024xf32>
    %91 = tpu.concatenate %29, %31, %33, %35, %37, %39, %43, %45, %48, %54, %57, %64, %71, %78, %82, %90 in 0 : vector<1x1024xf32>, vector<1x1024xf32>, vector<1x1024xf32>, vector<1x1024xf32>, vector<1x1024xf32>, vector<1x1024xf32>, vector<1x1024xf32>, vector<1x1024xf32>, vector<1x1024xf32>, vector<1x1024xf32>, vector<1x1024xf32>, vector<1x1024xf32>, vector<1x1024xf32>, vector<1x1024xf32>, vector<1x1024xf32>, vector<1x1024xf32> -> vector<16x1024xf32>
    %92 = arith.truncf %91 : vector<16x1024xf32> to vector<16x1024xbf16>
    %93 = arith.truncf %7 : vector<16x1024xf32> to vector<16x1024xbf16>
    %94 = tpu.concatenate %92, %93 in 0 : vector<16x1024xbf16>, vector<16x1024xbf16> -> vector<32x1024xbf16>
    %c0_35 = arith.constant 0 : index
    %c0_36 = arith.constant 0 : index
    %95 = vector.load %arg5[%c0_35, %c0_36] : memref<64x32xbf16, #tpu.memory_space<vmem>>, vector<64x32xbf16>
    %cst_37 = arith.constant dense<0.000000e+00> : vector<64x1024xf32>
    %96 = tpu.matmul %95, %94, %cst_37 {dimension_numbers = #tpu.dot_dimension_numbers<[1], [0], [0], [1], [0, 0, 1, 1], [], []>} : vector<64x32xbf16>, vector<32x1024xbf16>, vector<64x1024xf32> -> vector<64x1024xf32>
    %cst_38 = arith.constant 0.000000e+00 : f32
    %97 = vector.broadcast %cst_38 : f32 to vector<64x1024xf32>
    %98 = arith.maximumf %96, %97 : vector<64x1024xf32>
    %c0_39 = arith.constant 0 : index
    %c0_40 = arith.constant 0 : index
    %99 = vector.load %arg6[%c0_39, %c0_40] : memref<64x64xbf16, #tpu.memory_space<vmem>>, vector<64x64xbf16>
    %100 = arith.truncf %98 : vector<64x1024xf32> to vector<64x1024xbf16>
    %cst_41 = arith.constant dense<0.000000e+00> : vector<64x1024xf32>
    %101 = tpu.matmul %99, %100, %cst_41 {dimension_numbers = #tpu.dot_dimension_numbers<[1], [0], [0], [1], [0, 0, 1, 1], [], []>} : vector<64x64xbf16>, vector<64x1024xbf16>, vector<64x1024xf32> -> vector<64x1024xf32>
    %cst_42 = arith.constant 0.000000e+00 : f32
    %102 = vector.broadcast %cst_42 : f32 to vector<64x1024xf32>
    %103 = arith.maximumf %101, %102 : vector<64x1024xf32>
    %c0_43 = arith.constant 0 : index
    %c0_44 = arith.constant 0 : index
    %104 = vector.load %arg7[%c0_43, %c0_44] : memref<8x64xbf16, #tpu.memory_space<vmem>>, vector<8x64xbf16>
    %105 = arith.truncf %103 : vector<64x1024xf32> to vector<64x1024xbf16>
    %cst_45 = arith.constant dense<0.000000e+00> : vector<8x1024xf32>
    %106 = tpu.matmul %104, %105, %cst_45 {dimension_numbers = #tpu.dot_dimension_numbers<[1], [0], [0], [1], [0, 0, 1, 1], [], []>} : vector<8x64xbf16>, vector<64x1024xbf16>, vector<8x1024xf32> -> vector<8x1024xf32>
    %107 = vector.extract_strided_slice %106 {offsets = [0, 0], sizes = [3, 1024], strides = [1, 1]} : vector<8x1024xf32> to vector<3x1024xf32>
    %108 = arith.negf %107 : vector<3x1024xf32>
    %109 = math.exp %108 : vector<3x1024xf32>
    %cst_46 = arith.constant 1.000000e+00 : f32
    %110 = vector.broadcast %cst_46 : f32 to vector<3x1024xf32>
    %111 = arith.addf %110, %109 : vector<3x1024xf32>
    %112 = arith.divf %110, %111 : vector<3x1024xf32>
    %cst_47 = arith.constant 0.000000e+00 : f32
    %113 = vector.broadcast %cst_47 : f32 to vector<4x1024xf32>
    %114 = tpu.concatenate %9, %112, %113 in 0 : vector<1x1024xf32>, vector<3x1024xf32>, vector<4x1024xf32> -> vector<8x1024xf32>
    %c0_48 = arith.constant 0 : index
    %c0_49 = arith.constant 0 : index
    %115 = vector.load %arg8[%c0_48, %c0_49] : memref<8x1024xf32, #tpu.memory_space<vmem>>, vector<8x1024xf32>
    tpu.vector_store %arg8[%c0_48, %c0_49], %114 {strides = array<i32>} : memref<8x1024xf32, #tpu.memory_space<vmem>>, vector<8x1024xf32>,
    return
  }
  func.func @transform_0(%arg0: i32) -> (i32, i32) {
    %c0_i32 = arith.constant 0 : i32
    %c0_i32_0 = arith.constant 0 : i32
    return %c0_i32, %arg0 : i32, i32
  }
  func.func @transform_1(%arg0: i32) -> (i32, i32) {
    %c0_i32 = arith.constant 0 : i32
    %c0_i32_0 = arith.constant 0 : i32
    return %c0_i32, %arg0 : i32, i32
  }
  func.func @transform_2(%arg0: i32) -> (i32, i32) {
    %c0_i32 = arith.constant 0 : i32
    %c0_i32_0 = arith.constant 0 : i32
    %c0_i32_1 = arith.constant 0 : i32
    return %c0_i32, %c0_i32_0 : i32, i32
  }
  func.func @transform_3(%arg0: i32) -> (i32, i32) {
    %c0_i32 = arith.constant 0 : i32
    %c0_i32_0 = arith.constant 0 : i32
    %c0_i32_1 = arith.constant 0 : i32
    return %c0_i32, %c0_i32_0 : i32, i32
  }
  func.func @transform_4(%arg0: i32) -> (i32, i32) {
    %c0_i32 = arith.constant 0 : i32
    %c0_i32_0 = arith.constant 0 : i32
    %c0_i32_1 = arith.constant 0 : i32
    return %c0_i32, %c0_i32_0 : i32, i32
  }
  func.func @transform_5(%arg0: i32) -> (i32, i32) {
    %c0_i32 = arith.constant 0 : i32
    %c0_i32_0 = arith.constant 0 : i32
    %c0_i32_1 = arith.constant 0 : i32
    return %c0_i32, %c0_i32_0 : i32, i32
  }
  func.func @transform_6(%arg0: i32) -> (i32, i32) {
    %c0_i32 = arith.constant 0 : i32
    %c0_i32_0 = arith.constant 0 : i32
    %c0_i32_1 = arith.constant 0 : i32
    return %c0_i32, %c0_i32_0 : i32, i32
  }
  func.func @transform_7(%arg0: i32) -> (i32, i32) {
    %c0_i32 = arith.constant 0 : i32
    %c0_i32_0 = arith.constant 0 : i32
    return %c0_i32, %arg0 : i32, i32
  }
}

</mosaic_0001>

<llo_original>
// kernel: ngp_forward.1
$region0: #{ngp_forward.1}
  #allocation0 [shape = 'u32[]', space=smem, size = 0x4, offset = 0x4, fixed_abs, tag = 'smem constant byte address 0x4 - core index']
  #allocation1 [shape = 'u32[144,128]{1,0:T(1,128)}', space=vmem, size = 0x12000, scoped, tag = 'internal scratch']
  %s0 = inlined_call_operand.vmem [shape: bf16[32,8192], index: 0, kind: input, shape index: {}]
  %s1 = inlined_call_operand.vmem [shape: f32[3,8192], index: 1, kind: input, shape index: {}]
  %s2 = inlined_call_operand.vmem [shape: bf16[64,32], index: 2, kind: input, shape index: {}]
  %s3 = inlined_call_operand.vmem [shape: bf16[16,64], index: 3, kind: input, shape index: {}]
  %s4 = inlined_call_operand.vmem [shape: bf16[64,32], index: 4, kind: input, shape index: {}]
  %s5 = inlined_call_operand.vmem [shape: bf16[64,64], index: 5, kind: input, shape index: {}]
  %s6 = inlined_call_operand.vmem [shape: bf16[8,64], index: 6, kind: input, shape index: {}]
  %s7 = inlined_call_operand.vmem [shape: f32[8,8192], index: 7, kind: output, shape index: {}]
  %s8 = sld [smem:[#allocation0]]
  $region84: #{ngp_forward.1} parent=0
    _
  %s10 = ssub.s32 1, %s8
  %s11 = scalar_select 0, %s10, %s8
  $region1: #{ngp_forward.1} parent=0
    #allocation2 [shape = 'u8[131072]{0}', space=vmem, size = 0x20000, scoped, tag = 'input window, operand 0']
    loop: start=0, step=1, limit=10
    $region2: #{ngp_forward.1} parent=1 // loop_pre_header
      _
    $region3: #{ngp_forward.1} parent=1 // loop_header
      %s13 = sphi 0, %s17
      %p14 = scmp.ge.s32.totalorder %s13, 10
      %s23 = sphi 0, %s25
      %s26 = sphi 0, %s23
      %s27 = sphi 0, %s26
      %s43 = sphi 0, %s27
      %s49 = sphi 0, %s51
      %s52 = sphi 0, %s49
      %s53 = sphi 0, %s52
      %s69 = sphi 0, %s53
      %s73 = sphi 0, %s73
      %s75 = sphi 0, %s73
      %s76 = sphi 0, %s75
      %s90 = sphi 0, %s76
      %s94 = sphi 0, %s94
      %s96 = sphi 0, %s94
      %s97 = sphi 0, %s96
      %s111 = sphi 0, %s97
      %s115 = sphi 0, %s115
      %s117 = sphi 0, %s115
      %s118 = sphi 0, %s117
      %s132 = sphi 0, %s118
      %s136 = sphi 0, %s136
      %s138 = sphi 0, %s136
      %s139 = sphi 0, %s138
      %s153 = sphi 0, %s139
      %s157 = sphi 0, %s157
      %s159 = sphi 0, %s157
      %s160 = sphi 0, %s159
      %s174 = sphi 0, %s160
      %s180 = sphi 0, %s182
      %s183 = sphi 0, %s180
      %s184 = sphi 0, %s183
      %s200 = sphi 0, %s184
    $region4: #{ngp_forward.1} parent=1 // loop_header_branch
      %16 = sbr.rel (%p14) target = $region8
    $region5: #{ngp_forward.1} parent=1 // loop_body
      %s18 = ssub.s32 %s13, 1
      %s19 = ssub.s32 %s13, 2
      %s20 = sadd.s32 %s13, 1
      %s21 = ssub.s32 %s13, %s20
      %p22 = scmp.eq.s32.totalorder %s21, 0
      %s24 = sadd.s32 %s23, 1
      %s25 = scalar_select %p22, %s23, %s24
      %p28 = pneg %p22
      %p29 = scmp.eq.s32.totalorder %s13, 7
      %p30 = por %p28, %p29
      %p31 = scmp.ne.s32.totalorder %s23, %s26
      %p32 = scmp.eq.s32.totalorder %s13, 0
      %p33 = por %p31, %p32
      %p34 = scmp.ne.s32.totalorder %s23, %s26
      %p35 = scmp.eq.s32.totalorder %s18, 7
      %p36 = por %p34, %p35
      %p37 = scmp.ne.s32.totalorder %s26, %s27
      %p38 = scmp.eq.s32.totalorder %s18, 0
      %p39 = por %p37, %p38
      %p40 = scmp.ne.s32.totalorder %s26, %s27
      %p41 = scmp.eq.s32.totalorder %s19, 7
      %p42 = por %p40, %p41
      %p44 = scmp.ne.s32.totalorder %s27, %s43
      %p45 = scmp.eq.s32.totalorder %s19, 0
      %p46 = por %p44, %p45
      %s47 = ssub.s32 %s13, %s20
      %p48 = scmp.eq.s32.totalorder %s47, 0
      %s50 = sadd.s32 %s49, 1
      %s51 = scalar_select %p48, %s49, %s50
      %p54 = pneg %p48
      %p55 = scmp.eq.s32.totalorder %s13, 7
      %p56 = por %p54, %p55
      %p57 = scmp.ne.s32.totalorder %s49, %s52
      %p58 = scmp.eq.s32.totalorder %s13, 0
      %p59 = por %p57, %p58
      %p60 = scmp.ne.s32.totalorder %s49, %s52
      %p61 = scmp.eq.s32.totalorder %s18, 7
      %p62 = por %p60, %p61
      %p63 = scmp.ne.s32.totalorder %s52, %s53
      %p64 = scmp.eq.s32.totalorder %s18, 0
      %p65 = por %p63, %p64
      %p66 = scmp.ne.s32.totalorder %s52, %s53
      %p67 = scmp.eq.s32.totalorder %s19, 7
      %p68 = por %p66, %p67
      %p70 = scmp.ne.s32.totalorder %s53, %s69
      %p71 = scmp.eq.s32.totalorder %s19, 0
      %p72 = por %p70, %p71
      %s74 = sadd.s32 %s73, 1
      %p77 = scmp.eq.s32.totalorder %s13, 7
      %p78 = scmp.ne.s32.totalorder %s73, %s75
      %p79 = scmp.eq.s32.totalorder %s13, 0
      %p80 = por %p78, %p79
      %p81 = scmp.ne.s32.totalorder %s73, %s75
      %p82 = scmp.eq.s32.totalorder %s18, 7
      %p83 = por %p81, %p82
      %p84 = scmp.ne.s32.totalorder %s75, %s76
      %p85 = scmp.eq.s32.totalorder %s18, 0
      %p86 = por %p84, %p85
      %p87 = scmp.ne.s32.totalorder %s75, %s76
      %p88 = scmp.eq.s32.totalorder %s19, 7
      %p89 = por %p87, %p88
      %p91 = scmp.ne.s32.totalorder %s76, %s90
      %p92 = scmp.eq.s32.totalorder %s19, 0
      %p93 = por %p91, %p92
      %s95 = sadd.s32 %s94, 1
      %p98 = scmp.eq.s32.totalorder %s13, 7
      %p99 = scmp.ne.s32.totalorder %s94, %s96
      %p100 = scmp.eq.s32.totalorder %s13, 0
      %p101 = por %p99, %p100
      %p102 = scmp.ne.s32.totalorder %s94, %s96
      %p103 = scmp.eq.s32.totalorder %s18, 7
      %p104 = por %p102, %p103
      %p105 = scmp.ne.s32.totalorder %s96, %s97
      %p106 = scmp.eq.s32.totalorder %s18, 0
      %p107 = por %p105, %p106
      %p108 = scmp.ne.s32.totalorder %s96, %s97
      %p109 = scmp.eq.s32.totalorder %s19, 7
      %p110 = por %p108, %p109
      %p112 = scmp.ne.s32.totalorder %s97, %s111
      %p113 = scmp.eq.s32.totalorder %s19, 0
      %p114 = por %p112, %p113
      %s116 = sadd.s32 %s115, 1
      %p119 = scmp.eq.s32.totalorder %s13, 7
      %p120 = scmp.ne.s32.totalorder %s115, %s117
      %p121 = scmp.eq.s32.totalorder %s13, 0
      %p122 = por %p120, %p121
      %p123 = scmp.ne.s32.totalorder %s115, %s117
      %p124 = scmp.eq.s32.totalorder %s18, 7
      %p125 = por %p123, %p124
      %p126 = scmp.ne.s32.totalorder %s117, %s118
      %p127 = scmp.eq.s32.totalorder %s18, 0
      %p128 = por %p126, %p127
      %p129 = scmp.ne.s32.totalorder %s117, %s118
      %p130 = scmp.eq.s32.totalorder %s19, 7
      %p131 = por %p129, %p130
      %p133 = scmp.ne.s32.totalorder %s118, %s132
      %p134 = scmp.eq.s32.totalorder %s19, 0
      %p135 = por %p133, %p134
      %s137 = sadd.s32 %s136, 1
      %p140 = scmp.eq.s32.totalorder %s13, 7
      %p141 = scmp.ne.s32.totalorder %s136, %s138
      %p142 = scmp.eq.s32.totalorder %s13, 0
      %p143 = por %p141, %p142
      %p144 = scmp.ne.s32.totalorder %s136, %s138
      %p145 = scmp.eq.s32.totalorder %s18, 7
      %p146 = por %p144, %p145
      %p147 = scmp.ne.s32.totalorder %s138, %s139
      %p148 = scmp.eq.s32.totalorder %s18, 0
      %p149 = por %p147, %p148
      %p150 = scmp.ne.s32.totalorder %s138, %s139
      %p151 = scmp.eq.s32.totalorder %s19, 7
      %p152 = por %p150, %p151
      %p154 = scmp.ne.s32.totalorder %s139, %s153
      %p155 = scmp.eq.s32.totalorder %s19, 0
      %p156 = por %p154, %p155
      %s158 = sadd.s32 %s157, 1
      %p161 = scmp.eq.s32.totalorder %s13, 7
      %p162 = scmp.ne.s32.totalorder %s157, %s159
      %p163 = scmp.eq.s32.totalorder %s13, 0
      %p164 = por %p162, %p163
      %p165 = scmp.ne.s32.totalorder %s157, %s159
      %p166 = scmp.eq.s32.totalorder %s18, 7
      %p167 = por %p165, %p166
      %p168 = scmp.ne.s32.totalorder %s159, %s160
      %p169 = scmp.eq.s32.totalorder %s18, 0
      %p170 = por %p168, %p169
      %p171 = scmp.ne.s32.totalorder %s159, %s160
      %p172 = scmp.eq.s32.totalorder %s19, 7
      %p173 = por %p171, %p172
      %p175 = scmp.ne.s32.totalorder %s160, %s174
      %p176 = scmp.eq.s32.totalorder %s19, 0
      %p177 = por %p175, %p176
      %s178 = ssub.s32 %s13, %s20
      %p179 = scmp.eq.s32.totalorder %s178, 0
      %s181 = sadd.s32 %s180, 1
      %s182 = scalar_select %p179, %s180, %s181
      %p185 = pneg %p179
      %p186 = scmp.eq.s32.totalorder %s13, 7
      %p187 = por %p185, %p186
      %p188 = scmp.ne.s32.totalorder %s180, %s183
      %p189 = scmp.eq.s32.totalorder %s13, 0
      %p190 = por %p188, %p189
      %p191 = scmp.ne.s32.totalorder %s180, %s183
      %p192 = scmp.eq.s32.totalorder %s18, 7
      %p193 = por %p191, %p192
      %p194 = scmp.ne.s32.totalorder %s183, %s184
      %p195 = scmp.eq.s32.totalorder %s18, 0
      %p196 = por %p194, %p195
      %p197 = scmp.ne.s32.totalorder %s183, %s184
      %p198 = scmp.eq.s32.totalorder %s19, 7
      %p199 = por %p197, %p198
      %p201 = scmp.ne.s32.totalorder %s184, %s200
      %p202 = scmp.eq.s32.totalorder %s19, 0
      %p203 = por %p201, %p202
      %p204 = scmp.le.s32.totalorder 1, %s13
      %p205 = scmp.lt.s32.totalorder %s13, 9
      %p206 = pnand %p204, %p205
      %p207 = pneg %p206
      // Predicated region
      $region9: #{ngp_forward.1} parent=5 // pred_check
        _
      $region10: #{ngp_forward.1} parent=5 // pred_check_branch
        %209 = sbr.rel (%p206) target = $region12
      $region11: #{ngp_forward.1} parent=5 // pred_region
        %s210 = ssub.s32 %s13, 1
        // Predicated region
        $region13: #{ngp_forward.1} parent=11 // pred_check
          %p211 = pneg %p86
        $region14: #{ngp_forward.1} parent=11 // pred_check_branch
          %213 = sbr.rel (%p211) target = $region16
        $region15: #{ngp_forward.1} parent=11 // pred_region
          _
        $region16: #{ngp_forward.1} parent=11 // pred_fallthru
          _
        // Predicated region
        $region17: #{ngp_forward.1} parent=11 // pred_check
          %p214 = pneg %p107
        $region18: #{ngp_forward.1} parent=11 // pred_check_branch
          %216 = sbr.rel (%p214) target = $region20
        $region19: #{ngp_forward.1} parent=11 // pred_region
          _
        $region20: #{ngp_forward.1} parent=11 // pred_fallthru
          _
        // Predicated region
        $region21: #{ngp_forward.1} parent=11 // pred_check
          %p217 = pneg %p128
        $region22: #{ngp_forward.1} parent=11 // pred_check_branch
          %219 = sbr.rel (%p217) target = $region24
        $region23: #{ngp_forward.1} parent=11 // pred_region
          _
        $region24: #{ngp_forward.1} parent=11 // pred_fallthru
          _
        // Predicated region
        $region25: #{ngp_forward.1} parent=11 // pred_check
          %p220 = pneg %p149
        $region26: #{ngp_forward.1} parent=11 // pred_check_branch
          %222 = sbr.rel (%p220) target = $region28
        $region27: #{ngp_forward.1} parent=11 // pred_region
          _
        $region28: #{ngp_forward.1} parent=11 // pred_fallthru
          _
        // Predicated region
        $region29: #{ngp_forward.1} parent=11 // pred_check
          %p223 = pneg %p170
        $region30: #{ngp_forward.1} parent=11 // pred_check_branch
          %225 = sbr.rel (%p223) target = $region32
        $region31: #{ngp_forward.1} parent=11 // pred_region
          _
        $region32: #{ngp_forward.1} parent=11 // pred_fallthru
          _
      $region12: #{ngp_forward.1} parent=5 // pred_fallthru
        _
      %p226 = scmp.lt.s32.totalorder %s13, 8
      // Predicated region
      $region33: #{ngp_forward.1} parent=5 // pred_check
        %p227 = pneg %p226
      $region34: #{ngp_forward.1} parent=5 // pred_check_branch
        %229 = sbr.rel (%p227) target = $region36
      $region35: #{ngp_forward.1} parent=5 // pred_region
        // Predicated region
        $region37: #{ngp_forward.1} parent=35 // pred_check
          %p230 = pneg %p33
        $region38: #{ngp_forward.1} parent=35 // pred_check_branch
          %232 = sbr.rel (%p230) target = $region40
        $region39: #{ngp_forward.1} parent=35 // pred_region
          %s233 = sand.u32 %s23, 1
          %s234 = sand.u32 %s23, 1
          %s235 = smul.addr %s234, 128
          %s236 = scalar_lea.vmem [#allocation2], %s235
          %s237 = smul.u32 8, %s13
          %s238 = smul.addr %s237, 4
          %s239 = scalar_lea.vmem %s0, %s238
          // Predicated region
          $region41: #{ngp_forward.1} parent=39 // pred_check
            _
          $region42: #{ngp_forward.1} parent=39 // pred_check_branch
            %241 = sbr.rel (0) target = $region44
          $region43: #{ngp_forward.1} parent=39 // pred_region
            // Predicated region
            $region45: #{ngp_forward.1} parent=43 // pred_check
              _
            $region46: #{ngp_forward.1} parent=43 // pred_check_branch
              %243 = sbr.rel (0) target = $region48
            $region47: #{ngp_forward.1} parent=43 // pred_region
              loop: start=0, step=1, limit=1
              $region49: #{ngp_forward.1} parent=47 // loop_pre_header
                _
              $region50: #{ngp_forward.1} parent=47 // loop_header
                %s245 = sphi 0, %s249
                %p246 = scmp.ge.s32.totalorder %s245, 1
                %s250 = sphi %s239, %s239
                %s251 = sphi %s236, %s236
              $region51: #{ngp_forward.1} parent=47 // loop_header_branch
                %248 = sbr.rel (%p246) target = $region55
              $region52: #{ngp_forward.1} parent=47 // loop_body
                %v252 = vld [vmem:[%s250] sm:$0xff]
                %253 = vst [vmem:[%s251] sm:$0xff] %v252
                %v254 = vld [vmem:[%s250 + $0x8] sm:$0xff]
                %255 = vst [vmem:[%s251 + $0x8] sm:$0xff] %v254
                %v256 = vld [vmem:[%s250 + $0x10] sm:$0xff]
                %257 = vst [vmem:[%s251 + $0x10] sm:$0xff] %v256
                %v258 = vld [vmem:[%s250 + $0x18] sm:$0xff]
                %259 = vst [vmem:[%s251 + $0x18] sm:$0xff] %v258
                %v260 = vld [vmem:[%s250 + $0x100] sm:$0xff]
                %261 = vst [vmem:[%s251 + $0x20] sm:$0xff] %v260
                %v262 = vld [vmem:[%s250 + $0x108] sm:$0xff]
                %263 = vst [vmem:[%s251 + $0x28] sm:$0xff] %v262
                %v264 = vld [vmem:[%s250 + $0x110] sm:$0xff]
                %265 = vst [vmem:[%s251 + $0x30] sm:$0xff] %v264
                %v266 = vld [vmem:[%s250 + $0x118] sm:$0xff]
                %267 = vst [vmem:[%s251 + $0x38] sm:$0xff] %v266
                %v268 = vld [vmem:[%s250 + $0x200] sm:$0xff]
                %269 = vst [vmem:[%s251 + $0x40] sm:$0xff] %v268
                %v270 = vld [vmem:[%s250 + $0x208] sm:$0xff]
                %271 = vst [vmem:[%s251 + $0x48] sm:$0xff] %v270
                %v272 = vld [vmem:[%s250 + $0x210] sm:$0xff]
                %273 = vst [vmem:[%s251 + $0x50] sm:$0xff] %v272
                %v274 = vld [vmem:[%s250 + $0x218] sm:$0xff]
                %275 = vst [vmem:[%s251 + $0x58] sm:$0xff] %v274
                %v276 = vld [vmem:[%s250 + $0x300] sm:$0xff]
                %277 = vst [vmem:[%s251 + $0x60] sm:$0xff] %v276
                %v278 = vld [vmem:[%s250 + $0x308] sm:$0xff]
                %279 = vst [vmem:[%s251 + $0x68] sm:$0xff] %v278
                %v280 = vld [vmem:[%s250 + $0x310] sm:$0xff]
                %281 = vst [vmem:[%s251 + $0x70] sm:$0xff] %v280
                %v282 = vld [vmem:[%s250 + $0x318] sm:$0xff]
                %283 = vst [vmem:[%s251 + $0x78] sm:$0xff] %v282
              $region53: #{ngp_forward.1} parent=47 // loop_footer
                %s249 = sadd.s32 1, %s245
              $region54: #{ngp_forward.1} parent=47 // loop_footer_branch
                %244 = sbr.rel target = $region50
              $region55: #{ngp_forward.1} parent=47 // loop_exit
                _
            $region48: #{ngp_forward.1} parent=43 // pred_fallthru
              _
            // Predicated region
            $region56: #{ngp_forward.1} parent=43 // pred_check
              _
            $region57: #{ngp_forward.1} parent=43 // pred_check_branch
              %285 = sbr.rel target = $region59
            $region58: #{ngp_forward.1} parent=43 // pred_region
              _
            $region59: #{ngp_forward.1} parent=43 // pred_fallthru
              _
          $region44: #{ngp_forward.1} parent=39 // pred_fallthru
            _
          %286 = vnop
        $region40: #{ngp_forward.1} parent=35 // pred_fallthru
          _
        // Predicated region
        $region60: #{ngp_forward.1} parent=35 // pred_check
          %p287 = pneg %p59
        $region61: #{ngp_forward.1} parent=35 // pred_check_branch
          %289 = sbr.rel (%p287) target = $region63
        $region62: #{ngp_forward.1} parent=35 // pred_region
          %s290 = smul.u32 8, %s13
          %p291 = scmp.lt.s32.totalorder %s290, 63
          %s292 = scalar_select %p291, %s290, 63
          %s293 = smul.addr %s292, 4
          %s294 = scalar_lea.vmem %s1, %s293
          %s295 = smul.u32 8, %s13
        $region63: #{ngp_forward.1} parent=35 // pred_fallthru
          _
      $region36: #{ngp_forward.1} parent=5 // pred_fallthru
        _
      %p296 = scmp.le.s32.totalorder 1, %s13
      %p297 = scmp.lt.s32.totalorder %s13, 9
      %p298 = pnand %p296, %p297
      %p299 = pneg %p298
      // Predicated region
      $region64: #{ngp_forward.1} parent=5 // pred_check
        _
      $region65: #{ngp_forward.1} parent=5 // pred_check_branch
        %301 = sbr.rel (%p298) target = $region67
      $region66: #{ngp_forward.1} parent=5 // pred_region
        %s302 = ssub.s32 %s13, 1
        %s303 = sand.u32 %s26, 1
        %s304 = sand.u32 %s26, 1
        %s305 = smul.addr %s304, 128
        %s306 = scalar_lea.vmem [#allocation2], %s305
        // Predicated region
        $region68: #{ngp_forward.1} parent=66 // pred_check
          %p307 = pneg %p39
        $region69: #{ngp_forward.1} parent=66 // pred_check_branch
          %309 = sbr.rel (%p307) target = $region71
        $region70: #{ngp_forward.1} parent=66 // pred_region
          _
        $region71: #{ngp_forward.1} parent=66 // pred_fallthru
          _
        %s310 = sand.u32 %s26, 1
        %s311 = sand.u32 %s26, 1
        %s312 = smul.addr %s311, 128
        %s313 = scalar_lea.vmem [#allocation2], %s312
        %p314 = pneg %p39
        %p315 = pneg %p36
        %s316 = smul.u32 8, %s18
        %p317 = scmp.lt.s32.totalorder %s316, 63
        %s318 = scalar_select %p317, %s316, 63
        %s319 = smul.addr %s318, 4
        %s320 = scalar_lea.vmem %s1, %s319
        %p321 = pneg %p65
        %p322 = pneg %p62
        %p323 = pneg %p86
        %p324 = pneg %p83
        %p325 = pneg %p107
        %p326 = pneg %p104
        %p327 = pneg %p128
        %p328 = pneg %p125
        %p329 = pneg %p149
        %p330 = pneg %p146
        %p331 = pneg %p170
        %p332 = pneg %p167
        %p333 = pneg %p196
        %p334 = pneg %p193
        %s335 = smul.u32 8, %s18
        %p336 = scmp.lt.s32.totalorder %s335, 63
        %s337 = scalar_select %p336, %s335, 63
        %s338 = smul.addr %s337, 8
        %s339 = scalar_lea.vmem %s7, %s338
        %s340 = smul.u32 8, %s18
        %s341 = smul.u32 8, %s18
        %p342 = scmp.lt.s32.totalorder %s341, 63
        %s343 = scalar_select %p342, %s341, 63
        %s344 = smul.addr %s343, 4
        %s345 = scalar_lea.vmem %s1, %s344
        %s346 = smul.u32 8, %s18
        %s347 = smul.u32 8, %s18
        %p348 = scmp.lt.s32.totalorder %s347, 63
        %s349 = scalar_select %p348, %s347, 63
        %s350 = smul.addr %s349, 8
        %s351 = scalar_lea.vmem %s7, %s350
        %s352 = smul.u32 8, %s18
        %v354 = vld [vmem:[%s2] sm:$0xf]
        %v355 = vld [vmem:[%s2 + $0x4] sm:$0xf]
        %v356 = vld [vmem:[%s2 + $0x8] sm:$0xf]
        %v357 = vld [vmem:[%s2 + $0xc] sm:$0xf]
        %v358 = vld [vmem:[%s2 + $0x10] sm:$0xf]
        %v359 = vld [vmem:[%s2 + $0x14] sm:$0xf]
        %v360 = vld [vmem:[%s2 + $0x18] sm:$0xf]
        %v361 = vld [vmem:[%s2 + $0x1c] sm:$0xf]
        %v362 = vld [vmem:[%s306] sm:$0xff]
        %v363 = vld [vmem:[%s306 + $0x8] sm:$0xff]
        %v364 = vld [vmem:[%s306 + $0x10] sm:$0xff]
        %v365 = vld [vmem:[%s306 + $0x18] sm:$0xff]
        %v366 = vld [vmem:[%s306 + $0x20] sm:$0xff]
        %v367 = vld [vmem:[%s306 + $0x28] sm:$0xff]
        %v368 = vld [vmem:[%s306 + $0x30] sm:$0xff]
        %v369 = vld [vmem:[%s306 + $0x38] sm:$0xff]
        %v370 = vld [vmem:[%s306 + $0x40] sm:$0xff]
        %v371 = vld [vmem:[%s306 + $0x48] sm:$0xff]
        %v372 = vld [vmem:[%s306 + $0x50] sm:$0xff]
        %v373 = vld [vmem:[%s306 + $0x58] sm:$0xff]
        %v374 = vld [vmem:[%s306 + $0x60] sm:$0xff]
        %v375 = vld [vmem:[%s306 + $0x68] sm:$0xff]
        %v376 = vld [vmem:[%s306 + $0x70] sm:$0xff]
        %v377 = vld [vmem:[%s306 + $0x78] sm:$0xff]
        %v386 = vunpack.c.l.b16 %v354
        %v387 = vunpack.c.l.b16 %v355
        %v388 = vunpack.c.l.b16 %v356
        %v389 = vunpack.c.l.b16 %v357
        %v390 = vunpack.c.l.b16 %v358
        %v391 = vunpack.c.l.b16 %v359
        %v392 = vunpack.c.l.b16 %v360
        %v393 = vunpack.c.l.b16 %v361
        %v394 = vpack.c.b16 %v387, %v386
        %v395 = vpack.c.b16 %v389, %v388
        %v396 = vpack.c.b16 %v391, %v390
        %v397 = vpack.c.b16 %v393, %v392
        %v414 = vunpack.c.l.b16 %v362
        %v415 = vunpack.c.h.b16 %v362
        %v416 = vunpack.c.l.b16 %v363
        %v417 = vunpack.c.h.b16 %v363
        %v418 = vunpack.c.l.b16 %v364
        %v419 = vunpack.c.h.b16 %v364
        %v420 = vunpack.c.l.b16 %v365
        %v421 = vunpack.c.h.b16 %v365
        %v422 = vunpack.c.l.b16 %v366
        %v423 = vunpack.c.h.b16 %v366
        %v424 = vunpack.c.l.b16 %v367
        %v425 = vunpack.c.h.b16 %v367
        %v426 = vunpack.c.l.b16 %v368
        %v427 = vunpack.c.h.b16 %v368
        %v428 = vunpack.c.l.b16 %v369
        %v429 = vunpack.c.h.b16 %v369
        %v430 = vunpack.c.l.b16 %v370
        %v431 = vunpack.c.h.b16 %v370
        %v432 = vunpack.c.l.b16 %v371
        %v433 = vunpack.c.h.b16 %v371
        %v434 = vunpack.c.l.b16 %v372
        %v435 = vunpack.c.h.b16 %v372
        %v436 = vunpack.c.l.b16 %v373
        %v437 = vunpack.c.h.b16 %v373
        %v438 = vunpack.c.l.b16 %v374
        %v439 = vunpack.c.h.b16 %v374
        %v440 = vunpack.c.l.b16 %v375
        %v441 = vunpack.c.h.b16 %v375
        %v442 = vunpack.c.l.b16 %v376
        %v443 = vunpack.c.h.b16 %v376
        %v444 = vunpack.c.l.b16 %v377
        %v445 = vunpack.c.h.b16 %v377
        %v446 = vpack.c.b16 %v422, %v414
        %v447 = vpack.c.b16 %v423, %v415
        %v448 = vpack.c.b16 %v424, %v416
        %v449 = vpack.c.b16 %v425, %v417
        %v450 = vpack.c.b16 %v426, %v418
        %v451 = vpack.c.b16 %v427, %v419
        %v452 = vpack.c.b16 %v428, %v420
        %v453 = vpack.c.b16 %v429, %v421
        %v454 = vpack.c.b16 %v438, %v430
        %v455 = vpack.c.b16 %v439, %v431
        %v456 = vpack.c.b16 %v440, %v432
        %v457 = vpack.c.b16 %v441, %v433
        %v458 = vpack.c.b16 %v442, %v434
        %v459 = vpack.c.b16 %v443, %v435
        %v460 = vpack.c.b16 %v444, %v436
        %v461 = vpack.c.b16 %v445, %v437
        %vm478 = vcmask 261120
        %v480 = vsel %vm478, %v394, 0
        %v483 = vsel %vm478, %v395, 0
        %v486 = vsel %vm478, %v396, 0
        %v489 = vsel %vm478, %v397, 0
        %491 = vmatprep.subr.bf16.mxu0 %v447
        %492 = vmatpush1.bf16.msra.mxu0 %v446
        %493 = vmatprep.subr.bf16.mxu0 %v455
        %494 = vmatpush1.bf16.msra.mxu0 %v454
        %495 = vmatprep.subr.bf16.mxu0 0
        %496 = vmatpush1.bf16.msra.mxu0 0
        %497 = vmatprep.subr.bf16.mxu0 0
        %498 = vmatpush1.bf16.msra.mxu0 0
        %499 = vmatprep.subr.bf16.mxu0 0
        %500 = vmatpush1.bf16.msra.mxu0 0
        %501 = vmatprep.subr.bf16.mxu0 0
        %502 = vmatpush1.bf16.msra.mxu0 0
        %503 = vmatprep.subr.bf16.mxu0 0
        %504 = vmatpush1.bf16.msra.mxu0 0
        %505 = vmatprep.subr.bf16.mxu0 0
        %506 = vmatpush1.bf16.msra.mxu0 0
        %507 = vmatprep.subr.bf16.mxu0 0
        %508 = vmatpush1.bf16.msra.mxu0 0
        %509 = vmatprep.subr.bf16.mxu0 0
        %510 = vmatpush1.bf16.msra.mxu0 0
        %511 = vmatprep.subr.bf16.mxu0 0
        %512 = vmatpush1.bf16.msra.mxu0 0
        %513 = vmatprep.subr.bf16.mxu0 0
        %514 = vmatpush1.bf16.msra.mxu0 0
        %515 = vmatprep.subr.bf16.mxu0 0
        %516 = vmatpush1.bf16.msra.mxu0 0
        %517 = vmatprep.subr.bf16.mxu0 0
        %518 = vmatpush1.bf16.msra.mxu0 0
        %519 = vmatprep.subr.bf16.mxu0 0
        %520 = vmatpush1.bf16.msra.mxu0 0
        %521 = vmatprep.subr.bf16.mxu0 0
        %522 = vmatpush1.bf16.msra.mxu0 0
        %523 = vmatprep.mubr.bf16.mxu0 0
        %524 = vmatmul.mubr.bf16.gmra.mrb[0].mxu0 %v480
        %v525 = vpop.f32.mrb[0].mxu0
        %v526 = vadd.f32 0.0, %v525
        %v527 = vpop.f32.mrb[0].mxu0
        %v528 = vadd.f32 0.0, %v527
        %v529 = vpop.f32.mrb[0].mxu0
        %v530 = vadd.f32 0.0, %v529
        %v531 = vpop.f32.mrb[0].mxu0
        %v532 = vadd.f32 0.0, %v531
        %533 = vmatprep.mubr.bf16.mxu0 0
        %534 = vmatmul.mubr.bf16.gmra.mrb[0].mxu0 %v483
        %v535 = vpop.f32.mrb[0].mxu0
        %v536 = vadd.f32 0.0, %v535
        %v537 = vpop.f32.mrb[0].mxu0
        %v538 = vadd.f32 0.0, %v537
        %v539 = vpop.f32.mrb[0].mxu0
        %v540 = vadd.f32 0.0, %v539
        %v541 = vpop.f32.mrb[0].mxu0
        %v542 = vadd.f32 0.0, %v541
        %543 = vmatprep.mubr.bf16.mxu0 0
        %544 = vmatmul.mubr.bf16.gmra.mrb[0].mxu0 %v486
        %v545 = vpop.f32.mrb[0].mxu0
        %v546 = vadd.f32 0.0, %v545
        %v547 = vpop.f32.mrb[0].mxu0
        %v548 = vadd.f32 0.0, %v547
        %v549 = vpop.f32.mrb[0].mxu0
        %v550 = vadd.f32 0.0, %v549
        %v551 = vpop.f32.mrb[0].mxu0
        %v552 = vadd.f32 0.0, %v551
        %553 = vmatprep.mubr.bf16.mxu0 0
        %554 = vmatmul.mubr.bf16.gmra.mrb[0].mxu0 %v489
        %v555 = vpop.f32.mrb[0].mxu0
        %v556 = vadd.f32 0.0, %v555
        %v557 = vpop.f32.mrb[0].mxu0
        %v558 = vadd.f32 0.0, %v557
        %v559 = vpop.f32.mrb[0].mxu0
        %v560 = vadd.f32 0.0, %v559
        %v561 = vpop.f32.mrb[0].mxu0
        %v562 = vadd.f32 0.0, %v561
        %563 = vdwg.mxu0
        %564 = vmatprep.subr.bf16.mxu0 %v449
        %565 = vmatpush1.bf16.msra.mxu0 %v448
        %566 = vmatprep.subr.bf16.mxu0 %v457
        %567 = vmatpush1.bf16.msra.mxu0 %v456
        %568 = vmatprep.subr.bf16.mxu0 0
        %569 = vmatpush1.bf16.msra.mxu0 0
        %570 = vmatprep.subr.bf16.mxu0 0
        %571 = vmatpush1.bf16.msra.mxu0 0
        %572 = vmatprep.subr.bf16.mxu0 0
        %573 = vmatpush1.bf16.msra.mxu0 0
        %574 = vmatprep.subr.bf16.mxu0 0
        %575 = vmatpush1.bf16.msra.mxu0 0
        %576 = vmatprep.subr.bf16.mxu0 0
        %577 = vmatpush1.bf16.msra.mxu0 0
        %578 = vmatprep.subr.bf16.mxu0 0
        %579 = vmatpush1.bf16.msra.mxu0 0
        %580 = vmatprep.subr.bf16.mxu0 0
        %581 = vmatpush1.bf16.msra.mxu0 0
        %582 = vmatprep.subr.bf16.mxu0 0
        %583 = vmatpush1.bf16.msra.mxu0 0
        %584 = vmatprep.subr.bf16.mxu0 0
        %585 = vmatpush1.bf16.msra.mxu0 0
        %586 = vmatprep.subr.bf16.mxu0 0
        %587 = vmatpush1.bf16.msra.mxu0 0
        %588 = vmatprep.subr.bf16.mxu0 0
        %589 = vmatpush1.bf16.msra.mxu0 0
        %590 = vmatprep.subr.bf16.mxu0 0
        %591 = vmatpush1.bf16.msra.mxu0 0
        %592 = vmatprep.subr.bf16.mxu0 0
        %593 = vmatpush1.bf16.msra.mxu0 0
        %594 = vmatprep.subr.bf16.mxu0 0
        %595 = vmatpush1.bf16.msra.mxu0 0
        %596 = vmatprep.mubr.bf16.mxu0 0
        %597 = vmatmul.mubr.bf16.gmra.mrb[0].mxu0 %v480
        %v598 = vpop.f32.mrb[0].mxu0
        %v599 = vadd.f32 0.0, %v598
        %v600 = vpop.f32.mrb[0].mxu0
        %v601 = vadd.f32 0.0, %v600
        %v602 = vpop.f32.mrb[0].mxu0
        %v603 = vadd.f32 0.0, %v602
        %v604 = vpop.f32.mrb[0].mxu0
        %v605 = vadd.f32 0.0, %v604
        %606 = vmatprep.mubr.bf16.mxu0 0
        %607 = vmatmul.mubr.bf16.gmra.mrb[0].mxu0 %v483
        %v608 = vpop.f32.mrb[0].mxu0
        %v609 = vadd.f32 0.0, %v608
        %v610 = vpop.f32.mrb[0].mxu0
        %v611 = vadd.f32 0.0, %v610
        %v612 = vpop.f32.mrb[0].mxu0
        %v613 = vadd.f32 0.0, %v612
        %v614 = vpop.f32.mrb[0].mxu0
        %v615 = vadd.f32 0.0, %v614
        %616 = vmatprep.mubr.bf16.mxu0 0
        %617 = vmatmul.mubr.bf16.gmra.mrb[0].mxu0 %v486
        %v618 = vpop.f32.mrb[0].mxu0
        %v619 = vadd.f32 0.0, %v618
        %v620 = vpop.f32.mrb[0].mxu0
        %v621 = vadd.f32 0.0, %v620
        %v622 = vpop.f32.mrb[0].mxu0
        %v623 = vadd.f32 0.0, %v622
        %v624 = vpop.f32.mrb[0].mxu0
        %v625 = vadd.f32 0.0, %v624
        %626 = vmatprep.mubr.bf16.mxu0 0
        %627 = vmatmul.mubr.bf16.gmra.mrb[0].mxu0 %v489
        %v628 = vpop.f32.mrb[0].mxu0
        %v629 = vadd.f32 0.0, %v628
        %v630 = vpop.f32.mrb[0].mxu0
        %v631 = vadd.f32 0.0, %v630
        %v632 = vpop.f32.mrb[0].mxu0
        %v633 = vadd.f32 0.0, %v632
        %v634 = vpop.f32.mrb[0].mxu0
        %v635 = vadd.f32 0.0, %v634
        %636 = vdwg.mxu0
        %637 = vmatprep.subr.bf16.mxu0 %v451
        %638 = vmatpush1.bf16.msra.mxu0 %v450
        %639 = vmatprep.subr.bf16.mxu0 %v459
        %640 = vmatpush1.bf16.msra.mxu0 %v458
        %641 = vmatprep.subr.bf16.mxu0 0
        %642 = vmatpush1.bf16.msra.mxu0 0
        %643 = vmatprep.subr.bf16.mxu0 0
        %644 = vmatpush1.bf16.msra.mxu0 0
        %645 = vmatprep.subr.bf16.mxu0 0
        %646 = vmatpush1.bf16.msra.mxu0 0
        %647 = vmatprep.subr.bf16.mxu0 0
        %648 = vmatpush1.bf16.msra.mxu0 0
        %649 = vmatprep.subr.bf16.mxu0 0
        %650 = vmatpush1.bf16.msra.mxu0 0
        %651 = vmatprep.subr.bf16.mxu0 0
        %652 = vmatpush1.bf16.msra.mxu0 0
        %653 = vmatprep.subr.bf16.mxu0 0
        %654 = vmatpush1.bf16.msra.mxu0 0
        %655 = vmatprep.subr.bf16.mxu0 0
        %656 = vmatpush1.bf16.msra.mxu0 0
        %657 = vmatprep.subr.bf16.mxu0 0
        %658 = vmatpush1.bf16.msra.mxu0 0
        %659 = vmatprep.subr.bf16.mxu0 0
        %660 = vmatpush1.bf16.msra.mxu0 0
        %661 = vmatprep.subr.bf16.mxu0 0
        %662 = vmatpush1.bf16.msra.mxu0 0
        %663 = vmatprep.subr.bf16.mxu0 0
        %664 = vmatpush1.bf16.msra.mxu0 0
        %665 = vmatprep.subr.bf16.mxu0 0
        %666 = vmatpush1.bf16.msra.mxu0 0
        %667 = vmatprep.subr.bf16.mxu0 0
        %668 = vmatpush1.bf16.msra.mxu0 0
        %669 = vmatprep.mubr.bf16.mxu0 0
        %670 = vmatmul.mubr.bf16.gmra.mrb[0].mxu0 %v480
        %v671 = vpop.f32.mrb[0].mxu0
        %v672 = vadd.f32 0.0, %v671
        %v673 = vpop.f32.mrb[0].mxu0
        %v674 = vadd.f32 0.0, %v673
        %v675 = vpop.f32.mrb[0].mxu0
        %v676 = vadd.f32 0.0, %v675
        %v677 = vpop.f32.mrb[0].mxu0
        %v678 = vadd.f32 0.0, %v677
        %679 = vmatprep.mubr.bf16.mxu0 0
        %680 = vmatmul.mubr.bf16.gmra.mrb[0].mxu0 %v483
        %v681 = vpop.f32.mrb[0].mxu0
        %v682 = vadd.f32 0.0, %v681
        %v683 = vpop.f32.mrb[0].mxu0
        %v684 = vadd.f32 0.0, %v683
        %v685 = vpop.f32.mrb[0].mxu0
        %v686 = vadd.f32 0.0, %v685
        %v687 = vpop.f32.mrb[0].mxu0
        %v688 = vadd.f32 0.0, %v687
        %689 = vmatprep.mubr.bf16.mxu0 0
        %690 = vmatmul.mubr.bf16.gmra.mrb[0].mxu0 %v486
        %v691 = vpop.f32.mrb[0].mxu0
        %v692 = vadd.f32 0.0, %v691
        %v693 = vpop.f32.mrb[0].mxu0
        %v694 = vadd.f32 0.0, %v693
        %v695 = vpop.f32.mrb[0].mxu0
        %v696 = vadd.f32 0.0, %v695
        %v697 = vpop.f32.mrb[0].mxu0
        %v698 = vadd.f32 0.0, %v697
        %699 = vmatprep.mubr.bf16.mxu0 0
        %700 = vmatmul.mubr.bf16.gmra.mrb[0].mxu0 %v489
        %v701 = vpop.f32.mrb[0].mxu0
        %v702 = vadd.f32 0.0, %v701
        %v703 = vpop.f32.mrb[0].mxu0
        %v704 = vadd.f32 0.0, %v703
        %v705 = vpop.f32.mrb[0].mxu0
        %v706 = vadd.f32 0.0, %v705
        %v707 = vpop.f32.mrb[0].mxu0
        %v708 = vadd.f32 0.0, %v707
        %709 = vdwg.mxu0
        %710 = vmatprep.subr.bf16.mxu0 %v453
        %711 = vmatpush1.bf16.msra.mxu0 %v452
        %712 = vmatprep.subr.bf16.mxu0 %v461
        %713 = vmatpush1.bf16.msra.mxu0 %v460
        %714 = vmatprep.subr.bf16.mxu0 0
        %715 = vmatpush1.bf16.msra.mxu0 0
        %716 = vmatprep.subr.bf16.mxu0 0
        %717 = vmatpush1.bf16.msra.mxu0 0
        %718 = vmatprep.subr.bf16.mxu0 0
        %719 = vmatpush1.bf16.msra.mxu0 0
        %720 = vmatprep.subr.bf16.mxu0 0
        %721 = vmatpush1.bf16.msra.mxu0 0
        %722 = vmatprep.subr.bf16.mxu0 0
        %723 = vmatpush1.bf16.msra.mxu0 0
        %724 = vmatprep.subr.bf16.mxu0 0
        %725 = vmatpush1.bf16.msra.mxu0 0
        %726 = vmatprep.subr.bf16.mxu0 0
        %727 = vmatpush1.bf16.msra.mxu0 0
        %728 = vmatprep.subr.bf16.mxu0 0
        %729 = vmatpush1.bf16.msra.mxu0 0
        %730 = vmatprep.subr.bf16.mxu0 0
        %731 = vmatpush1.bf16.msra.mxu0 0
        %732 = vmatprep.subr.bf16.mxu0 0
        %733 = vmatpush1.bf16.msra.mxu0 0
        %734 = vmatprep.subr.bf16.mxu0 0
        %735 = vmatpush1.bf16.msra.mxu0 0
        %736 = vmatprep.subr.bf16.mxu0 0
        %737 = vmatpush1.bf16.msra.mxu0 0
        %738 = vmatprep.subr.bf16.mxu0 0
        %739 = vmatpush1.bf16.msra.mxu0 0
        %740 = vmatprep.subr.bf16.mxu0 0
        %741 = vmatpush1.bf16.msra.mxu0 0
        %742 = vmatprep.mubr.bf16.mxu0 0
        %743 = vmatmul.mubr.bf16.gmra.mrb[0].mxu0 %v480
        %v744 = vpop.f32.mrb[0].mxu0
        %v745 = vadd.f32 0.0, %v744
        %v746 = vpop.f32.mrb[0].mxu0
        %v747 = vadd.f32 0.0, %v746
        %v748 = vpop.f32.mrb[0].mxu0
        %v749 = vadd.f32 0.0, %v748
        %v750 = vpop.f32.mrb[0].mxu0
        %v751 = vadd.f32 0.0, %v750
        %752 = vmatprep.mubr.bf16.mxu0 0
        %753 = vmatmul.mubr.bf16.gmra.mrb[0].mxu0 %v483
        %v754 = vpop.f32.mrb[0].mxu0
        %v755 = vadd.f32 0.0, %v754
        %v756 = vpop.f32.mrb[0].mxu0
        %v757 = vadd.f32 0.0, %v756
        %v758 = vpop.f32.mrb[0].mxu0
        %v759 = vadd.f32 0.0, %v758
        %v760 = vpop.f32.mrb[0].mxu0
        %v761 = vadd.f32 0.0, %v760
        %762 = vmatprep.mubr.bf16.mxu0 0
        %763 = vmatmul.mubr.bf16.gmra.mrb[0].mxu0 %v486
        %v764 = vpop.f32.mrb[0].mxu0
        %v765 = vadd.f32 0.0, %v764
        %v766 = vpop.f32.mrb[0].mxu0
        %v767 = vadd.f32 0.0, %v766
        %v768 = vpop.f32.mrb[0].mxu0
        %v769 = vadd.f32 0.0, %v768
        %v770 = vpop.f32.mrb[0].mxu0
        %v771 = vadd.f32 0.0, %v770
        %772 = vmatprep.mubr.bf16.mxu0 0
        %773 = vmatmul.mubr.bf16.gmra.mrb[0].mxu0 %v489
        %v774 = vpop.f32.mrb[0].mxu0
        %v775 = vadd.f32 0.0, %v774
        %v776 = vpop.f32.mrb[0].mxu0
        %v777 = vadd.f32 0.0, %v776
        %v778 = vpop.f32.mrb[0].mxu0
        %v779 = vadd.f32 0.0, %v778
        %v780 = vpop.f32.mrb[0].mxu0
        %v781 = vadd.f32 0.0, %v780
        %782 = vdwg.mxu0
        %v783 = vmax.f32 %v526, 0.0
        %v784 = vmax.f32 %v528, 0.0
        %v785 = vmax.f32 %v599, 0.0
        %v786 = vmax.f32 %v601, 0.0
        %v787 = vmax.f32 %v672, 0.0
        %v788 = vmax.f32 %v674, 0.0
        %v789 = vmax.f32 %v745, 0.0
        %v790 = vmax.f32 %v747, 0.0
        %v791 = vmax.f32 %v530, 0.0
        %v792 = vmax.f32 %v532, 0.0
        %v793 = vmax.f32 %v603, 0.0
        %v794 = vmax.f32 %v605, 0.0
        %v795 = vmax.f32 %v676, 0.0
        %v796 = vmax.f32 %v678, 0.0
        %v797 = vmax.f32 %v749, 0.0
        %v798 = vmax.f32 %v751, 0.0
        %v799 = vmax.f32 %v536, 0.0
        %v800 = vmax.f32 %v538, 0.0
        %v801 = vmax.f32 %v609, 0.0
        %v802 = vmax.f32 %v611, 0.0
        %v803 = vmax.f32 %v682, 0.0
        %v804 = vmax.f32 %v684, 0.0
        %v805 = vmax.f32 %v755, 0.0
        %v806 = vmax.f32 %v757, 0.0
        %v807 = vmax.f32 %v540, 0.0
        %v808 = vmax.f32 %v542, 0.0
        %v809 = vmax.f32 %v613, 0.0
        %v810 = vmax.f32 %v615, 0.0
        %v811 = vmax.f32 %v686, 0.0
        %v812 = vmax.f32 %v688, 0.0
        %v813 = vmax.f32 %v759, 0.0
        %v814 = vmax.f32 %v761, 0.0
        %v815 = vmax.f32 %v546, 0.0
        %v816 = vmax.f32 %v548, 0.0
        %v817 = vmax.f32 %v619, 0.0
        %v818 = vmax.f32 %v621, 0.0
        %v819 = vmax.f32 %v692, 0.0
        %v820 = vmax.f32 %v694, 0.0
        %v821 = vmax.f32 %v765, 0.0
        %v822 = vmax.f32 %v767, 0.0
        %v823 = vmax.f32 %v550, 0.0
        %v824 = vmax.f32 %v552, 0.0
        %v825 = vmax.f32 %v623, 0.0
        %v826 = vmax.f32 %v625, 0.0
        %v827 = vmax.f32 %v696, 0.0
        %v828 = vmax.f32 %v698, 0.0
        %v829 = vmax.f32 %v769, 0.0
        %v830 = vmax.f32 %v771, 0.0
        %v831 = vmax.f32 %v556, 0.0
        %v832 = vmax.f32 %v558, 0.0
        %v833 = vmax.f32 %v629, 0.0
        %v834 = vmax.f32 %v631, 0.0
        %v835 = vmax.f32 %v702, 0.0
        %v836 = vmax.f32 %v704, 0.0
        %v837 = vmax.f32 %v775, 0.0
        %v838 = vmax.f32 %v777, 0.0
        %v839 = vmax.f32 %v560, 0.0
        %v840 = vmax.f32 %v562, 0.0
        %v841 = vmax.f32 %v633, 0.0
        %v842 = vmax.f32 %v635, 0.0
        %v843 = vmax.f32 %v706, 0.0
        %v844 = vmax.f32 %v708, 0.0
        %v845 = vmax.f32 %v779, 0.0
        %v846 = vmax.f32 %v781, 0.0
        %v847 = vld [vmem:[%s3] sm:$0xf]
        %v848 = vld [vmem:[%s3 + $0x4] sm:$0xf]
        %v849 = vpack.c.bf16 %v791, %v783
        %v850 = vpack.c.bf16 %v792, %v784
        %v851 = vpack.c.bf16 %v793, %v785
        %v852 = vpack.c.bf16 %v794, %v786
        %v853 = vpack.c.bf16 %v795, %v787
        %v854 = vpack.c.bf16 %v796, %v788
        %v855 = vpack.c.bf16 %v797, %v789
        %v856 = vpack.c.bf16 %v798, %v790
        %v857 = vpack.c.bf16 %v807, %v799
        %v858 = vpack.c.bf16 %v808, %v800
        %v859 = vpack.c.bf16 %v809, %v801
        %v860 = vpack.c.bf16 %v810, %v802
        %v861 = vpack.c.bf16 %v811, %v803
        %v862 = vpack.c.bf16 %v812, %v804
        %v863 = vpack.c.bf16 %v813, %v805
        %v864 = vpack.c.bf16 %v814, %v806
        %v865 = vpack.c.bf16 %v823, %v815
        %v866 = vpack.c.bf16 %v824, %v816
        %v867 = vpack.c.bf16 %v825, %v817
        %v868 = vpack.c.bf16 %v826, %v818
        %v869 = vpack.c.bf16 %v827, %v819
        %v870 = vpack.c.bf16 %v828, %v820
        %v871 = vpack.c.bf16 %v829, %v821
        %v872 = vpack.c.bf16 %v830, %v822
        %v873 = vpack.c.bf16 %v839, %v831
        %v874 = vpack.c.bf16 %v840, %v832
        %v875 = vpack.c.bf16 %v841, %v833
        %v876 = vpack.c.bf16 %v842, %v834
        %v877 = vpack.c.bf16 %v843, %v835
        %v878 = vpack.c.bf16 %v844, %v836
        %v879 = vpack.c.bf16 %v845, %v837
        %v880 = vpack.c.bf16 %v846, %v838
        %v883 = vunpack.c.l.b16 %v847
        %v884 = vunpack.c.l.b16 %v848
        %v885 = vpack.c.b16 %v884, %v883
        %vm886 = vcmask 523264
        %v888 = vsel %vm886, %v885, 0
        %890 = vmatprep.subr.bf16.mxu0 %v850
        %891 = vmatpush1.bf16.msra.mxu0 %v849
        %892 = vmatprep.subr.bf16.mxu0 %v858
        %893 = vmatpush1.bf16.msra.mxu0 %v857
        %894 = vmatprep.subr.bf16.mxu0 %v866
        %895 = vmatpush1.bf16.msra.mxu0 %v865
        %896 = vmatprep.subr.bf16.mxu0 %v874
        %897 = vmatpush1.bf16.msra.mxu0 %v873
        %898 = vmatprep.subr.bf16.mxu0 0
        %899 = vmatpush1.bf16.msra.mxu0 0
        %900 = vmatprep.subr.bf16.mxu0 0
        %901 = vmatpush1.bf16.msra.mxu0 0
        %902 = vmatprep.subr.bf16.mxu0 0
        %903 = vmatpush1.bf16.msra.mxu0 0
        %904 = vmatprep.subr.bf16.mxu0 0
        %905 = vmatpush1.bf16.msra.mxu0 0
        %906 = vmatprep.subr.bf16.mxu0 0
        %907 = vmatpush1.bf16.msra.mxu0 0
        %908 = vmatprep.subr.bf16.mxu0 0
        %909 = vmatpush1.bf16.msra.mxu0 0
        %910 = vmatprep.subr.bf16.mxu0 0
        %911 = vmatpush1.bf16.msra.mxu0 0
        %912 = vmatprep.subr.bf16.mxu0 0
        %913 = vmatpush1.bf16.msra.mxu0 0
        %914 = vmatprep.subr.bf16.mxu0 0
        %915 = vmatpush1.bf16.msra.mxu0 0
        %916 = vmatprep.subr.bf16.mxu0 0
        %917 = vmatpush1.bf16.msra.mxu0 0
        %918 = vmatprep.subr.bf16.mxu0 0
        %919 = vmatpush1.bf16.msra.mxu0 0
        %920 = vmatprep.subr.bf16.mxu0 0
        %921 = vmatpush1.bf16.msra.mxu0 0
        %922 = vmatprep.mubr.bf16.mxu0 0
        %923 = vmatmul.mubr.bf16.gmra.mrb[0].mxu0 %v888
        %v924 = vpop.f32.mrb[0].mxu0
        %v925 = vadd.f32 0.0, %v924
        %v926 = vpop.f32.mrb[0].mxu0
        %v927 = vadd.f32 0.0, %v926
        %v928 = vpop.f32.mrb[0].mxu0
        %v929 = vadd.f32 0.0, %v928
        %v930 = vpop.f32.mrb[0].mxu0
        %v931 = vadd.f32 0.0, %v930
        %932 = vdwg.mxu0
        %933 = vmatprep.subr.bf16.mxu0 %v852
        %934 = vmatpush1.bf16.msra.mxu0 %v851
        %935 = vmatprep.subr.bf16.mxu0 %v860
        %936 = vmatpush1.bf16.msra.mxu0 %v859
        %937 = vmatprep.subr.bf16.mxu0 %v868
        %938 = vmatpush1.bf16.msra.mxu0 %v867
        %939 = vmatprep.subr.bf16.mxu0 %v876
        %940 = vmatpush1.bf16.msra.mxu0 %v875
        %941 = vmatprep.subr.bf16.mxu0 0
        %942 = vmatpush1.bf16.msra.mxu0 0
        %943 = vmatprep.subr.bf16.mxu0 0
        %944 = vmatpush1.bf16.msra.mxu0 0
        %945 = vmatprep.subr.bf16.mxu0 0
        %946 = vmatpush1.bf16.msra.mxu0 0
        %947 = vmatprep.subr.bf16.mxu0 0
        %948 = vmatpush1.bf16.msra.mxu0 0
        %949 = vmatprep.subr.bf16.mxu0 0
        %950 = vmatpush1.bf16.msra.mxu0 0
        %951 = vmatprep.subr.bf16.mxu0 0
        %952 = vmatpush1.bf16.msra.mxu0 0
        %953 = vmatprep.subr.bf16.mxu0 0
        %954 = vmatpush1.bf16.msra.mxu0 0
        %955 = vmatprep.subr.bf16.mxu0 0
        %956 = vmatpush1.bf16.msra.mxu0 0
        %957 = vmatprep.subr.bf16.mxu0 0
        %958 = vmatpush1.bf16.msra.mxu0 0
        %959 = vmatprep.subr.bf16.mxu0 0
        %960 = vmatpush1.bf16.msra.mxu0 0
        %961 = vmatprep.subr.bf16.mxu0 0
        %962 = vmatpush1.bf16.msra.mxu0 0
        %963 = vmatprep.subr.bf16.mxu0 0
        %964 = vmatpush1.bf16.msra.mxu0 0
        %965 = vmatprep.mubr.bf16.mxu0 0
        %966 = vmatmul.mubr.bf16.gmra.mrb[0].mxu0 %v888
        %v967 = vpop.f32.mrb[0].mxu0
        %v968 = vadd.f32 0.0, %v967
        %v969 = vpop.f32.mrb[0].mxu0
        %v970 = vadd.f32 0.0, %v969
        %v971 = vpop.f32.mrb[0].mxu0
        %v972 = vadd.f32 0.0, %v971
        %v973 = vpop.f32.mrb[0].mxu0
        %v974 = vadd.f32 0.0, %v973
        %975 = vdwg.mxu0
        %976 = vmatprep.subr.bf16.mxu0 %v854
        %977 = vmatpush1.bf16.msra.mxu0 %v853
        %978 = vmatprep.subr.bf16.mxu0 %v862
        %979 = vmatpush1.bf16.msra.mxu0 %v861
        %980 = vmatprep.subr.bf16.mxu0 %v870
        %981 = vmatpush1.bf16.msra.mxu0 %v869
        %982 = vmatprep.subr.bf16.mxu0 %v878
        %983 = vmatpush1.bf16.msra.mxu0 %v877
        %984 = vmatprep.subr.bf16.mxu0 0
        %985 = vmatpush1.bf16.msra.mxu0 0
        %986 = vmatprep.subr.bf16.mxu0 0
        %987 = vmatpush1.bf16.msra.mxu0 0
        %988 = vmatprep.subr.bf16.mxu0 0
        %989 = vmatpush1.bf16.msra.mxu0 0
        %990 = vmatprep.subr.bf16.mxu0 0
        %991 = vmatpush1.bf16.msra.mxu0 0
        %992 = vmatprep.subr.bf16.mxu0 0
        %993 = vmatpush1.bf16.msra.mxu0 0
        %994 = vmatprep.subr.bf16.mxu0 0
        %995 = vmatpush1.bf16.msra.mxu0 0
        %996 = vmatprep.subr.bf16.mxu0 0
        %997 = vmatpush1.bf16.msra.mxu0 0
        %998 = vmatprep.subr.bf16.mxu0 0
        %999 = vmatpush1.bf16.msra.mxu0 0
        %1000 = vmatprep.subr.bf16.mxu0 0
        %1001 = vmatpush1.bf16.msra.mxu0 0
        %1002 = vmatprep.subr.bf16.mxu0 0
        %1003 = vmatpush1.bf16.msra.mxu0 0
        %1004 = vmatprep.subr.bf16.mxu0 0
        %1005 = vmatpush1.bf16.msra.mxu0 0
        %1006 = vmatprep.subr.bf16.mxu0 0
        %1007 = vmatpush1.bf16.msra.mxu0 0
        %1008 = vmatprep.mubr.bf16.mxu0 0
        %1009 = vmatmul.mubr.bf16.gmra.mrb[0].mxu0 %v888
        %v1010 = vpop.f32.mrb[0].mxu0
        %v1011 = vadd.f32 0.0, %v1010
        %v1012 = vpop.f32.mrb[0].mxu0
        %v1013 = vadd.f32 0.0, %v1012
        %v1014 = vpop.f32.mrb[0].mxu0
        %v1015 = vadd.f32 0.0, %v1014
        %v1016 = vpop.f32.mrb[0].mxu0
        %v1017 = vadd.f32 0.0, %v1016
        %1018 = vdwg.mxu0
        %1019 = vmatprep.subr.bf16.mxu0 %v856
        %1020 = vmatpush1.bf16.msra.mxu0 %v855
        %1021 = vmatprep.subr.bf16.mxu0 %v864
        %1022 = vmatpush1.bf16.msra.mxu0 %v863
        %1023 = vmatprep.subr.bf16.mxu0 %v872
        %1024 = vmatpush1.bf16.msra.mxu0 %v871
        %1025 = vmatprep.subr.bf16.mxu0 %v880
        %1026 = vmatpush1.bf16.msra.mxu0 %v879
        %1027 = vmatprep.subr.bf16.mxu0 0
        %1028 = vmatpush1.bf16.msra.mxu0 0
        %1029 = vmatprep.subr.bf16.mxu0 0
        %1030 = vmatpush1.bf16.msra.mxu0 0
        %1031 = vmatprep.subr.bf16.mxu0 0
        %1032 = vmatpush1.bf16.msra.mxu0 0
        %1033 = vmatprep.subr.bf16.mxu0 0
        %1034 = vmatpush1.bf16.msra.mxu0 0
        %1035 = vmatprep.subr.bf16.mxu0 0
        %1036 = vmatpush1.bf16.msra.mxu0 0
        %1037 = vmatprep.subr.bf16.mxu0 0
        %1038 = vmatpush1.bf16.msra.mxu0 0
        %1039 = vmatprep.subr.bf16.mxu0 0
        %1040 = vmatpush1.bf16.msra.mxu0 0
        %1041 = vmatprep.subr.bf16.mxu0 0
        %1042 = vmatpush1.bf16.msra.mxu0 0
        %1043 = vmatprep.subr.bf16.mxu0 0
        %1044 = vmatpush1.bf16.msra.mxu0 0
        %1045 = vmatprep.subr.bf16.mxu0 0
        %1046 = vmatpush1.bf16.msra.mxu0 0
        %1047 = vmatprep.subr.bf16.mxu0 0
        %1048 = vmatpush1.bf16.msra.mxu0 0
        %1049 = vmatprep.subr.bf16.mxu0 0
        %1050 = vmatpush1.bf16.msra.mxu0 0
        %1051 = vmatprep.mubr.bf16.mxu0 0
        %1052 = vmatmul.mubr.bf16.gmra.mrb[0].mxu0 %v888
        %v1053 = vpop.f32.mrb[0].mxu0
        %v1054 = vadd.f32 0.0, %v1053
        %v1055 = vpop.f32.mrb[0].mxu0
        %v1056 = vadd.f32 0.0, %v1055
        %v1057 = vpop.f32.mrb[0].mxu0
        %v1058 = vadd.f32 0.0, %v1057
        %v1059 = vpop.f32.mrb[0].mxu0
        %v1060 = vadd.f32 0.0, %v1059
        %1061 = vdwg.mxu0
        %v1062 = vmul.f32 %v925, 1.442695
        %v1063 = vpow.pop %v1062
        %v1064 = vmul.f32 %v927, 1.442695
        %v1065 = vpow.pop %v1064
        %v1066 = vmul.f32 %v968, 1.442695
        %v1067 = vpow.pop %v1066
        %v1068 = vmul.f32 %v970, 1.442695
        %v1069 = vpow.pop %v1068
        %v1070 = vmul.f32 %v1011, 1.442695
        %v1071 = vpow.pop %v1070
        %v1072 = vmul.f32 %v1013, 1.442695
        %v1073 = vpow.pop %v1072
        %v1074 = vmul.f32 %v1054, 1.442695
        %v1075 = vpow.pop %v1074
        %v1076 = vmul.f32 %v1056, 1.442695
        %v1077 = vpow.pop %v1076
        %v1078 = vld [vmem:[%s345] sm:$0x77]
        %v1079 = vld [vmem:[%s345 + $0x8] sm:$0x77]
        %v1080 = vld [vmem:[%s345 + $0x10] sm:$0x77]
        %v1081 = vld [vmem:[%s345 + $0x18] sm:$0x77]
        %v1082 = vmul.f32 %v1078, %v1078
        %v1083 = vmul.f32 %v1079, %v1079
        %v1084 = vmul.f32 %v1080, %v1080
        %v1085 = vmul.f32 %v1081, %v1081
        %v1090 = vrot.slane %v1082, 5
        %v1091 = vrot.slane %v1090, 4
        %v1092 = vrot.slane %v1083, 5
        %v1093 = vrot.slane %v1092, 4
        %v1094 = vrot.slane %v1084, 5
        %v1095 = vrot.slane %v1094, 4
        %v1096 = vrot.slane %v1085, 5
        %v1097 = vrot.slane %v1096, 4
        %v1102 = vadd.f32 %v1082, %v1091
        %v1103 = vadd.f32 %v1083, %v1093
        %v1104 = vadd.f32 %v1084, %v1095
        %v1105 = vadd.f32 %v1085, %v1097
        %v1106 = vrot.slane %v1082, 6
        %v1107 = vrot.slane %v1106, 4
        %v1108 = vrot.slane %v1083, 6
        %v1109 = vrot.slane %v1108, 4
        %v1110 = vrot.slane %v1084, 6
        %v1111 = vrot.slane %v1110, 4
        %v1112 = vrot.slane %v1085, 6
        %v1113 = vrot.slane %v1112, 4
        %v1118 = vadd.f32 %v1102, %v1107
        %v1119 = vadd.f32 %v1103, %v1109
        %v1120 = vadd.f32 %v1104, %v1111
        %v1121 = vadd.f32 %v1105, %v1113
        %v1122 = vrsqrt.pop %v1118
        %v1123 = vrsqrt.pop %v1119
        %v1124 = vrsqrt.pop %v1120
        %v1125 = vrsqrt.pop %v1121
        %v1126 = vmul.f32 %v1078, %v1122
        %v1127 = vmul.f32 %v1079, %v1123
        %v1128 = vmul.f32 %v1080, %v1124
        %v1129 = vmul.f32 %v1081, %v1125
        %v1134 = vrot.slane %v1122, 7
        %v1135 = vrot.slane %v1123, 7
        %v1136 = vrot.slane %v1124, 7
        %v1137 = vrot.slane %v1125, 7
        %v1142 = vmul.f32 %v1078, %v1134
        %v1143 = vmul.f32 %v1079, %v1135
        %v1144 = vmul.f32 %v1080, %v1136
        %v1145 = vmul.f32 %v1081, %v1137
        %v1146 = vrot.slane %v1122, 6
        %v1147 = vrot.slane %v1123, 6
        %v1148 = vrot.slane %v1124, 6
        %v1149 = vrot.slane %v1125, 6
        %v1154 = vmul.f32 %v1078, %v1146
        %v1155 = vmul.f32 %v1079, %v1147
        %v1156 = vmul.f32 %v1080, %v1148
        %v1157 = vmul.f32 %v1081, %v1149
        %v1162 = vrot.slane %v1142, 5
        %v1163 = vrot.slane %v1162, 4
        %v1164 = vrot.slane %v1143, 5
        %v1165 = vrot.slane %v1164, 4
        %v1166 = vrot.slane %v1144, 5
        %v1167 = vrot.slane %v1166, 4
        %v1168 = vrot.slane %v1145, 5
        %v1169 = vrot.slane %v1168, 4
        %v1174 = vmul.f32 %v1126, %v1163
        %v1175 = vmul.f32 %v1127, %v1165
        %v1176 = vmul.f32 %v1128, %v1167
        %v1177 = vmul.f32 %v1129, %v1169
        %v1182 = vrot.slane %v1154, 6
        %v1183 = vrot.slane %v1182, 4
        %v1184 = vrot.slane %v1155, 6
        %v1185 = vrot.slane %v1184, 4
        %v1186 = vrot.slane %v1156, 6
        %v1187 = vrot.slane %v1186, 4
        %v1188 = vrot.slane %v1157, 6
        %v1189 = vrot.slane %v1188, 4
        %v1194 = vmul.f32 %v1126, %v1183
        %v1195 = vmul.f32 %v1127, %v1185
        %v1196 = vmul.f32 %v1128, %v1187
        %v1197 = vmul.f32 %v1129, %v1189
        %v1198 = vrot.slane %v1154, 5
        %v1199 = vrot.slane %v1198, 4
        %v1200 = vrot.slane %v1155, 5
        %v1201 = vrot.slane %v1200, 4
        %v1202 = vrot.slane %v1156, 5
        %v1203 = vrot.slane %v1202, 4
        %v1204 = vrot.slane %v1157, 5
        %v1205 = vrot.slane %v1204, 4
        %v1210 = vmul.f32 %v1142, %v1199
        %v1211 = vmul.f32 %v1143, %v1201
        %v1212 = vmul.f32 %v1144, %v1203
        %v1213 = vmul.f32 %v1145, %v1205
        %v1214 = vmul.f32 %v1126, %v1126
        %v1215 = vmul.f32 %v1127, %v1127
        %v1216 = vmul.f32 %v1128, %v1128
        %v1217 = vmul.f32 %v1129, %v1129
        %v1218 = vmul.f32 %v1142, %v1142
        %v1219 = vmul.f32 %v1143, %v1143
        %v1220 = vmul.f32 %v1144, %v1144
        %v1221 = vmul.f32 %v1145, %v1145
        %v1222 = vmul.f32 %v1154, %v1154
        %v1223 = vmul.f32 %v1155, %v1155
        %v1224 = vmul.f32 %v1156, %v1156
        %v1225 = vmul.f32 %v1157, %v1157
        %v1226 = vmul.f32 %v1142, -0.48860252
        %v1227 = vmul.f32 %v1143, -0.48860252
        %v1228 = vmul.f32 %v1144, -0.48860252
        %v1229 = vmul.f32 %v1145, -0.48860252
        %v1230 = vmul.f32 %v1154, 0.48860252
        %v1231 = vmul.f32 %v1155, 0.48860252
        %v1232 = vmul.f32 %v1156, 0.48860252
        %v1233 = vmul.f32 %v1157, 0.48860252
        %v1234 = vmul.f32 %v1126, -0.48860252
        %v1235 = vmul.f32 %v1127, -0.48860252
        %v1236 = vmul.f32 %v1128, -0.48860252
        %v1237 = vmul.f32 %v1129, -0.48860252
        %v1238 = vmul.f32 %v1174, 1.0925485
        %v1239 = vmul.f32 %v1175, 1.0925485
        %v1240 = vmul.f32 %v1176, 1.0925485
        %v1241 = vmul.f32 %v1177, 1.0925485
        %v1242 = vmul.f32 %v1210, -1.0925485
        %v1243 = vmul.f32 %v1211, -1.0925485
        %v1244 = vmul.f32 %v1212, -1.0925485
        %v1245 = vmul.f32 %v1213, -1.0925485
        %v1246 = vmul.f32 %v1222, 0.9461747
        %v1247 = vmul.f32 %v1223, 0.9461747
        %v1248 = vmul.f32 %v1224, 0.9461747
        %v1249 = vmul.f32 %v1225, 0.9461747
        %v1250 = vsub.f32 %v1246, 0.31539157
        %v1251 = vsub.f32 %v1247, 0.31539157
        %v1252 = vsub.f32 %v1248, 0.31539157
        %v1253 = vsub.f32 %v1249, 0.31539157
        %v1254 = vmul.f32 %v1194, -1.0925485
        %v1255 = vmul.f32 %v1195, -1.0925485
        %v1256 = vmul.f32 %v1196, -1.0925485
        %v1257 = vmul.f32 %v1197, -1.0925485
        %v1262 = vrot.slane %v1218, 5
        %v1263 = vrot.slane %v1262, 4
        %v1264 = vrot.slane %v1219, 5
        %v1265 = vrot.slane %v1264, 4
        %v1266 = vrot.slane %v1220, 5
        %v1267 = vrot.slane %v1266, 4
        %v1268 = vrot.slane %v1221, 5
        %v1269 = vrot.slane %v1268, 4
        %v1274 = vsub.f32 %v1214, %v1263
        %v1275 = vsub.f32 %v1215, %v1265
        %v1276 = vsub.f32 %v1216, %v1267
        %v1277 = vsub.f32 %v1217, %v1269
        %v1278 = vmul.f32 %v1274, 0.54627424
        %v1279 = vmul.f32 %v1275, 0.54627424
        %v1280 = vmul.f32 %v1276, 0.54627424
        %v1281 = vmul.f32 %v1277, 0.54627424
        %v1282 = vmul.f32 %v1142, 0.5900436
        %v1283 = vmul.f32 %v1143, 0.5900436
        %v1284 = vmul.f32 %v1144, 0.5900436
        %v1285 = vmul.f32 %v1145, 0.5900436
        %v1286 = vmul.f32 %v1214, -3.0
        %v1287 = vmul.f32 %v1215, -3.0
        %v1288 = vmul.f32 %v1216, -3.0
        %v1289 = vmul.f32 %v1217, -3.0
        %v1290 = vadd.f32 %v1286, %v1263
        %v1291 = vadd.f32 %v1287, %v1265
        %v1292 = vadd.f32 %v1288, %v1267
        %v1293 = vadd.f32 %v1289, %v1269
        %v1298 = vrot.slane %v1290, 7
        %v1299 = vrot.slane %v1291, 7
        %v1300 = vrot.slane %v1292, 7
        %v1301 = vrot.slane %v1293, 7
        %v1306 = vmul.f32 %v1282, %v1298
        %v1307 = vmul.f32 %v1283, %v1299
        %v1308 = vmul.f32 %v1284, %v1300
        %v1309 = vmul.f32 %v1285, %v1301
        %v1310 = vmul.f32 %v1174, 2.8906114
        %v1311 = vmul.f32 %v1175, 2.8906114
        %v1312 = vmul.f32 %v1176, 2.8906114
        %v1313 = vmul.f32 %v1177, 2.8906114
        %v1314 = vmul.f32 %v1310, %v1183
        %v1315 = vmul.f32 %v1311, %v1185
        %v1316 = vmul.f32 %v1312, %v1187
        %v1317 = vmul.f32 %v1313, %v1189
        %v1318 = vmul.f32 %v1142, 0.4570458
        %v1319 = vmul.f32 %v1143, 0.4570458
        %v1320 = vmul.f32 %v1144, 0.4570458
        %v1321 = vmul.f32 %v1145, 0.4570458
        %v1322 = vmul.f32 %v1222, 5.0
        %v1323 = vmul.f32 %v1223, 5.0
        %v1324 = vmul.f32 %v1224, 5.0
        %v1325 = vmul.f32 %v1225, 5.0
        %v1326 = vsub.f32 1.0, %v1322
        %v1327 = vsub.f32 1.0, %v1323
        %v1328 = vsub.f32 1.0, %v1324
        %v1329 = vsub.f32 1.0, %v1325
        %v1334 = vrot.slane %v1326, 5
        %v1335 = vrot.slane %v1334, 4
        %v1336 = vrot.slane %v1327, 5
        %v1337 = vrot.slane %v1336, 4
        %v1338 = vrot.slane %v1328, 5
        %v1339 = vrot.slane %v1338, 4
        %v1340 = vrot.slane %v1329, 5
        %v1341 = vrot.slane %v1340, 4
        %v1346 = vmul.f32 %v1318, %v1335
        %v1347 = vmul.f32 %v1319, %v1337
        %v1348 = vmul.f32 %v1320, %v1339
        %v1349 = vmul.f32 %v1321, %v1341
        %v1350 = vmul.f32 %v1154, 0.37317634
        %v1351 = vmul.f32 %v1155, 0.37317634
        %v1352 = vmul.f32 %v1156, 0.37317634
        %v1353 = vmul.f32 %v1157, 0.37317634
        %v1354 = vsub.f32 %v1322, 3.0
        %v1355 = vsub.f32 %v1323, 3.0
        %v1356 = vsub.f32 %v1324, 3.0
        %v1357 = vsub.f32 %v1325, 3.0
        %v1358 = vmul.f32 %v1350, %v1354
        %v1359 = vmul.f32 %v1351, %v1355
        %v1360 = vmul.f32 %v1352, %v1356
        %v1361 = vmul.f32 %v1353, %v1357
        %v1362 = vmul.f32 %v1126, 0.4570458
        %v1363 = vmul.f32 %v1127, 0.4570458
        %v1364 = vmul.f32 %v1128, 0.4570458
        %v1365 = vmul.f32 %v1129, 0.4570458
        %v1366 = vrot.slane %v1326, 6
        %v1367 = vrot.slane %v1366, 4
        %v1368 = vrot.slane %v1327, 6
        %v1369 = vrot.slane %v1368, 4
        %v1370 = vrot.slane %v1328, 6
        %v1371 = vrot.slane %v1370, 4
        %v1372 = vrot.slane %v1329, 6
        %v1373 = vrot.slane %v1372, 4
        %v1378 = vmul.f32 %v1362, %v1367
        %v1379 = vmul.f32 %v1363, %v1369
        %v1380 = vmul.f32 %v1364, %v1371
        %v1381 = vmul.f32 %v1365, %v1373
        %v1382 = vmul.f32 %v1154, 1.4453057
        %v1383 = vmul.f32 %v1155, 1.4453057
        %v1384 = vmul.f32 %v1156, 1.4453057
        %v1385 = vmul.f32 %v1157, 1.4453057
        %v1390 = vrot.slane %v1274, 6
        %v1391 = vrot.slane %v1275, 6
        %v1392 = vrot.slane %v1276, 6
        %v1393 = vrot.slane %v1277, 6
        %v1398 = vmul.f32 %v1382, %v1390
        %v1399 = vmul.f32 %v1383, %v1391
        %v1400 = vmul.f32 %v1384, %v1392
        %v1401 = vmul.f32 %v1385, %v1393
        %v1402 = vmul.f32 %v1126, 0.5900436
        %v1403 = vmul.f32 %v1127, 0.5900436
        %v1404 = vmul.f32 %v1128, 0.5900436
        %v1405 = vmul.f32 %v1129, 0.5900436
        %v1406 = vsub.f32 0.0, %v1214
        %v1407 = vsub.f32 0.0, %v1215
        %v1408 = vsub.f32 0.0, %v1216
        %v1409 = vsub.f32 0.0, %v1217
        %v1410 = vmul.f32 %v1218, 3.0
        %v1411 = vmul.f32 %v1219, 3.0
        %v1412 = vmul.f32 %v1220, 3.0
        %v1413 = vmul.f32 %v1221, 3.0
        %v1418 = vrot.slane %v1410, 5
        %v1419 = vrot.slane %v1418, 4
        %v1420 = vrot.slane %v1411, 5
        %v1421 = vrot.slane %v1420, 4
        %v1422 = vrot.slane %v1412, 5
        %v1423 = vrot.slane %v1422, 4
        %v1424 = vrot.slane %v1413, 5
        %v1425 = vrot.slane %v1424, 4
        %v1430 = vadd.f32 %v1406, %v1419
        %v1431 = vadd.f32 %v1407, %v1421
        %v1432 = vadd.f32 %v1408, %v1423
        %v1433 = vadd.f32 %v1409, %v1425
        %v1434 = vmul.f32 %v1402, %v1430
        %v1435 = vmul.f32 %v1403, %v1431
        %v1436 = vmul.f32 %v1404, %v1432
        %v1437 = vmul.f32 %v1405, %v1433
        %v1442 = vlaneseq
        %v1443 = vshrl.u32 %v1442, 7
        %v1444 = vsub.s32 1, %v1443
        %v1445 = vrot.slane %v1226, %v1444
        %v1446 = vlaneseq
        %v1447 = vshrl.u32 %v1446, 7
        %v1448 = vsub.s32 5, %v1447
        %v1449 = vrot.slane %v1226, %v1448
        %v1450 = vlaneseq
        %v1451 = vshrl.u32 %v1450, 7
        %v1452 = vsub.s32 1, %v1451
        %v1453 = vrot.slane %v1227, %v1452
        %v1454 = vlaneseq
        %v1455 = vshrl.u32 %v1454, 7
        %v1456 = vsub.s32 5, %v1455
        %v1457 = vrot.slane %v1227, %v1456
        %v1458 = vlaneseq
        %v1459 = vshrl.u32 %v1458, 7
        %v1460 = vsub.s32 1, %v1459
        %v1461 = vrot.slane %v1228, %v1460
        %v1462 = vlaneseq
        %v1463 = vshrl.u32 %v1462, 7
        %v1464 = vsub.s32 5, %v1463
        %v1465 = vrot.slane %v1228, %v1464
        %v1466 = vlaneseq
        %v1467 = vshrl.u32 %v1466, 7
        %v1468 = vsub.s32 1, %v1467
        %v1469 = vrot.slane %v1229, %v1468
        %v1470 = vlaneseq
        %v1471 = vshrl.u32 %v1470, 7
        %v1472 = vsub.s32 5, %v1471
        %v1473 = vrot.slane %v1229, %v1472
        %v1486 = vlaneseq
        %v1487 = vshrl.u32 %v1486, 7
        %v1488 = vsub.s32 2, %v1487
        %v1489 = vrot.slane %v1230, %v1488
        %v1490 = vlaneseq
        %v1491 = vshrl.u32 %v1490, 7
        %v1492 = vsub.s32 6, %v1491
        %v1493 = vrot.slane %v1230, %v1492
        %v1494 = vlaneseq
        %v1495 = vshrl.u32 %v1494, 7
        %v1496 = vsub.s32 2, %v1495
        %v1497 = vrot.slane %v1231, %v1496
        %v1498 = vlaneseq
        %v1499 = vshrl.u32 %v1498, 7
        %v1500 = vsub.s32 6, %v1499
        %v1501 = vrot.slane %v1231, %v1500
        %v1502 = vlaneseq
        %v1503 = vshrl.u32 %v1502, 7
        %v1504 = vsub.s32 2, %v1503
        %v1505 = vrot.slane %v1232, %v1504
        %v1506 = vlaneseq
        %v1507 = vshrl.u32 %v1506, 7
        %v1508 = vsub.s32 6, %v1507
        %v1509 = vrot.slane %v1232, %v1508
        %v1510 = vlaneseq
        %v1511 = vshrl.u32 %v1510, 7
        %v1512 = vsub.s32 2, %v1511
        %v1513 = vrot.slane %v1233, %v1512
        %v1514 = vlaneseq
        %v1515 = vshrl.u32 %v1514, 7
        %v1516 = vsub.s32 6, %v1515
        %v1517 = vrot.slane %v1233, %v1516
        %v1530 = vlaneseq
        %v1531 = vshrl.u32 %v1530, 7
        %v1532 = vsub.s32 0, %v1531
        %v1533 = vrot.slane %v1234, %v1532
        %v1534 = vlaneseq
        %v1535 = vshrl.u32 %v1534, 7
        %v1536 = vsub.s32 4, %v1535
        %v1537 = vrot.slane %v1234, %v1536
        %v1538 = vlaneseq
        %v1539 = vshrl.u32 %v1538, 7
        %v1540 = vsub.s32 0, %v1539
        %v1541 = vrot.slane %v1235, %v1540
        %v1542 = vlaneseq
        %v1543 = vshrl.u32 %v1542, 7
        %v1544 = vsub.s32 4, %v1543
        %v1545 = vrot.slane %v1235, %v1544
        %v1546 = vlaneseq
        %v1547 = vshrl.u32 %v1546, 7
        %v1548 = vsub.s32 0, %v1547
        %v1549 = vrot.slane %v1236, %v1548
        %v1550 = vlaneseq
        %v1551 = vshrl.u32 %v1550, 7
        %v1552 = vsub.s32 4, %v1551
        %v1553 = vrot.slane %v1236, %v1552
        %v1554 = vlaneseq
        %v1555 = vshrl.u32 %v1554, 7
        %v1556 = vsub.s32 0, %v1555
        %v1557 = vrot.slane %v1237, %v1556
        %v1558 = vlaneseq
        %v1559 = vshrl.u32 %v1558, 7
        %v1560 = vsub.s32 4, %v1559
        %v1561 = vrot.slane %v1237, %v1560
        %v1574 = vlaneseq
        %v1575 = vshrl.u32 %v1574, 7
        %v1576 = vsub.s32 0, %v1575
        %v1577 = vrot.slane %v1238, %v1576
        %v1578 = vlaneseq
        %v1579 = vshrl.u32 %v1578, 7
        %v1580 = vsub.s32 4, %v1579
        %v1581 = vrot.slane %v1238, %v1580
        %v1582 = vlaneseq
        %v1583 = vshrl.u32 %v1582, 7
        %v1584 = vsub.s32 0, %v1583
        %v1585 = vrot.slane %v1239, %v1584
        %v1586 = vlaneseq
        %v1587 = vshrl.u32 %v1586, 7
        %v1588 = vsub.s32 4, %v1587
        %v1589 = vrot.slane %v1239, %v1588
        %v1590 = vlaneseq
        %v1591 = vshrl.u32 %v1590, 7
        %v1592 = vsub.s32 0, %v1591
        %v1593 = vrot.slane %v1240, %v1592
        %v1594 = vlaneseq
        %v1595 = vshrl.u32 %v1594, 7
        %v1596 = vsub.s32 4, %v1595
        %v1597 = vrot.slane %v1240, %v1596
        %v1598 = vlaneseq
        %v1599 = vshrl.u32 %v1598, 7
        %v1600 = vsub.s32 0, %v1599
        %v1601 = vrot.slane %v1241, %v1600
        %v1602 = vlaneseq
        %v1603 = vshrl.u32 %v1602, 7
        %v1604 = vsub.s32 4, %v1603
        %v1605 = vrot.slane %v1241, %v1604
        %v1618 = vlaneseq
        %v1619 = vshrl.u32 %v1618, 7
        %v1620 = vsub.s32 1, %v1619
        %v1621 = vrot.slane %v1242, %v1620
        %v1622 = vlaneseq
        %v1623 = vshrl.u32 %v1622, 7
        %v1624 = vsub.s32 5, %v1623
        %v1625 = vrot.slane %v1242, %v1624
        %v1626 = vlaneseq
        %v1627 = vshrl.u32 %v1626, 7
        %v1628 = vsub.s32 1, %v1627
        %v1629 = vrot.slane %v1243, %v1628
        %v1630 = vlaneseq
        %v1631 = vshrl.u32 %v1630, 7
        %v1632 = vsub.s32 5, %v1631
        %v1633 = vrot.slane %v1243, %v1632
        %v1634 = vlaneseq
        %v1635 = vshrl.u32 %v1634, 7
        %v1636 = vsub.s32 1, %v1635
        %v1637 = vrot.slane %v1244, %v1636
        %v1638 = vlaneseq
        %v1639 = vshrl.u32 %v1638, 7
        %v1640 = vsub.s32 5, %v1639
        %v1641 = vrot.slane %v1244, %v1640
        %v1642 = vlaneseq
        %v1643 = vshrl.u32 %v1642, 7
        %v1644 = vsub.s32 1, %v1643
        %v1645 = vrot.slane %v1245, %v1644
        %v1646 = vlaneseq
        %v1647 = vshrl.u32 %v1646, 7
        %v1648 = vsub.s32 5, %v1647
        %v1649 = vrot.slane %v1245, %v1648
        %v1662 = vlaneseq
        %v1663 = vshrl.u32 %v1662, 7
        %v1664 = vsub.s32 2, %v1663
        %v1665 = vrot.slane %v1250, %v1664
        %v1666 = vlaneseq
        %v1667 = vshrl.u32 %v1666, 7
        %v1668 = vsub.s32 6, %v1667
        %v1669 = vrot.slane %v1250, %v1668
        %v1670 = vlaneseq
        %v1671 = vshrl.u32 %v1670, 7
        %v1672 = vsub.s32 2, %v1671
        %v1673 = vrot.slane %v1251, %v1672
        %v1674 = vlaneseq
        %v1675 = vshrl.u32 %v1674, 7
        %v1676 = vsub.s32 6, %v1675
        %v1677 = vrot.slane %v1251, %v1676
        %v1678 = vlaneseq
        %v1679 = vshrl.u32 %v1678, 7
        %v1680 = vsub.s32 2, %v1679
        %v1681 = vrot.slane %v1252, %v1680
        %v1682 = vlaneseq
        %v1683 = vshrl.u32 %v1682, 7
        %v1684 = vsub.s32 6, %v1683
        %v1685 = vrot.slane %v1252, %v1684
        %v1686 = vlaneseq
        %v1687 = vshrl.u32 %v1686, 7
        %v1688 = vsub.s32 2, %v1687
        %v1689 = vrot.slane %v1253, %v1688
        %v1690 = vlaneseq
        %v1691 = vshrl.u32 %v1690, 7
        %v1692 = vsub.s32 6, %v1691
        %v1693 = vrot.slane %v1253, %v1692
        %v1706 = vlaneseq
        %v1707 = vshrl.u32 %v1706, 7
        %v1708 = vsub.s32 0, %v1707
        %v1709 = vrot.slane %v1254, %v1708
        %v1710 = vlaneseq
        %v1711 = vshrl.u32 %v1710, 7
        %v1712 = vsub.s32 4, %v1711
        %v1713 = vrot.slane %v1254, %v1712
        %v1714 = vlaneseq
        %v1715 = vshrl.u32 %v1714, 7
        %v1716 = vsub.s32 0, %v1715
        %v1717 = vrot.slane %v1255, %v1716
        %v1718 = vlaneseq
        %v1719 = vshrl.u32 %v1718, 7
        %v1720 = vsub.s32 4, %v1719
        %v1721 = vrot.slane %v1255, %v1720
        %v1722 = vlaneseq
        %v1723 = vshrl.u32 %v1722, 7
        %v1724 = vsub.s32 0, %v1723
        %v1725 = vrot.slane %v1256, %v1724
        %v1726 = vlaneseq
        %v1727 = vshrl.u32 %v1726, 7
        %v1728 = vsub.s32 4, %v1727
        %v1729 = vrot.slane %v1256, %v1728
        %v1730 = vlaneseq
        %v1731 = vshrl.u32 %v1730, 7
        %v1732 = vsub.s32 0, %v1731
        %v1733 = vrot.slane %v1257, %v1732
        %v1734 = vlaneseq
        %v1735 = vshrl.u32 %v1734, 7
        %v1736 = vsub.s32 4, %v1735
        %v1737 = vrot.slane %v1257, %v1736
        %v1750 = vlaneseq
        %v1751 = vshrl.u32 %v1750, 7
        %v1752 = vsub.s32 0, %v1751
        %v1753 = vrot.slane %v1278, %v1752
        %v1754 = vlaneseq
        %v1755 = vshrl.u32 %v1754, 7
        %v1756 = vsub.s32 4, %v1755
        %v1757 = vrot.slane %v1278, %v1756
        %v1758 = vlaneseq
        %v1759 = vshrl.u32 %v1758, 7
        %v1760 = vsub.s32 0, %v1759
        %v1761 = vrot.slane %v1279, %v1760
        %v1762 = vlaneseq
        %v1763 = vshrl.u32 %v1762, 7
        %v1764 = vsub.s32 4, %v1763
        %v1765 = vrot.slane %v1279, %v1764
        %v1766 = vlaneseq
        %v1767 = vshrl.u32 %v1766, 7
        %v1768 = vsub.s32 0, %v1767
        %v1769 = vrot.slane %v1280, %v1768
        %v1770 = vlaneseq
        %v1771 = vshrl.u32 %v1770, 7
        %v1772 = vsub.s32 4, %v1771
        %v1773 = vrot.slane %v1280, %v1772
        %v1774 = vlaneseq
        %v1775 = vshrl.u32 %v1774, 7
        %v1776 = vsub.s32 0, %v1775
        %v1777 = vrot.slane %v1281, %v1776
        %v1778 = vlaneseq
        %v1779 = vshrl.u32 %v1778, 7
        %v1780 = vsub.s32 4, %v1779
        %v1781 = vrot.slane %v1281, %v1780
        %v1794 = vlaneseq
        %v1795 = vshrl.u32 %v1794, 7
        %v1796 = vsub.s32 1, %v1795
        %v1797 = vrot.slane %v1306, %v1796
        %v1798 = vlaneseq
        %v1799 = vshrl.u32 %v1798, 7
        %v1800 = vsub.s32 5, %v1799
        %v1801 = vrot.slane %v1306, %v1800
        %v1802 = vlaneseq
        %v1803 = vshrl.u32 %v1802, 7
        %v1804 = vsub.s32 1, %v1803
        %v1805 = vrot.slane %v1307, %v1804
        %v1806 = vlaneseq
        %v1807 = vshrl.u32 %v1806, 7
        %v1808 = vsub.s32 5, %v1807
        %v1809 = vrot.slane %v1307, %v1808
        %v1810 = vlaneseq
        %v1811 = vshrl.u32 %v1810, 7
        %v1812 = vsub.s32 1, %v1811
        %v1813 = vrot.slane %v1308, %v1812
        %v1814 = vlaneseq
        %v1815 = vshrl.u32 %v1814, 7
        %v1816 = vsub.s32 5, %v1815
        %v1817 = vrot.slane %v1308, %v1816
        %v1818 = vlaneseq
        %v1819 = vshrl.u32 %v1818, 7
        %v1820 = vsub.s32 1, %v1819
        %v1821 = vrot.slane %v1309, %v1820
        %v1822 = vlaneseq
        %v1823 = vshrl.u32 %v1822, 7
        %v1824 = vsub.s32 5, %v1823
        %v1825 = vrot.slane %v1309, %v1824
        %v1838 = vlaneseq
        %v1839 = vshrl.u32 %v1838, 7
        %v1840 = vsub.s32 0, %v1839
        %v1841 = vrot.slane %v1314, %v1840
        %v1842 = vlaneseq
        %v1843 = vshrl.u32 %v1842, 7
        %v1844 = vsub.s32 4, %v1843
        %v1845 = vrot.slane %v1314, %v1844
        %v1846 = vlaneseq
        %v1847 = vshrl.u32 %v1846, 7
        %v1848 = vsub.s32 0, %v1847
        %v1849 = vrot.slane %v1315, %v1848
        %v1850 = vlaneseq
        %v1851 = vshrl.u32 %v1850, 7
        %v1852 = vsub.s32 4, %v1851
        %v1853 = vrot.slane %v1315, %v1852
        %v1854 = vlaneseq
        %v1855 = vshrl.u32 %v1854, 7
        %v1856 = vsub.s32 0, %v1855
        %v1857 = vrot.slane %v1316, %v1856
        %v1858 = vlaneseq
        %v1859 = vshrl.u32 %v1858, 7
        %v1860 = vsub.s32 4, %v1859
        %v1861 = vrot.slane %v1316, %v1860
        %v1862 = vlaneseq
        %v1863 = vshrl.u32 %v1862, 7
        %v1864 = vsub.s32 0, %v1863
        %v1865 = vrot.slane %v1317, %v1864
        %v1866 = vlaneseq
        %v1867 = vshrl.u32 %v1866, 7
        %v1868 = vsub.s32 4, %v1867
        %v1869 = vrot.slane %v1317, %v1868
        %v1882 = vlaneseq
        %v1883 = vshrl.u32 %v1882, 7
        %v1884 = vsub.s32 1, %v1883
        %v1885 = vrot.slane %v1346, %v1884
        %v1886 = vlaneseq
        %v1887 = vshrl.u32 %v1886, 7
        %v1888 = vsub.s32 5, %v1887
        %v1889 = vrot.slane %v1346, %v1888
        %v1890 = vlaneseq
        %v1891 = vshrl.u32 %v1890, 7
        %v1892 = vsub.s32 1, %v1891
        %v1893 = vrot.slane %v1347, %v1892
        %v1894 = vlaneseq
        %v1895 = vshrl.u32 %v1894, 7
        %v1896 = vsub.s32 5, %v1895
        %v1897 = vrot.slane %v1347, %v1896
        %v1898 = vlaneseq
        %v1899 = vshrl.u32 %v1898, 7
        %v1900 = vsub.s32 1, %v1899
        %v1901 = vrot.slane %v1348, %v1900
        %v1902 = vlaneseq
        %v1903 = vshrl.u32 %v1902, 7
        %v1904 = vsub.s32 5, %v1903
        %v1905 = vrot.slane %v1348, %v1904
        %v1906 = vlaneseq
        %v1907 = vshrl.u32 %v1906, 7
        %v1908 = vsub.s32 1, %v1907
        %v1909 = vrot.slane %v1349, %v1908
        %v1910 = vlaneseq
        %v1911 = vshrl.u32 %v1910, 7
        %v1912 = vsub.s32 5, %v1911
        %v1913 = vrot.slane %v1349, %v1912
        %v1926 = vlaneseq
        %v1927 = vshrl.u32 %v1926, 7
        %v1928 = vsub.s32 2, %v1927
        %v1929 = vrot.slane %v1358, %v1928
        %v1930 = vlaneseq
        %v1931 = vshrl.u32 %v1930, 7
        %v1932 = vsub.s32 6, %v1931
        %v1933 = vrot.slane %v1358, %v1932
        %v1934 = vlaneseq
        %v1935 = vshrl.u32 %v1934, 7
        %v1936 = vsub.s32 2, %v1935
        %v1937 = vrot.slane %v1359, %v1936
        %v1938 = vlaneseq
        %v1939 = vshrl.u32 %v1938, 7
        %v1940 = vsub.s32 6, %v1939
        %v1941 = vrot.slane %v1359, %v1940
        %v1942 = vlaneseq
        %v1943 = vshrl.u32 %v1942, 7
        %v1944 = vsub.s32 2, %v1943
        %v1945 = vrot.slane %v1360, %v1944
        %v1946 = vlaneseq
        %v1947 = vshrl.u32 %v1946, 7
        %v1948 = vsub.s32 6, %v1947
        %v1949 = vrot.slane %v1360, %v1948
        %v1950 = vlaneseq
        %v1951 = vshrl.u32 %v1950, 7
        %v1952 = vsub.s32 2, %v1951
        %v1953 = vrot.slane %v1361, %v1952
        %v1954 = vlaneseq
        %v1955 = vshrl.u32 %v1954, 7
        %v1956 = vsub.s32 6, %v1955
        %v1957 = vrot.slane %v1361, %v1956
        %v1970 = vlaneseq
        %v1971 = vshrl.u32 %v1970, 7
        %v1972 = vsub.s32 0, %v1971
        %v1973 = vrot.slane %v1378, %v1972
        %v1974 = vlaneseq
        %v1975 = vshrl.u32 %v1974, 7
        %v1976 = vsub.s32 4, %v1975
        %v1977 = vrot.slane %v1378, %v1976
        %v1978 = vlaneseq
        %v1979 = vshrl.u32 %v1978, 7
        %v1980 = vsub.s32 0, %v1979
        %v1981 = vrot.slane %v1379, %v1980
        %v1982 = vlaneseq
        %v1983 = vshrl.u32 %v1982, 7
        %v1984 = vsub.s32 4, %v1983
        %v1985 = vrot.slane %v1379, %v1984
        %v1986 = vlaneseq
        %v1987 = vshrl.u32 %v1986, 7
        %v1988 = vsub.s32 0, %v1987
        %v1989 = vrot.slane %v1380, %v1988
        %v1990 = vlaneseq
        %v1991 = vshrl.u32 %v1990, 7
        %v1992 = vsub.s32 4, %v1991
        %v1993 = vrot.slane %v1380, %v1992
        %v1994 = vlaneseq
        %v1995 = vshrl.u32 %v1994, 7
        %v1996 = vsub.s32 0, %v1995
        %v1997 = vrot.slane %v1381, %v1996
        %v1998 = vlaneseq
        %v1999 = vshrl.u32 %v1998, 7
        %v2000 = vsub.s32 4, %v1999
        %v2001 = vrot.slane %v1381, %v2000
        %v2014 = vlaneseq
        %v2015 = vshrl.u32 %v2014, 7
        %v2016 = vsub.s32 2, %v2015
        %v2017 = vrot.slane %v1398, %v2016
        %v2018 = vlaneseq
        %v2019 = vshrl.u32 %v2018, 7
        %v2020 = vsub.s32 6, %v2019
        %v2021 = vrot.slane %v1398, %v2020
        %v2022 = vlaneseq
        %v2023 = vshrl.u32 %v2022, 7
        %v2024 = vsub.s32 2, %v2023
        %v2025 = vrot.slane %v1399, %v2024
        %v2026 = vlaneseq
        %v2027 = vshrl.u32 %v2026, 7
        %v2028 = vsub.s32 6, %v2027
        %v2029 = vrot.slane %v1399, %v2028
        %v2030 = vlaneseq
        %v2031 = vshrl.u32 %v2030, 7
        %v2032 = vsub.s32 2, %v2031
        %v2033 = vrot.slane %v1400, %v2032
        %v2034 = vlaneseq
        %v2035 = vshrl.u32 %v2034, 7
        %v2036 = vsub.s32 6, %v2035
        %v2037 = vrot.slane %v1400, %v2036
        %v2038 = vlaneseq
        %v2039 = vshrl.u32 %v2038, 7
        %v2040 = vsub.s32 2, %v2039
        %v2041 = vrot.slane %v1401, %v2040
        %v2042 = vlaneseq
        %v2043 = vshrl.u32 %v2042, 7
        %v2044 = vsub.s32 6, %v2043
        %v2045 = vrot.slane %v1401, %v2044
        %v2058 = vlaneseq
        %v2059 = vshrl.u32 %v2058, 7
        %v2060 = vsub.s32 0, %v2059
        %v2061 = vrot.slane %v1434, %v2060
        %v2062 = vlaneseq
        %v2063 = vshrl.u32 %v2062, 7
        %v2064 = vsub.s32 4, %v2063
        %v2065 = vrot.slane %v1434, %v2064
        %v2066 = vlaneseq
        %v2067 = vshrl.u32 %v2066, 7
        %v2068 = vsub.s32 0, %v2067
        %v2069 = vrot.slane %v1435, %v2068
        %v2070 = vlaneseq
        %v2071 = vshrl.u32 %v2070, 7
        %v2072 = vsub.s32 4, %v2071
        %v2073 = vrot.slane %v1435, %v2072
        %v2074 = vlaneseq
        %v2075 = vshrl.u32 %v2074, 7
        %v2076 = vsub.s32 0, %v2075
        %v2077 = vrot.slane %v1436, %v2076
        %v2078 = vlaneseq
        %v2079 = vshrl.u32 %v2078, 7
        %v2080 = vsub.s32 4, %v2079
        %v2081 = vrot.slane %v1436, %v2080
        %v2082 = vlaneseq
        %v2083 = vshrl.u32 %v2082, 7
        %v2084 = vsub.s32 0, %v2083
        %v2085 = vrot.slane %v1437, %v2084
        %v2086 = vlaneseq
        %v2087 = vshrl.u32 %v2086, 7
        %v2088 = vsub.s32 4, %v2087
        %v2089 = vrot.slane %v1437, %v2088
        %vm2098 = vcmask 1040384
        %v2099 = vsel %vm2098, 0.2820948, %v1445
        %v2100 = vsel %vm2098, 0.2820948, %v1449
        %v2101 = vsel %vm2098, 0.2820948, %v1453
        %v2102 = vsel %vm2098, 0.2820948, %v1457
        %v2103 = vsel %vm2098, 0.2820948, %v1461
        %v2104 = vsel %vm2098, 0.2820948, %v1465
        %v2105 = vsel %vm2098, 0.2820948, %v1469
        %v2106 = vsel %vm2098, 0.2820948, %v1473
        %vm2107 = vcmask 1041408
        %v2108 = vsel %vm2107, %v2099, %v1489
        %v2109 = vsel %vm2107, %v2100, %v1493
        %v2110 = vsel %vm2107, %v2101, %v1497
        %v2111 = vsel %vm2107, %v2102, %v1501
        %v2112 = vsel %vm2107, %v2103, %v1505
        %v2113 = vsel %vm2107, %v2104, %v1509
        %v2114 = vsel %vm2107, %v2105, %v1513
        %v2115 = vsel %vm2107, %v2106, %v1517
        %vm2116 = vcmask 1042432
        %v2117 = vsel %vm2116, %v2108, %v1533
        %v2118 = vsel %vm2116, %v2109, %v1537
        %v2119 = vsel %vm2116, %v2110, %v1541
        %v2120 = vsel %vm2116, %v2111, %v1545
        %v2121 = vsel %vm2116, %v2112, %v1549
        %v2122 = vsel %vm2116, %v2113, %v1553
        %v2123 = vsel %vm2116, %v2114, %v1557
        %v2124 = vsel %vm2116, %v2115, %v1561
        %vm2125 = vcmask 1043456
        %v2126 = vsel %vm2125, %v2117, %v1577
        %v2127 = vsel %vm2125, %v2118, %v1581
        %v2128 = vsel %vm2125, %v2119, %v1585
        %v2129 = vsel %vm2125, %v2120, %v1589
        %v2130 = vsel %vm2125, %v2121, %v1593
        %v2131 = vsel %vm2125, %v2122, %v1597
        %v2132 = vsel %vm2125, %v2123, %v1601
        %v2133 = vsel %vm2125, %v2124, %v1605
        %vm2134 = vcmask 1044480
        %v2135 = vsel %vm2134, %v2126, %v1621
        %v2136 = vsel %vm2134, %v2127, %v1625
        %v2137 = vsel %vm2134, %v2128, %v1629
        %v2138 = vsel %vm2134, %v2129, %v1633
        %v2139 = vsel %vm2134, %v2130, %v1637
        %v2140 = vsel %vm2134, %v2131, %v1641
        %v2141 = vsel %vm2134, %v2132, %v1645
        %v2142 = vsel %vm2134, %v2133, %v1649
        %vm2143 = vcmask 1045504
        %v2144 = vsel %vm2143, %v2135, %v1665
        %v2145 = vsel %vm2143, %v2136, %v1669
        %v2146 = vsel %vm2143, %v2137, %v1673
        %v2147 = vsel %vm2143, %v2138, %v1677
        %v2148 = vsel %vm2143, %v2139, %v1681
        %v2149 = vsel %vm2143, %v2140, %v1685
        %v2150 = vsel %vm2143, %v2141, %v1689
        %v2151 = vsel %vm2143, %v2142, %v1693
        %vm2152 = vcmask 1046528
        %v2153 = vsel %vm2152, %v2144, %v1709
        %v2154 = vsel %vm2152, %v2145, %v1713
        %v2155 = vsel %vm2152, %v2146, %v1717
        %v2156 = vsel %vm2152, %v2147, %v1721
        %v2157 = vsel %vm2152, %v2148, %v1725
        %v2158 = vsel %vm2152, %v2149, %v1729
        %v2159 = vsel %vm2152, %v2150, %v1733
        %v2160 = vsel %vm2152, %v2151, %v1737
        %v2161 = vsel %vm2098, %v1753, %v1797
        %v2162 = vsel %vm2098, %v1757, %v1801
        %v2163 = vsel %vm2098, %v1761, %v1805
        %v2164 = vsel %vm2098, %v1765, %v1809
        %v2165 = vsel %vm2098, %v1769, %v1813
        %v2166 = vsel %vm2098, %v1773, %v1817
        %v2167 = vsel %vm2098, %v1777, %v1821
        %v2168 = vsel %vm2098, %v1781, %v1825
        %v2169 = vsel %vm2107, %v2161, %v1841
        %v2170 = vsel %vm2107, %v2162, %v1845
        %v2171 = vsel %vm2107, %v2163, %v1849
        %v2172 = vsel %vm2107, %v2164, %v1853
        %v2173 = vsel %vm2107, %v2165, %v1857
        %v2174 = vsel %vm2107, %v2166, %v1861
        %v2175 = vsel %vm2107, %v2167, %v1865
        %v2176 = vsel %vm2107, %v2168, %v1869
        %v2177 = vsel %vm2116, %v2169, %v1885
        %v2178 = vsel %vm2116, %v2170, %v1889
        %v2179 = vsel %vm2116, %v2171, %v1893
        %v2180 = vsel %vm2116, %v2172, %v1897
        %v2181 = vsel %vm2116, %v2173, %v1901
        %v2182 = vsel %vm2116, %v2174, %v1905
        %v2183 = vsel %vm2116, %v2175, %v1909
        %v2184 = vsel %vm2116, %v2176, %v1913
        %v2185 = vsel %vm2125, %v2177, %v1929
        %v2186 = vsel %vm2125, %v2178, %v1933
        %v2187 = vsel %vm2125, %v2179, %v1937
        %v2188 = vsel %vm2125, %v2180, %v1941
        %v2189 = vsel %vm2125, %v2181, %v1945
        %v2190 = vsel %vm2125, %v2182, %v1949
        %v2191 = vsel %vm2125, %v2183, %v1953
        %v2192 = vsel %vm2125, %v2184, %v1957
        %v2193 = vsel %vm2134, %v2185, %v1973
        %v2194 = vsel %vm2134, %v2186, %v1977
        %v2195 = vsel %vm2134, %v2187, %v1981
        %v2196 = vsel %vm2134, %v2188, %v1985
        %v2197 = vsel %vm2134, %v2189, %v1989
        %v2198 = vsel %vm2134, %v2190, %v1993
        %v2199 = vsel %vm2134, %v2191, %v1997
        %v2200 = vsel %vm2134, %v2192, %v2001
        %v2201 = vsel %vm2143, %v2193, %v2017
        %v2202 = vsel %vm2143, %v2194, %v2021
        %v2203 = vsel %vm2143, %v2195, %v2025
        %v2204 = vsel %vm2143, %v2196, %v2029
        %v2205 = vsel %vm2143, %v2197, %v2033
        %v2206 = vsel %vm2143, %v2198, %v2037
        %v2207 = vsel %vm2143, %v2199, %v2041
        %v2208 = vsel %vm2143, %v2200, %v2045
        %v2209 = vsel %vm2152, %v2201, %v2061
        %v2210 = vsel %vm2152, %v2202, %v2065
        %v2211 = vsel %vm2152, %v2203, %v2069
        %v2212 = vsel %vm2152, %v2204, %v2073
        %v2213 = vsel %vm2152, %v2205, %v2077
        %v2214 = vsel %vm2152, %v2206, %v2081
        %v2215 = vsel %vm2152, %v2207, %v2085
        %v2216 = vsel %vm2152, %v2208, %v2089
        %v2217 = vpack.c.bf16 %v2209, %v2153
        %v2218 = vpack.c.bf16 %v2210, %v2154
        %v2219 = vpack.c.bf16 %v2211, %v2155
        %v2220 = vpack.c.bf16 %v2212, %v2156
        %v2221 = vpack.c.bf16 %v2213, %v2157
        %v2222 = vpack.c.bf16 %v2214, %v2158
        %v2223 = vpack.c.bf16 %v2215, %v2159
        %v2224 = vpack.c.bf16 %v2216, %v2160
        %v2225 = vpack.c.bf16 %v929, %v925
        %v2226 = vpack.c.bf16 %v931, %v927
        %v2227 = vpack.c.bf16 %v972, %v968
        %v2228 = vpack.c.bf16 %v974, %v970
        %v2229 = vpack.c.bf16 %v1015, %v1011
        %v2230 = vpack.c.bf16 %v1017, %v1013
        %v2231 = vpack.c.bf16 %v1058, %v1054
        %v2232 = vpack.c.bf16 %v1060, %v1056
        %v2233 = vld [vmem:[%s4] sm:$0xf]
        %v2234 = vld [vmem:[%s4 + $0x4] sm:$0xf]
        %v2235 = vld [vmem:[%s4 + $0x8] sm:$0xf]
        %v2236 = vld [vmem:[%s4 + $0xc] sm:$0xf]
        %v2237 = vld [vmem:[%s4 + $0x10] sm:$0xf]
        %v2238 = vld [vmem:[%s4 + $0x14] sm:$0xf]
        %v2239 = vld [vmem:[%s4 + $0x18] sm:$0xf]
        %v2240 = vld [vmem:[%s4 + $0x1c] sm:$0xf]
        %v2249 = vunpack.c.l.b16 %v2233
        %v2250 = vunpack.c.l.b16 %v2234
        %v2251 = vunpack.c.l.b16 %v2235
        %v2252 = vunpack.c.l.b16 %v2236
        %v2253 = vunpack.c.l.b16 %v2237
        %v2254 = vunpack.c.l.b16 %v2238
        %v2255 = vunpack.c.l.b16 %v2239
        %v2256 = vunpack.c.l.b16 %v2240
        %v2257 = vpack.c.b16 %v2250, %v2249
        %v2258 = vpack.c.b16 %v2252, %v2251
        %v2259 = vpack.c.b16 %v2254, %v2253
        %v2260 = vpack.c.b16 %v2256, %v2255
        %v2262 = vsel %vm478, %v2257, 0
        %v2265 = vsel %vm478, %v2258, 0
        %v2268 = vsel %vm478, %v2259, 0
        %v2271 = vsel %vm478, %v2260, 0
        %2273 = vmatprep.subr.bf16.mxu0 %v2218
        %2274 = vmatpush1.bf16.msra.mxu0 %v2217
        %2275 = vmatprep.subr.bf16.mxu0 %v2226
        %2276 = vmatpush1.bf16.msra.mxu0 %v2225
        %2277 = vmatprep.subr.bf16.mxu0 0
        %2278 = vmatpush1.bf16.msra.mxu0 0
        %2279 = vmatprep.subr.bf16.mxu0 0
        %2280 = vmatpush1.bf16.msra.mxu0 0
        %2281 = vmatprep.subr.bf16.mxu0 0
        %2282 = vmatpush1.bf16.msra.mxu0 0
        %2283 = vmatprep.subr.bf16.mxu0 0
        %2284 = vmatpush1.bf16.msra.mxu0 0
        %2285 = vmatprep.subr.bf16.mxu0 0
        %2286 = vmatpush1.bf16.msra.mxu0 0
        %2287 = vmatprep.subr.bf16.mxu0 0
        %2288 = vmatpush1.bf16.msra.mxu0 0
        %2289 = vmatprep.subr.bf16.mxu0 0
        %2290 = vmatpush1.bf16.msra.mxu0 0
        %2291 = vmatprep.subr.bf16.mxu0 0
        %2292 = vmatpush1.bf16.msra.mxu0 0
        %2293 = vmatprep.subr.bf16.mxu0 0
        %2294 = vmatpush1.bf16.msra.mxu0 0
        %2295 = vmatprep.subr.bf16.mxu0 0
        %2296 = vmatpush1.bf16.msra.mxu0 0
        %2297 = vmatprep.subr.bf16.mxu0 0
        %2298 = vmatpush1.bf16.msra.mxu0 0
        %2299 = vmatprep.subr.bf16.mxu0 0
        %2300 = vmatpush1.bf16.msra.mxu0 0
        %2301 = vmatprep.subr.bf16.mxu0 0
        %2302 = vmatpush1.bf16.msra.mxu0 0
        %2303 = vmatprep.subr.bf16.mxu0 0
        %2304 = vmatpush1.bf16.msra.mxu0 0
        %2305 = vmatprep.mubr.bf16.mxu0 0
        %2306 = vmatmul.mubr.bf16.gmra.mrb[0].mxu0 %v2262
        %v2307 = vpop.f32.mrb[0].mxu0
        %v2308 = vadd.f32 0.0, %v2307
        %v2309 = vpop.f32.mrb[0].mxu0
        %v2310 = vadd.f32 0.0, %v2309
        %v2311 = vpop.f32.mrb[0].mxu0
        %v2312 = vadd.f32 0.0, %v2311
        %v2313 = vpop.f32.mrb[0].mxu0
        %v2314 = vadd.f32 0.0, %v2313
        %2315 = vmatprep.mubr.bf16.mxu0 0
        %2316 = vmatmul.mubr.bf16.gmra.mrb[0].mxu0 %v2265
        %v2317 = vpop.f32.mrb[0].mxu0
        %v2318 = vadd.f32 0.0, %v2317
        %v2319 = vpop.f32.mrb[0].mxu0
        %v2320 = vadd.f32 0.0, %v2319
        %v2321 = vpop.f32.mrb[0].mxu0
        %v2322 = vadd.f32 0.0, %v2321
        %v2323 = vpop.f32.mrb[0].mxu0
        %v2324 = vadd.f32 0.0, %v2323
        %2325 = vmatprep.mubr.bf16.mxu0 0
        %2326 = vmatmul.mubr.bf16.gmra.mrb[0].mxu0 %v2268
        %v2327 = vpop.f32.mrb[0].mxu0
        %v2328 = vadd.f32 0.0, %v2327
        %v2329 = vpop.f32.mrb[0].mxu0
        %v2330 = vadd.f32 0.0, %v2329
        %v2331 = vpop.f32.mrb[0].mxu0
        %v2332 = vadd.f32 0.0, %v2331
        %v2333 = vpop.f32.mrb[0].mxu0
        %v2334 = vadd.f32 0.0, %v2333
        %2335 = vmatprep.mubr.bf16.mxu0 0
        %2336 = vmatmul.mubr.bf16.gmra.mrb[0].mxu0 %v2271
        %v2337 = vpop.f32.mrb[0].mxu0
        %v2338 = vadd.f32 0.0, %v2337
        %v2339 = vpop.f32.mrb[0].mxu0
        %v2340 = vadd.f32 0.0, %v2339
        %v2341 = vpop.f32.mrb[0].mxu0
        %v2342 = vadd.f32 0.0, %v2341
        %v2343 = vpop.f32.mrb[0].mxu0
        %v2344 = vadd.f32 0.0, %v2343
        %2345 = vdwg.mxu0
        %2346 = vmatprep.subr.bf16.mxu0 %v2220
        %2347 = vmatpush1.bf16.msra.mxu0 %v2219
        %2348 = vmatprep.subr.bf16.mxu0 %v2228
        %2349 = vmatpush1.bf16.msra.mxu0 %v2227
        %2350 = vmatprep.subr.bf16.mxu0 0
        %2351 = vmatpush1.bf16.msra.mxu0 0
        %2352 = vmatprep.subr.bf16.mxu0 0
        %2353 = vmatpush1.bf16.msra.mxu0 0
        %2354 = vmatprep.subr.bf16.mxu0 0
        %2355 = vmatpush1.bf16.msra.mxu0 0
        %2356 = vmatprep.subr.bf16.mxu0 0
        %2357 = vmatpush1.bf16.msra.mxu0 0
        %2358 = vmatprep.subr.bf16.mxu0 0
        %2359 = vmatpush1.bf16.msra.mxu0 0
        %2360 = vmatprep.subr.bf16.mxu0 0
        %2361 = vmatpush1.bf16.msra.mxu0 0
        %2362 = vmatprep.subr.bf16.mxu0 0
        %2363 = vmatpush1.bf16.msra.mxu0 0
        %2364 = vmatprep.subr.bf16.mxu0 0
        %2365 = vmatpush1.bf16.msra.mxu0 0
        %2366 = vmatprep.subr.bf16.mxu0 0
        %2367 = vmatpush1.bf16.msra.mxu0 0
        %2368 = vmatprep.subr.bf16.mxu0 0
        %2369 = vmatpush1.bf16.msra.mxu0 0
        %2370 = vmatprep.subr.bf16.mxu0 0
        %2371 = vmatpush1.bf16.msra.mxu0 0
        %2372 = vmatprep.subr.bf16.mxu0 0
        %2373 = vmatpush1.bf16.msra.mxu0 0
        %2374 = vmatprep.subr.bf16.mxu0 0
        %2375 = vmatpush1.bf16.msra.mxu0 0
        %2376 = vmatprep.subr.bf16.mxu0 0
        %2377 = vmatpush1.bf16.msra.mxu0 0
        %2378 = vmatprep.mubr.bf16.mxu0 0
        %2379 = vmatmul.mubr.bf16.gmra.mrb[0].mxu0 %v2262
        %v2380 = vpop.f32.mrb[0].mxu0
        %v2381 = vadd.f32 0.0, %v2380
        %v2382 = vpop.f32.mrb[0].mxu0
        %v2383 = vadd.f32 0.0, %v2382
        %v2384 = vpop.f32.mrb[0].mxu0
        %v2385 = vadd.f32 0.0, %v2384
        %v2386 = vpop.f32.mrb[0].mxu0
        %v2387 = vadd.f32 0.0, %v2386
        %2388 = vmatprep.mubr.bf16.mxu0 0
        %2389 = vmatmul.mubr.bf16.gmra.mrb[0].mxu0 %v2265
        %v2390 = vpop.f32.mrb[0].mxu0
        %v2391 = vadd.f32 0.0, %v2390
        %v2392 = vpop.f32.mrb[0].mxu0
        %v2393 = vadd.f32 0.0, %v2392
        %v2394 = vpop.f32.mrb[0].mxu0
        %v2395 = vadd.f32 0.0, %v2394
        %v2396 = vpop.f32.mrb[0].mxu0
        %v2397 = vadd.f32 0.0, %v2396
        %2398 = vmatprep.mubr.bf16.mxu0 0
        %2399 = vmatmul.mubr.bf16.gmra.mrb[0].mxu0 %v2268
        %v2400 = vpop.f32.mrb[0].mxu0
        %v2401 = vadd.f32 0.0, %v2400
        %v2402 = vpop.f32.mrb[0].mxu0
        %v2403 = vadd.f32 0.0, %v2402
        %v2404 = vpop.f32.mrb[0].mxu0
        %v2405 = vadd.f32 0.0, %v2404
        %v2406 = vpop.f32.mrb[0].mxu0
        %v2407 = vadd.f32 0.0, %v2406
        %2408 = vmatprep.mubr.bf16.mxu0 0
        %2409 = vmatmul.mubr.bf16.gmra.mrb[0].mxu0 %v2271
        %v2410 = vpop.f32.mrb[0].mxu0
        %v2411 = vadd.f32 0.0, %v2410
        %v2412 = vpop.f32.mrb[0].mxu0
        %v2413 = vadd.f32 0.0, %v2412
        %v2414 = vpop.f32.mrb[0].mxu0
        %v2415 = vadd.f32 0.0, %v2414
        %v2416 = vpop.f32.mrb[0].mxu0
        %v2417 = vadd.f32 0.0, %v2416
        %2418 = vdwg.mxu0
        %2419 = vmatprep.subr.bf16.mxu0 %v2222
        %2420 = vmatpush1.bf16.msra.mxu0 %v2221
        %2421 = vmatprep.subr.bf16.mxu0 %v2230
        %2422 = vmatpush1.bf16.msra.mxu0 %v2229
        %2423 = vmatprep.subr.bf16.mxu0 0
        %2424 = vmatpush1.bf16.msra.mxu0 0
        %2425 = vmatprep.subr.bf16.mxu0 0
        %2426 = vmatpush1.bf16.msra.mxu0 0
        %2427 = vmatprep.subr.bf16.mxu0 0
        %2428 = vmatpush1.bf16.msra.mxu0 0
        %2429 = vmatprep.subr.bf16.mxu0 0
        %2430 = vmatpush1.bf16.msra.mxu0 0
        %2431 = vmatprep.subr.bf16.mxu0 0
        %2432 = vmatpush1.bf16.msra.mxu0 0
        %2433 = vmatprep.subr.bf16.mxu0 0
        %2434 = vmatpush1.bf16.msra.mxu0 0
        %2435 = vmatprep.subr.bf16.mxu0 0
        %2436 = vmatpush1.bf16.msra.mxu0 0
        %2437 = vmatprep.subr.bf16.mxu0 0
        %2438 = vmatpush1.bf16.msra.mxu0 0
        %2439 = vmatprep.subr.bf16.mxu0 0
        %2440 = vmatpush1.bf16.msra.mxu0 0
        %2441 = vmatprep.subr.bf16.mxu0 0
        %2442 = vmatpush1.bf16.msra.mxu0 0
        %2443 = vmatprep.subr.bf16.mxu0 0
        %2444 = vmatpush1.bf16.msra.mxu0 0
        %2445 = vmatprep.subr.bf16.mxu0 0
        %2446 = vmatpush1.bf16.msra.mxu0 0
        %2447 = vmatprep.subr.bf16.mxu0 0
        %2448 = vmatpush1.bf16.msra.mxu0 0
        %2449 = vmatprep.subr.bf16.mxu0 0
        %2450 = vmatpush1.bf16.msra.mxu0 0
        %2451 = vmatprep.mubr.bf16.mxu0 0
        %2452 = vmatmul.mubr.bf16.gmra.mrb[0].mxu0 %v2262
        %v2453 = vpop.f32.mrb[0].mxu0
        %v2454 = vadd.f32 0.0, %v2453
        %v2455 = vpop.f32.mrb[0].mxu0
        %v2456 = vadd.f32 0.0, %v2455
        %v2457 = vpop.f32.mrb[0].mxu0
        %v2458 = vadd.f32 0.0, %v2457
        %v2459 = vpop.f32.mrb[0].mxu0
        %v2460 = vadd.f32 0.0, %v2459
        %2461 = vmatprep.mubr.bf16.mxu0 0
        %2462 = vmatmul.mubr.bf16.gmra.mrb[0].mxu0 %v2265
        %v2463 = vpop.f32.mrb[0].mxu0
        %v2464 = vadd.f32 0.0, %v2463
        %v2465 = vpop.f32.mrb[0].mxu0
        %v2466 = vadd.f32 0.0, %v2465
        %v2467 = vpop.f32.mrb[0].mxu0
        %v2468 = vadd.f32 0.0, %v2467
        %v2469 = vpop.f32.mrb[0].mxu0
        %v2470 = vadd.f32 0.0, %v2469
        %2471 = vmatprep.mubr.bf16.mxu0 0
        %2472 = vmatmul.mubr.bf16.gmra.mrb[0].mxu0 %v2268
        %v2473 = vpop.f32.mrb[0].mxu0
        %v2474 = vadd.f32 0.0, %v2473
        %v2475 = vpop.f32.mrb[0].mxu0
        %v2476 = vadd.f32 0.0, %v2475
        %v2477 = vpop.f32.mrb[0].mxu0
        %v2478 = vadd.f32 0.0, %v2477
        %v2479 = vpop.f32.mrb[0].mxu0
        %v2480 = vadd.f32 0.0, %v2479
        %2481 = vmatprep.mubr.bf16.mxu0 0
        %2482 = vmatmul.mubr.bf16.gmra.mrb[0].mxu0 %v2271
        %v2483 = vpop.f32.mrb[0].mxu0
        %v2484 = vadd.f32 0.0, %v2483
        %v2485 = vpop.f32.mrb[0].mxu0
        %v2486 = vadd.f32 0.0, %v2485
        %v2487 = vpop.f32.mrb[0].mxu0
        %v2488 = vadd.f32 0.0, %v2487
        %v2489 = vpop.f32.mrb[0].mxu0
        %v2490 = vadd.f32 0.0, %v2489
        %2491 = vdwg.mxu0
        %2492 = vmatprep.subr.bf16.mxu0 %v2224
        %2493 = vmatpush1.bf16.msra.mxu0 %v2223
        %2494 = vmatprep.subr.bf16.mxu0 %v2232
        %2495 = vmatpush1.bf16.msra.mxu0 %v2231
        %2496 = vmatprep.subr.bf16.mxu0 0
        %2497 = vmatpush1.bf16.msra.mxu0 0
        %2498 = vmatprep.subr.bf16.mxu0 0
        %2499 = vmatpush1.bf16.msra.mxu0 0
        %2500 = vmatprep.subr.bf16.mxu0 0
        %2501 = vmatpush1.bf16.msra.mxu0 0
        %2502 = vmatprep.subr.bf16.mxu0 0
        %2503 = vmatpush1.bf16.msra.mxu0 0
        %2504 = vmatprep.subr.bf16.mxu0 0
        %2505 = vmatpush1.bf16.msra.mxu0 0
        %2506 = vmatprep.subr.bf16.mxu0 0
        %2507 = vmatpush1.bf16.msra.mxu0 0
        %2508 = vmatprep.subr.bf16.mxu0 0
        %2509 = vmatpush1.bf16.msra.mxu0 0
        %2510 = vmatprep.subr.bf16.mxu0 0
        %2511 = vmatpush1.bf16.msra.mxu0 0
        %2512 = vmatprep.subr.bf16.mxu0 0
        %2513 = vmatpush1.bf16.msra.mxu0 0
        %2514 = vmatprep.subr.bf16.mxu0 0
        %2515 = vmatpush1.bf16.msra.mxu0 0
        %2516 = vmatprep.subr.bf16.mxu0 0
        %2517 = vmatpush1.bf16.msra.mxu0 0
        %2518 = vmatprep.subr.bf16.mxu0 0
        %2519 = vmatpush1.bf16.msra.mxu0 0
        %2520 = vmatprep.subr.bf16.mxu0 0
        %2521 = vmatpush1.bf16.msra.mxu0 0
        %2522 = vmatprep.subr.bf16.mxu0 0
        %2523 = vmatpush1.bf16.msra.mxu0 0
        %2524 = vmatprep.mubr.bf16.mxu0 0
        %2525 = vmatmul.mubr.bf16.gmra.mrb[0].mxu0 %v2262
        %v2526 = vpop.f32.mrb[0].mxu0
        %v2527 = vadd.f32 0.0, %v2526
        %v2528 = vpop.f32.mrb[0].mxu0
        %v2529 = vadd.f32 0.0, %v2528
        %v2530 = vpop.f32.mrb[0].mxu0
        %v2531 = vadd.f32 0.0, %v2530
        %v2532 = vpop.f32.mrb[0].mxu0
        %v2533 = vadd.f32 0.0, %v2532
        %2534 = vmatprep.mubr.bf16.mxu0 0
        %2535 = vmatmul.mubr.bf16.gmra.mrb[0].mxu0 %v2265
        %v2536 = vpop.f32.mrb[0].mxu0
        %v2537 = vadd.f32 0.0, %v2536
        %v2538 = vpop.f32.mrb[0].mxu0
        %v2539 = vadd.f32 0.0, %v2538
        %v2540 = vpop.f32.mrb[0].mxu0
        %v2541 = vadd.f32 0.0, %v2540
        %v2542 = vpop.f32.mrb[0].mxu0
        %v2543 = vadd.f32 0.0, %v2542
        %2544 = vmatprep.mubr.bf16.mxu0 0
        %2545 = vmatmul.mubr.bf16.gmra.mrb[0].mxu0 %v2268
        %v2546 = vpop.f32.mrb[0].mxu0
        %v2547 = vadd.f32 0.0, %v2546
        %v2548 = vpop.f32.mrb[0].mxu0
        %v2549 = vadd.f32 0.0, %v2548
        %v2550 = vpop.f32.mrb[0].mxu0
        %v2551 = vadd.f32 0.0, %v2550
        %v2552 = vpop.f32.mrb[0].mxu0
        %v2553 = vadd.f32 0.0, %v2552
        %2554 = vmatprep.mubr.bf16.mxu0 0
        %2555 = vmatmul.mubr.bf16.gmra.mrb[0].mxu0 %v2271
        %v2556 = vpop.f32.mrb[0].mxu0
        %v2557 = vadd.f32 0.0, %v2556
        %v2558 = vpop.f32.mrb[0].mxu0
        %v2559 = vadd.f32 0.0, %v2558
        %v2560 = vpop.f32.mrb[0].mxu0
        %v2561 = vadd.f32 0.0, %v2560
        %v2562 = vpop.f32.mrb[0].mxu0
        %v2563 = vadd.f32 0.0, %v2562
        %2564 = vdwg.mxu0
        %v2565 = vmax.f32 %v2308, 0.0
        %v2566 = vmax.f32 %v2310, 0.0
        %v2567 = vmax.f32 %v2381, 0.0
        %v2568 = vmax.f32 %v2383, 0.0
        %v2569 = vmax.f32 %v2454, 0.0
        %v2570 = vmax.f32 %v2456, 0.0
        %v2571 = vmax.f32 %v2527, 0.0
        %v2572 = vmax.f32 %v2529, 0.0
        %v2573 = vmax.f32 %v2312, 0.0
        %v2574 = vmax.f32 %v2314, 0.0
        %v2575 = vmax.f32 %v2385, 0.0
        %v2576 = vmax.f32 %v2387, 0.0
        %v2577 = vmax.f32 %v2458, 0.0
        %v2578 = vmax.f32 %v2460, 0.0
        %v2579 = vmax.f32 %v2531, 0.0
        %v2580 = vmax.f32 %v2533, 0.0
        %v2581 = vmax.f32 %v2318, 0.0
        %v2582 = vmax.f32 %v2320, 0.0
        %v2583 = vmax.f32 %v2391, 0.0
        %v2584 = vmax.f32 %v2393, 0.0
        %v2585 = vmax.f32 %v2464, 0.0
        %v2586 = vmax.f32 %v2466, 0.0
        %v2587 = vmax.f32 %v2537, 0.0
        %v2588 = vmax.f32 %v2539, 0.0
        %v2589 = vmax.f32 %v2322, 0.0
        %v2590 = vmax.f32 %v2324, 0.0
        %v2591 = vmax.f32 %v2395, 0.0
        %v2592 = vmax.f32 %v2397, 0.0
        %v2593 = vmax.f32 %v2468, 0.0
        %v2594 = vmax.f32 %v2470, 0.0
        %v2595 = vmax.f32 %v2541, 0.0
        %v2596 = vmax.f32 %v2543, 0.0
        %v2597 = vmax.f32 %v2328, 0.0
        %v2598 = vmax.f32 %v2330, 0.0
        %v2599 = vmax.f32 %v2401, 0.0
        %v2600 = vmax.f32 %v2403, 0.0
        %v2601 = vmax.f32 %v2474, 0.0
        %v2602 = vmax.f32 %v2476, 0.0
        %v2603 = vmax.f32 %v2547, 0.0
        %v2604 = vmax.f32 %v2549, 0.0
        %v2605 = vmax.f32 %v2332, 0.0
        %v2606 = vmax.f32 %v2334, 0.0
        %v2607 = vmax.f32 %v2405, 0.0
        %v2608 = vmax.f32 %v2407, 0.0
        %v2609 = vmax.f32 %v2478, 0.0
        %v2610 = vmax.f32 %v2480, 0.0
        %v2611 = vmax.f32 %v2551, 0.0
        %v2612 = vmax.f32 %v2553, 0.0
        %v2613 = vmax.f32 %v2338, 0.0
        %v2614 = vmax.f32 %v2340, 0.0
        %v2615 = vmax.f32 %v2411, 0.0
        %v2616 = vmax.f32 %v2413, 0.0
        %v2617 = vmax.f32 %v2484, 0.0
        %v2618 = vmax.f32 %v2486, 0.0
        %v2619 = vmax.f32 %v2557, 0.0
        %v2620 = vmax.f32 %v2559, 0.0
        %v2621 = vmax.f32 %v2342, 0.0
        %v2622 = vmax.f32 %v2344, 0.0
        %v2623 = vmax.f32 %v2415, 0.0
        %v2624 = vmax.f32 %v2417, 0.0
        %v2625 = vmax.f32 %v2488, 0.0
        %v2626 = vmax.f32 %v2490, 0.0
        %v2627 = vmax.f32 %v2561, 0.0
        %v2628 = vmax.f32 %v2563, 0.0
        %v2629 = vld [vmem:[%s5] sm:$0xf]
        %v2630 = vld [vmem:[%s5 + $0x4] sm:$0xf]
        %v2631 = vld [vmem:[%s5 + $0x8] sm:$0xf]
        %v2632 = vld [vmem:[%s5 + $0xc] sm:$0xf]
        %v2633 = vld [vmem:[%s5 + $0x10] sm:$0xf]
        %v2634 = vld [vmem:[%s5 + $0x14] sm:$0xf]
        %v2635 = vld [vmem:[%s5 + $0x18] sm:$0xf]
        %v2636 = vld [vmem:[%s5 + $0x1c] sm:$0xf]
        %v2637 = vpack.c.bf16 %v2573, %v2565
        %v2638 = vpack.c.bf16 %v2574, %v2566
        %v2639 = vpack.c.bf16 %v2575, %v2567
        %v2640 = vpack.c.bf16 %v2576, %v2568
        %v2641 = vpack.c.bf16 %v2577, %v2569
        %v2642 = vpack.c.bf16 %v2578, %v2570
        %v2643 = vpack.c.bf16 %v2579, %v2571
        %v2644 = vpack.c.bf16 %v2580, %v2572
        %v2645 = vpack.c.bf16 %v2589, %v2581
        %v2646 = vpack.c.bf16 %v2590, %v2582
        %v2647 = vpack.c.bf16 %v2591, %v2583
        %v2648 = vpack.c.bf16 %v2592, %v2584
        %v2649 = vpack.c.bf16 %v2593, %v2585
        %v2650 = vpack.c.bf16 %v2594, %v2586
        %v2651 = vpack.c.bf16 %v2595, %v2587
        %v2652 = vpack.c.bf16 %v2596, %v2588
        %v2653 = vpack.c.bf16 %v2605, %v2597
        %v2654 = vpack.c.bf16 %v2606, %v2598
        %v2655 = vpack.c.bf16 %v2607, %v2599
        %v2656 = vpack.c.bf16 %v2608, %v2600
        %v2657 = vpack.c.bf16 %v2609, %v2601
        %v2658 = vpack.c.bf16 %v2610, %v2602
        %v2659 = vpack.c.bf16 %v2611, %v2603
        %v2660 = vpack.c.bf16 %v2612, %v2604
        %v2661 = vpack.c.bf16 %v2621, %v2613
        %v2662 = vpack.c.bf16 %v2622, %v2614
        %v2663 = vpack.c.bf16 %v2623, %v2615
        %v2664 = vpack.c.bf16 %v2624, %v2616
        %v2665 = vpack.c.bf16 %v2625, %v2617
        %v2666 = vpack.c.bf16 %v2626, %v2618
        %v2667 = vpack.c.bf16 %v2627, %v2619
        %v2668 = vpack.c.bf16 %v2628, %v2620
        %v2677 = vunpack.c.l.b16 %v2629
        %v2678 = vunpack.c.l.b16 %v2630
        %v2679 = vunpack.c.l.b16 %v2631
        %v2680 = vunpack.c.l.b16 %v2632
        %v2681 = vunpack.c.l.b16 %v2633
        %v2682 = vunpack.c.l.b16 %v2634
        %v2683 = vunpack.c.l.b16 %v2635
        %v2684 = vunpack.c.l.b16 %v2636
        %v2685 = vpack.c.b16 %v2678, %v2677
        %v2686 = vpack.c.b16 %v2680, %v2679
        %v2687 = vpack.c.b16 %v2682, %v2681
        %v2688 = vpack.c.b16 %v2684, %v2683
        %v2690 = vsel %vm886, %v2685, 0
        %v2693 = vsel %vm886, %v2686, 0
        %v2696 = vsel %vm886, %v2687, 0
        %v2699 = vsel %vm886, %v2688, 0
        %2701 = vmatprep.subr.bf16.mxu0 %v2638
        %2702 = vmatpush1.bf16.msra.mxu0 %v2637
        %2703 = vmatprep.subr.bf16.mxu0 %v2646
        %2704 = vmatpush1.bf16.msra.mxu0 %v2645
        %2705 = vmatprep.subr.bf16.mxu0 %v2654
        %2706 = vmatpush1.bf16.msra.mxu0 %v2653
        %2707 = vmatprep.subr.bf16.mxu0 %v2662
        %2708 = vmatpush1.bf16.msra.mxu0 %v2661
        %2709 = vmatprep.subr.bf16.mxu0 0
        %2710 = vmatpush1.bf16.msra.mxu0 0
        %2711 = vmatprep.subr.bf16.mxu0 0
        %2712 = vmatpush1.bf16.msra.mxu0 0
        %2713 = vmatprep.subr.bf16.mxu0 0
        %2714 = vmatpush1.bf16.msra.mxu0 0
        %2715 = vmatprep.subr.bf16.mxu0 0
        %2716 = vmatpush1.bf16.msra.mxu0 0
        %2717 = vmatprep.subr.bf16.mxu0 0
        %2718 = vmatpush1.bf16.msra.mxu0 0
        %2719 = vmatprep.subr.bf16.mxu0 0
        %2720 = vmatpush1.bf16.msra.mxu0 0
        %2721 = vmatprep.subr.bf16.mxu0 0
        %2722 = vmatpush1.bf16.msra.mxu0 0
        %2723 = vmatprep.subr.bf16.mxu0 0
        %2724 = vmatpush1.bf16.msra.mxu0 0
        %2725 = vmatprep.subr.bf16.mxu0 0
        %2726 = vmatpush1.bf16.msra.mxu0 0
        %2727 = vmatprep.subr.bf16.mxu0 0
        %2728 = vmatpush1.bf16.msra.mxu0 0
        %2729 = vmatprep.subr.bf16.mxu0 0
        %2730 = vmatpush1.bf16.msra.mxu0 0
        %2731 = vmatprep.subr.bf16.mxu0 0
        %2732 = vmatpush1.bf16.msra.mxu0 0
        %2733 = vmatprep.mubr.bf16.mxu0 0
        %2734 = vmatmul.mubr.bf16.gmra.mrb[0].mxu0 %v2690
        %v2735 = vpop.f32.mrb[0].mxu0
        %v2736 = vadd.f32 0.0, %v2735
        %v2737 = vpop.f32.mrb[0].mxu0
        %v2738 = vadd.f32 0.0, %v2737
        %v2739 = vpop.f32.mrb[0].mxu0
        %v2740 = vadd.f32 0.0, %v2739
        %v2741 = vpop.f32.mrb[0].mxu0
        %v2742 = vadd.f32 0.0, %v2741
        %2743 = vmatprep.mubr.bf16.mxu0 0
        %2744 = vmatmul.mubr.bf16.gmra.mrb[0].mxu0 %v2693
        %v2745 = vpop.f32.mrb[0].mxu0
        %v2746 = vadd.f32 0.0, %v2745
        %v2747 = vpop.f32.mrb[0].mxu0
        %v2748 = vadd.f32 0.0, %v2747
        %v2749 = vpop.f32.mrb[0].mxu0
        %v2750 = vadd.f32 0.0, %v2749
        %v2751 = vpop.f32.mrb[0].mxu0
        %v2752 = vadd.f32 0.0, %v2751
        %2753 = vmatprep.mubr.bf16.mxu0 0
        %2754 = vmatmul.mubr.bf16.gmra.mrb[0].mxu0 %v2696
        %v2755 = vpop.f32.mrb[0].mxu0
        %v2756 = vadd.f32 0.0, %v2755
        %v2757 = vpop.f32.mrb[0].mxu0
        %v2758 = vadd.f32 0.0, %v2757
        %v2759 = vpop.f32.mrb[0].mxu0
        %v2760 = vadd.f32 0.0, %v2759
        %v2761 = vpop.f32.mrb[0].mxu0
        %v2762 = vadd.f32 0.0, %v2761
        %2763 = vmatprep.mubr.bf16.mxu0 0
        %2764 = vmatmul.mubr.bf16.gmra.mrb[0].mxu0 %v2699
        %v2765 = vpop.f32.mrb[0].mxu0
        %v2766 = vadd.f32 0.0, %v2765
        %v2767 = vpop.f32.mrb[0].mxu0
        %v2768 = vadd.f32 0.0, %v2767
        %v2769 = vpop.f32.mrb[0].mxu0
        %v2770 = vadd.f32 0.0, %v2769
        %v2771 = vpop.f32.mrb[0].mxu0
        %v2772 = vadd.f32 0.0, %v2771
        %2773 = vdwg.mxu0
        %2774 = vmatprep.subr.bf16.mxu0 %v2640
        %2775 = vmatpush1.bf16.msra.mxu0 %v2639
        %2776 = vmatprep.subr.bf16.mxu0 %v2648
        %2777 = vmatpush1.bf16.msra.mxu0 %v2647
        %2778 = vmatprep.subr.bf16.mxu0 %v2656
        %2779 = vmatpush1.bf16.msra.mxu0 %v2655
        %2780 = vmatprep.subr.bf16.mxu0 %v2664
        %2781 = vmatpush1.bf16.msra.mxu0 %v2663
        %2782 = vmatprep.subr.bf16.mxu0 0
        %2783 = vmatpush1.bf16.msra.mxu0 0
        %2784 = vmatprep.subr.bf16.mxu0 0
        %2785 = vmatpush1.bf16.msra.mxu0 0
        %2786 = vmatprep.subr.bf16.mxu0 0
        %2787 = vmatpush1.bf16.msra.mxu0 0
        %2788 = vmatprep.subr.bf16.mxu0 0
        %2789 = vmatpush1.bf16.msra.mxu0 0
        %2790 = vmatprep.subr.bf16.mxu0 0
        %2791 = vmatpush1.bf16.msra.mxu0 0
        %2792 = vmatprep.subr.bf16.mxu0 0
        %2793 = vmatpush1.bf16.msra.mxu0 0
        %2794 = vmatprep.subr.bf16.mxu0 0
        %2795 = vmatpush1.bf16.msra.mxu0 0
        %2796 = vmatprep.subr.bf16.mxu0 0
        %2797 = vmatpush1.bf16.msra.mxu0 0
        %2798 = vmatprep.subr.bf16.mxu0 0
        %2799 = vmatpush1.bf16.msra.mxu0 0
        %2800 = vmatprep.subr.bf16.mxu0 0
        %2801 = vmatpush1.bf16.msra.mxu0 0
        %2802 = vmatprep.subr.bf16.mxu0 0
        %2803 = vmatpush1.bf16.msra.mxu0 0
        %2804 = vmatprep.subr.bf16.mxu0 0
        %2805 = vmatpush1.bf16.msra.mxu0 0
        %2806 = vmatprep.mubr.bf16.mxu0 0
        %2807 = vmatmul.mubr.bf16.gmra.mrb[0].mxu0 %v2690
        %v2808 = vpop.f32.mrb[0].mxu0
        %v2809 = vadd.f32 0.0, %v2808
        %v2810 = vpop.f32.mrb[0].mxu0
        %v2811 = vadd.f32 0.0, %v2810
        %v2812 = vpop.f32.mrb[0].mxu0
        %v2813 = vadd.f32 0.0, %v2812
        %v2814 = vpop.f32.mrb[0].mxu0
        %v2815 = vadd.f32 0.0, %v2814
        %2816 = vmatprep.mubr.bf16.mxu0 0
        %2817 = vmatmul.mubr.bf16.gmra.mrb[0].mxu0 %v2693
        %v2818 = vpop.f32.mrb[0].mxu0
        %v2819 = vadd.f32 0.0, %v2818
        %v2820 = vpop.f32.mrb[0].mxu0
        %v2821 = vadd.f32 0.0, %v2820
        %v2822 = vpop.f32.mrb[0].mxu0
        %v2823 = vadd.f32 0.0, %v2822
        %v2824 = vpop.f32.mrb[0].mxu0
        %v2825 = vadd.f32 0.0, %v2824
        %2826 = vmatprep.mubr.bf16.mxu0 0
        %2827 = vmatmul.mubr.bf16.gmra.mrb[0].mxu0 %v2696
        %v2828 = vpop.f32.mrb[0].mxu0
        %v2829 = vadd.f32 0.0, %v2828
        %v2830 = vpop.f32.mrb[0].mxu0
        %v2831 = vadd.f32 0.0, %v2830
        %v2832 = vpop.f32.mrb[0].mxu0
        %v2833 = vadd.f32 0.0, %v2832
        %v2834 = vpop.f32.mrb[0].mxu0
        %v2835 = vadd.f32 0.0, %v2834
        %2836 = vmatprep.mubr.bf16.mxu0 0
        %2837 = vmatmul.mubr.bf16.gmra.mrb[0].mxu0 %v2699
        %v2838 = vpop.f32.mrb[0].mxu0
        %v2839 = vadd.f32 0.0, %v2838
        %v2840 = vpop.f32.mrb[0].mxu0
        %v2841 = vadd.f32 0.0, %v2840
        %v2842 = vpop.f32.mrb[0].mxu0
        %v2843 = vadd.f32 0.0, %v2842
        %v2844 = vpop.f32.mrb[0].mxu0
        %v2845 = vadd.f32 0.0, %v2844
        %2846 = vdwg.mxu0
        %2847 = vmatprep.subr.bf16.mxu0 %v2642
        %2848 = vmatpush1.bf16.msra.mxu0 %v2641
        %2849 = vmatprep.subr.bf16.mxu0 %v2650
        %2850 = vmatpush1.bf16.msra.mxu0 %v2649
        %2851 = vmatprep.subr.bf16.mxu0 %v2658
        %2852 = vmatpush1.bf16.msra.mxu0 %v2657
        %2853 = vmatprep.subr.bf16.mxu0 %v2666
        %2854 = vmatpush1.bf16.msra.mxu0 %v2665
        %2855 = vmatprep.subr.bf16.mxu0 0
        %2856 = vmatpush1.bf16.msra.mxu0 0
        %2857 = vmatprep.subr.bf16.mxu0 0
        %2858 = vmatpush1.bf16.msra.mxu0 0
        %2859 = vmatprep.subr.bf16.mxu0 0
        %2860 = vmatpush1.bf16.msra.mxu0 0
        %2861 = vmatprep.subr.bf16.mxu0 0
        %2862 = vmatpush1.bf16.msra.mxu0 0
        %2863 = vmatprep.subr.bf16.mxu0 0
        %2864 = vmatpush1.bf16.msra.mxu0 0
        %2865 = vmatprep.subr.bf16.mxu0 0
        %2866 = vmatpush1.bf16.msra.mxu0 0
        %2867 = vmatprep.subr.bf16.mxu0 0
        %2868 = vmatpush1.bf16.msra.mxu0 0
        %2869 = vmatprep.subr.bf16.mxu0 0
        %2870 = vmatpush1.bf16.msra.mxu0 0
        %2871 = vmatprep.subr.bf16.mxu0 0
        %2872 = vmatpush1.bf16.msra.mxu0 0
        %2873 = vmatprep.subr.bf16.mxu0 0
        %2874 = vmatpush1.bf16.msra.mxu0 0
        %2875 = vmatprep.subr.bf16.mxu0 0
        %2876 = vmatpush1.bf16.msra.mxu0 0
        %2877 = vmatprep.subr.bf16.mxu0 0
        %2878 = vmatpush1.bf16.msra.mxu0 0
        %2879 = vmatprep.mubr.bf16.mxu0 0
        %2880 = vmatmul.mubr.bf16.gmra.mrb[0].mxu0 %v2690
        %v2881 = vpop.f32.mrb[0].mxu0
        %v2882 = vadd.f32 0.0, %v2881
        %v2883 = vpop.f32.mrb[0].mxu0
        %v2884 = vadd.f32 0.0, %v2883
        %v2885 = vpop.f32.mrb[0].mxu0
        %v2886 = vadd.f32 0.0, %v2885
        %v2887 = vpop.f32.mrb[0].mxu0
        %v2888 = vadd.f32 0.0, %v2887
        %2889 = vmatprep.mubr.bf16.mxu0 0
        %2890 = vmatmul.mubr.bf16.gmra.mrb[0].mxu0 %v2693
        %v2891 = vpop.f32.mrb[0].mxu0
        %v2892 = vadd.f32 0.0, %v2891
        %v2893 = vpop.f32.mrb[0].mxu0
        %v2894 = vadd.f32 0.0, %v2893
        %v2895 = vpop.f32.mrb[0].mxu0
        %v2896 = vadd.f32 0.0, %v2895
        %v2897 = vpop.f32.mrb[0].mxu0
        %v2898 = vadd.f32 0.0, %v2897
        %2899 = vmatprep.mubr.bf16.mxu0 0
        %2900 = vmatmul.mubr.bf16.gmra.mrb[0].mxu0 %v2696
        %v2901 = vpop.f32.mrb[0].mxu0
        %v2902 = vadd.f32 0.0, %v2901
        %v2903 = vpop.f32.mrb[0].mxu0
        %v2904 = vadd.f32 0.0, %v2903
        %v2905 = vpop.f32.mrb[0].mxu0
        %v2906 = vadd.f32 0.0, %v2905
        %v2907 = vpop.f32.mrb[0].mxu0
        %v2908 = vadd.f32 0.0, %v2907
        %2909 = vmatprep.mubr.bf16.mxu0 0
        %2910 = vmatmul.mubr.bf16.gmra.mrb[0].mxu0 %v2699
        %v2911 = vpop.f32.mrb[0].mxu0
        %v2912 = vadd.f32 0.0, %v2911
        %v2913 = vpop.f32.mrb[0].mxu0
        %v2914 = vadd.f32 0.0, %v2913
        %v2915 = vpop.f32.mrb[0].mxu0
        %v2916 = vadd.f32 0.0, %v2915
        %v2917 = vpop.f32.mrb[0].mxu0
        %v2918 = vadd.f32 0.0, %v2917
        %2919 = vdwg.mxu0
        %2920 = vmatprep.subr.bf16.mxu0 %v2644
        %2921 = vmatpush1.bf16.msra.mxu0 %v2643
        %2922 = vmatprep.subr.bf16.mxu0 %v2652
        %2923 = vmatpush1.bf16.msra.mxu0 %v2651
        %2924 = vmatprep.subr.bf16.mxu0 %v2660
        %2925 = vmatpush1.bf16.msra.mxu0 %v2659
        %2926 = vmatprep.subr.bf16.mxu0 %v2668
        %2927 = vmatpush1.bf16.msra.mxu0 %v2667
        %2928 = vmatprep.subr.bf16.mxu0 0
        %2929 = vmatpush1.bf16.msra.mxu0 0
        %2930 = vmatprep.subr.bf16.mxu0 0
        %2931 = vmatpush1.bf16.msra.mxu0 0
        %2932 = vmatprep.subr.bf16.mxu0 0
        %2933 = vmatpush1.bf16.msra.mxu0 0
        %2934 = vmatprep.subr.bf16.mxu0 0
        %2935 = vmatpush1.bf16.msra.mxu0 0
        %2936 = vmatprep.subr.bf16.mxu0 0
        %2937 = vmatpush1.bf16.msra.mxu0 0
        %2938 = vmatprep.subr.bf16.mxu0 0
        %2939 = vmatpush1.bf16.msra.mxu0 0
        %2940 = vmatprep.subr.bf16.mxu0 0
        %2941 = vmatpush1.bf16.msra.mxu0 0
        %2942 = vmatprep.subr.bf16.mxu0 0
        %2943 = vmatpush1.bf16.msra.mxu0 0
        %2944 = vmatprep.subr.bf16.mxu0 0
        %2945 = vmatpush1.bf16.msra.mxu0 0
        %2946 = vmatprep.subr.bf16.mxu0 0
        %2947 = vmatpush1.bf16.msra.mxu0 0
        %2948 = vmatprep.subr.bf16.mxu0 0
        %2949 = vmatpush1.bf16.msra.mxu0 0
        %2950 = vmatprep.subr.bf16.mxu0 0
        %2951 = vmatpush1.bf16.msra.mxu0 0
        %2952 = vmatprep.mubr.bf16.mxu0 0
        %2953 = vmatmul.mubr.bf16.gmra.mrb[0].mxu0 %v2690
        %v2954 = vpop.f32.mrb[0].mxu0
        %v2955 = vadd.f32 0.0, %v2954
        %v2956 = vpop.f32.mrb[0].mxu0
        %v2957 = vadd.f32 0.0, %v2956
        %v2958 = vpop.f32.mrb[0].mxu0
        %v2959 = vadd.f32 0.0, %v2958
        %v2960 = vpop.f32.mrb[0].mxu0
        %v2961 = vadd.f32 0.0, %v2960
        %2962 = vmatprep.mubr.bf16.mxu0 0
        %2963 = vmatmul.mubr.bf16.gmra.mrb[0].mxu0 %v2693
        %v2964 = vpop.f32.mrb[0].mxu0
        %v2965 = vadd.f32 0.0, %v2964
        %v2966 = vpop.f32.mrb[0].mxu0
        %v2967 = vadd.f32 0.0, %v2966
        %v2968 = vpop.f32.mrb[0].mxu0
        %v2969 = vadd.f32 0.0, %v2968
        %v2970 = vpop.f32.mrb[0].mxu0
        %v2971 = vadd.f32 0.0, %v2970
        %2972 = vmatprep.mubr.bf16.mxu0 0
        %2973 = vmatmul.mubr.bf16.gmra.mrb[0].mxu0 %v2696
        %v2974 = vpop.f32.mrb[0].mxu0
        %v2975 = vadd.f32 0.0, %v2974
        %v2976 = vpop.f32.mrb[0].mxu0
        %v2977 = vadd.f32 0.0, %v2976
        %v2978 = vpop.f32.mrb[0].mxu0
        %v2979 = vadd.f32 0.0, %v2978
        %v2980 = vpop.f32.mrb[0].mxu0
        %v2981 = vadd.f32 0.0, %v2980
        %2982 = vmatprep.mubr.bf16.mxu0 0
        %2983 = vmatmul.mubr.bf16.gmra.mrb[0].mxu0 %v2699
        %v2984 = vpop.f32.mrb[0].mxu0
        %v2985 = vadd.f32 0.0, %v2984
        %v2986 = vpop.f32.mrb[0].mxu0
        %v2987 = vadd.f32 0.0, %v2986
        %v2988 = vpop.f32.mrb[0].mxu0
        %v2989 = vadd.f32 0.0, %v2988
        %v2990 = vpop.f32.mrb[0].mxu0
        %v2991 = vadd.f32 0.0, %v2990
        %2992 = vdwg.mxu0
        %v2993 = vmax.f32 %v2736, 0.0
        %v2994 = vmax.f32 %v2738, 0.0
        %v2995 = vmax.f32 %v2809, 0.0
        %v2996 = vmax.f32 %v2811, 0.0
        %v2997 = vmax.f32 %v2882, 0.0
        %v2998 = vmax.f32 %v2884, 0.0
        %v2999 = vmax.f32 %v2955, 0.0
        %v3000 = vmax.f32 %v2957, 0.0
        %v3001 = vmax.f32 %v2740, 0.0
        %v3002 = vmax.f32 %v2742, 0.0
        %v3003 = vmax.f32 %v2813, 0.0
        %v3004 = vmax.f32 %v2815, 0.0
        %v3005 = vmax.f32 %v2886, 0.0
        %v3006 = vmax.f32 %v2888, 0.0
        %v3007 = vmax.f32 %v2959, 0.0
        %v3008 = vmax.f32 %v2961, 0.0
        %v3009 = vmax.f32 %v2746, 0.0
        %v3010 = vmax.f32 %v2748, 0.0
        %v3011 = vmax.f32 %v2819, 0.0
        %v3012 = vmax.f32 %v2821, 0.0
        %v3013 = vmax.f32 %v2892, 0.0
        %v3014 = vmax.f32 %v2894, 0.0
        %v3015 = vmax.f32 %v2965, 0.0
        %v3016 = vmax.f32 %v2967, 0.0
        %v3017 = vmax.f32 %v2750, 0.0
        %v3018 = vmax.f32 %v2752, 0.0
        %v3019 = vmax.f32 %v2823, 0.0
        %v3020 = vmax.f32 %v2825, 0.0
        %v3021 = vmax.f32 %v2896, 0.0
        %v3022 = vmax.f32 %v2898, 0.0
        %v3023 = vmax.f32 %v2969, 0.0
        %v3024 = vmax.f32 %v2971, 0.0
        %v3025 = vmax.f32 %v2756, 0.0
        %v3026 = vmax.f32 %v2758, 0.0
        %v3027 = vmax.f32 %v2829, 0.0
        %v3028 = vmax.f32 %v2831, 0.0
        %v3029 = vmax.f32 %v2902, 0.0
        %v3030 = vmax.f32 %v2904, 0.0
        %v3031 = vmax.f32 %v2975, 0.0
        %v3032 = vmax.f32 %v2977, 0.0
        %v3033 = vmax.f32 %v2760, 0.0
        %v3034 = vmax.f32 %v2762, 0.0
        %v3035 = vmax.f32 %v2833, 0.0
        %v3036 = vmax.f32 %v2835, 0.0
        %v3037 = vmax.f32 %v2906, 0.0
        %v3038 = vmax.f32 %v2908, 0.0
        %v3039 = vmax.f32 %v2979, 0.0
        %v3040 = vmax.f32 %v2981, 0.0
        %v3041 = vmax.f32 %v2766, 0.0
        %v3042 = vmax.f32 %v2768, 0.0
        %v3043 = vmax.f32 %v2839, 0.0
        %v3044 = vmax.f32 %v2841, 0.0
        %v3045 = vmax.f32 %v2912, 0.0
        %v3046 = vmax.f32 %v2914, 0.0
        %v3047 = vmax.f32 %v2985, 0.0
        %v3048 = vmax.f32 %v2987, 0.0
        %v3049 = vmax.f32 %v2770, 0.0
        %v3050 = vmax.f32 %v2772, 0.0
        %v3051 = vmax.f32 %v2843, 0.0
        %v3052 = vmax.f32 %v2845, 0.0
        %v3053 = vmax.f32 %v2916, 0.0
        %v3054 = vmax.f32 %v2918, 0.0
        %v3055 = vmax.f32 %v2989, 0.0
        %v3056 = vmax.f32 %v2991, 0.0
        %v3057 = vld [vmem:[%s6] sm:$0xf]
        %v3058 = vpack.c.bf16 %v3001, %v2993
        %v3059 = vpack.c.bf16 %v3002, %v2994
        %v3060 = vpack.c.bf16 %v3003, %v2995
        %v3061 = vpack.c.bf16 %v3004, %v2996
        %v3062 = vpack.c.bf16 %v3005, %v2997
        %v3063 = vpack.c.bf16 %v3006, %v2998
        %v3064 = vpack.c.bf16 %v3007, %v2999
        %v3065 = vpack.c.bf16 %v3008, %v3000
        %v3066 = vpack.c.bf16 %v3017, %v3009
        %v3067 = vpack.c.bf16 %v3018, %v3010
        %v3068 = vpack.c.bf16 %v3019, %v3011
        %v3069 = vpack.c.bf16 %v3020, %v3012
        %v3070 = vpack.c.bf16 %v3021, %v3013
        %v3071 = vpack.c.bf16 %v3022, %v3014
        %v3072 = vpack.c.bf16 %v3023, %v3015
        %v3073 = vpack.c.bf16 %v3024, %v3016
        %v3074 = vpack.c.bf16 %v3033, %v3025
        %v3075 = vpack.c.bf16 %v3034, %v3026
        %v3076 = vpack.c.bf16 %v3035, %v3027
        %v3077 = vpack.c.bf16 %v3036, %v3028
        %v3078 = vpack.c.bf16 %v3037, %v3029
        %v3079 = vpack.c.bf16 %v3038, %v3030
        %v3080 = vpack.c.bf16 %v3039, %v3031
        %v3081 = vpack.c.bf16 %v3040, %v3032
        %v3082 = vpack.c.bf16 %v3049, %v3041
        %v3083 = vpack.c.bf16 %v3050, %v3042
        %v3084 = vpack.c.bf16 %v3051, %v3043
        %v3085 = vpack.c.bf16 %v3052, %v3044
        %v3086 = vpack.c.bf16 %v3053, %v3045
        %v3087 = vpack.c.bf16 %v3054, %v3046
        %v3088 = vpack.c.bf16 %v3055, %v3047
        %v3089 = vpack.c.bf16 %v3056, %v3048
        %v3091 = vsel %vm886, %v3057, 0
        %3093 = vmatprep.subr.bf16.mxu0 %v3059
        %3094 = vmatpush1.bf16.msra.mxu0 %v3058
        %3095 = vmatprep.subr.bf16.mxu0 %v3067
        %3096 = vmatpush1.bf16.msra.mxu0 %v3066
        %3097 = vmatprep.subr.bf16.mxu0 %v3075
        %3098 = vmatpush1.bf16.msra.mxu0 %v3074
        %3099 = vmatprep.subr.bf16.mxu0 %v3083
        %3100 = vmatpush1.bf16.msra.mxu0 %v3082
        %3101 = vmatprep.subr.bf16.mxu0 0
        %3102 = vmatpush1.bf16.msra.mxu0 0
        %3103 = vmatprep.subr.bf16.mxu0 0
        %3104 = vmatpush1.bf16.msra.mxu0 0
        %3105 = vmatprep.subr.bf16.mxu0 0
        %3106 = vmatpush1.bf16.msra.mxu0 0
        %3107 = vmatprep.subr.bf16.mxu0 0
        %3108 = vmatpush1.bf16.msra.mxu0 0
        %3109 = vmatprep.subr.bf16.mxu0 0
        %3110 = vmatpush1.bf16.msra.mxu0 0
        %3111 = vmatprep.subr.bf16.mxu0 0
        %3112 = vmatpush1.bf16.msra.mxu0 0
        %3113 = vmatprep.subr.bf16.mxu0 0
        %3114 = vmatpush1.bf16.msra.mxu0 0
        %3115 = vmatprep.subr.bf16.mxu0 0
        %3116 = vmatpush1.bf16.msra.mxu0 0
        %3117 = vmatprep.subr.bf16.mxu0 0
        %3118 = vmatpush1.bf16.msra.mxu0 0
        %3119 = vmatprep.subr.bf16.mxu0 0
        %3120 = vmatpush1.bf16.msra.mxu0 0
        %3121 = vmatprep.subr.bf16.mxu0 0
        %3122 = vmatpush1.bf16.msra.mxu0 0
        %3123 = vmatprep.subr.bf16.mxu0 0
        %3124 = vmatpush1.bf16.msra.mxu0 0
        %3125 = vmatprep.mubr.bf16.mxu0 0
        %3126 = vmatmul.mubr.bf16.gmra.mrb[0].mxu0 %v3091
        %v3127 = vpop.f32.mrb[0].mxu0
        %v3128 = vadd.f32 0.0, %v3127
        %v3129 = vpop.f32.mrb[0].mxu0
        %v3130 = vadd.f32 0.0, %v3129
        %v3131 = vpop.f32.mrb[0].mxu0
        %v3132 = vpop.f32.mrb[0].mxu0
        %3133 = vdwg.mxu0
        %3134 = vmatprep.subr.bf16.mxu0 %v3061
        %3135 = vmatpush1.bf16.msra.mxu0 %v3060
        %3136 = vmatprep.subr.bf16.mxu0 %v3069
        %3137 = vmatpush1.bf16.msra.mxu0 %v3068
        %3138 = vmatprep.subr.bf16.mxu0 %v3077
        %3139 = vmatpush1.bf16.msra.mxu0 %v3076
        %3140 = vmatprep.subr.bf16.mxu0 %v3085
        %3141 = vmatpush1.bf16.msra.mxu0 %v3084
        %3142 = vmatprep.subr.bf16.mxu0 0
        %3143 = vmatpush1.bf16.msra.mxu0 0
        %3144 = vmatprep.subr.bf16.mxu0 0
        %3145 = vmatpush1.bf16.msra.mxu0 0
        %3146 = vmatprep.subr.bf16.mxu0 0
        %3147 = vmatpush1.bf16.msra.mxu0 0
        %3148 = vmatprep.subr.bf16.mxu0 0
        %3149 = vmatpush1.bf16.msra.mxu0 0
        %3150 = vmatprep.subr.bf16.mxu0 0
        %3151 = vmatpush1.bf16.msra.mxu0 0
        %3152 = vmatprep.subr.bf16.mxu0 0
        %3153 = vmatpush1.bf16.msra.mxu0 0
        %3154 = vmatprep.subr.bf16.mxu0 0
        %3155 = vmatpush1.bf16.msra.mxu0 0
        %3156 = vmatprep.subr.bf16.mxu0 0
        %3157 = vmatpush1.bf16.msra.mxu0 0
        %3158 = vmatprep.subr.bf16.mxu0 0
        %3159 = vmatpush1.bf16.msra.mxu0 0
        %3160 = vmatprep.subr.bf16.mxu0 0
        %3161 = vmatpush1.bf16.msra.mxu0 0
        %3162 = vmatprep.subr.bf16.mxu0 0
        %3163 = vmatpush1.bf16.msra.mxu0 0
        %3164 = vmatprep.subr.bf16.mxu0 0
        %3165 = vmatpush1.bf16.msra.mxu0 0
        %3166 = vmatprep.mubr.bf16.mxu0 0
        %3167 = vmatmul.mubr.bf16.gmra.mrb[0].mxu0 %v3091
        %v3168 = vpop.f32.mrb[0].mxu0
        %v3169 = vadd.f32 0.0, %v3168
        %v3170 = vpop.f32.mrb[0].mxu0
        %v3171 = vadd.f32 0.0, %v3170
        %v3172 = vpop.f32.mrb[0].mxu0
        %v3173 = vpop.f32.mrb[0].mxu0
        %3174 = vdwg.mxu0
        %3175 = vmatprep.subr.bf16.mxu0 %v3063
        %3176 = vmatpush1.bf16.msra.mxu0 %v3062
        %3177 = vmatprep.subr.bf16.mxu0 %v3071
        %3178 = vmatpush1.bf16.msra.mxu0 %v3070
        %3179 = vmatprep.subr.bf16.mxu0 %v3079
        %3180 = vmatpush1.bf16.msra.mxu0 %v3078
        %3181 = vmatprep.subr.bf16.mxu0 %v3087
        %3182 = vmatpush1.bf16.msra.mxu0 %v3086
        %3183 = vmatprep.subr.bf16.mxu0 0
        %3184 = vmatpush1.bf16.msra.mxu0 0
        %3185 = vmatprep.subr.bf16.mxu0 0
        %3186 = vmatpush1.bf16.msra.mxu0 0
        %3187 = vmatprep.subr.bf16.mxu0 0
        %3188 = vmatpush1.bf16.msra.mxu0 0
        %3189 = vmatprep.subr.bf16.mxu0 0
        %3190 = vmatpush1.bf16.msra.mxu0 0
        %3191 = vmatprep.subr.bf16.mxu0 0
        %3192 = vmatpush1.bf16.msra.mxu0 0
        %3193 = vmatprep.subr.bf16.mxu0 0
        %3194 = vmatpush1.bf16.msra.mxu0 0
        %3195 = vmatprep.subr.bf16.mxu0 0
        %3196 = vmatpush1.bf16.msra.mxu0 0
        %3197 = vmatprep.subr.bf16.mxu0 0
        %3198 = vmatpush1.bf16.msra.mxu0 0
        %3199 = vmatprep.subr.bf16.mxu0 0
        %3200 = vmatpush1.bf16.msra.mxu0 0
        %3201 = vmatprep.subr.bf16.mxu0 0
        %3202 = vmatpush1.bf16.msra.mxu0 0
        %3203 = vmatprep.subr.bf16.mxu0 0
        %3204 = vmatpush1.bf16.msra.mxu0 0
        %3205 = vmatprep.subr.bf16.mxu0 0
        %3206 = vmatpush1.bf16.msra.mxu0 0
        %3207 = vmatprep.mubr.bf16.mxu0 0
        %3208 = vmatmul.mubr.bf16.gmra.mrb[0].mxu0 %v3091
        %v3209 = vpop.f32.mrb[0].mxu0
        %v3210 = vadd.f32 0.0, %v3209
        %v3211 = vpop.f32.mrb[0].mxu0
        %v3212 = vadd.f32 0.0, %v3211
        %v3213 = vpop.f32.mrb[0].mxu0
        %v3214 = vpop.f32.mrb[0].mxu0
        %3215 = vdwg.mxu0
        %3216 = vmatprep.subr.bf16.mxu0 %v3065
        %3217 = vmatpush1.bf16.msra.mxu0 %v3064
        %3218 = vmatprep.subr.bf16.mxu0 %v3073
        %3219 = vmatpush1.bf16.msra.mxu0 %v3072
        %3220 = vmatprep.subr.bf16.mxu0 %v3081
        %3221 = vmatpush1.bf16.msra.mxu0 %v3080
        %3222 = vmatprep.subr.bf16.mxu0 %v3089
        %3223 = vmatpush1.bf16.msra.mxu0 %v3088
        %3224 = vmatprep.subr.bf16.mxu0 0
        %3225 = vmatpush1.bf16.msra.mxu0 0
        %3226 = vmatprep.subr.bf16.mxu0 0
        %3227 = vmatpush1.bf16.msra.mxu0 0
        %3228 = vmatprep.subr.bf16.mxu0 0
        %3229 = vmatpush1.bf16.msra.mxu0 0
        %3230 = vmatprep.subr.bf16.mxu0 0
        %3231 = vmatpush1.bf16.msra.mxu0 0
        %3232 = vmatprep.subr.bf16.mxu0 0
        %3233 = vmatpush1.bf16.msra.mxu0 0
        %3234 = vmatprep.subr.bf16.mxu0 0
        %3235 = vmatpush1.bf16.msra.mxu0 0
        %3236 = vmatprep.subr.bf16.mxu0 0
        %3237 = vmatpush1.bf16.msra.mxu0 0
        %3238 = vmatprep.subr.bf16.mxu0 0
        %3239 = vmatpush1.bf16.msra.mxu0 0
        %3240 = vmatprep.subr.bf16.mxu0 0
        %3241 = vmatpush1.bf16.msra.mxu0 0
        %3242 = vmatprep.subr.bf16.mxu0 0
        %3243 = vmatpush1.bf16.msra.mxu0 0
        %3244 = vmatprep.subr.bf16.mxu0 0
        %3245 = vmatpush1.bf16.msra.mxu0 0
        %3246 = vmatprep.subr.bf16.mxu0 0
        %3247 = vmatpush1.bf16.msra.mxu0 0
        %3248 = vmatprep.mubr.bf16.mxu0 0
        %3249 = vmatmul.mubr.bf16.gmra.mrb[0].mxu0 %v3091
        %v3250 = vpop.f32.mrb[0].mxu0
        %v3251 = vadd.f32 0.0, %v3250
        %v3252 = vpop.f32.mrb[0].mxu0
        %v3253 = vadd.f32 0.0, %v3252
        %v3254 = vpop.f32.mrb[0].mxu0
        %v3255 = vpop.f32.mrb[0].mxu0
        %3256 = vdwg.mxu0
        %v3257 = vxor.u32 %v3128, 2147483648
        %v3258 = vxor.u32 %v3130, 2147483648
        %v3259 = vxor.u32 %v3169, 2147483648
        %v3260 = vxor.u32 %v3171, 2147483648
        %v3261 = vxor.u32 %v3210, 2147483648
        %v3262 = vxor.u32 %v3212, 2147483648
        %v3263 = vxor.u32 %v3251, 2147483648
        %v3264 = vxor.u32 %v3253, 2147483648
        %v3265 = vmul.f32 %v3257, 1.442695
        %v3266 = vpow.pop %v3265
        %v3267 = vmul.f32 %v3258, 1.442695
        %v3268 = vpow.pop %v3267
        %v3269 = vmul.f32 %v3259, 1.442695
        %v3270 = vpow.pop %v3269
        %v3271 = vmul.f32 %v3260, 1.442695
        %v3272 = vpow.pop %v3271
        %v3273 = vmul.f32 %v3261, 1.442695
        %v3274 = vpow.pop %v3273
        %v3275 = vmul.f32 %v3262, 1.442695
        %v3276 = vpow.pop %v3275
        %v3277 = vmul.f32 %v3263, 1.442695
        %v3278 = vpow.pop %v3277
        %v3279 = vmul.f32 %v3264, 1.442695
        %v3280 = vpow.pop %v3279
        %v3281 = vadd.f32 %v3266, 1.0
        %v3282 = vadd.f32 %v3268, 1.0
        %v3283 = vadd.f32 %v3270, 1.0
        %v3284 = vadd.f32 %v3272, 1.0
        %v3285 = vadd.f32 %v3274, 1.0
        %v3286 = vadd.f32 %v3276, 1.0
        %v3287 = vadd.f32 %v3278, 1.0
        %v3288 = vadd.f32 %v3280, 1.0
        %v3289 = vrcp.pop %v3281
        %v3290 = vmul.f32 1.0, %v3289
        %v3291 = vrcp.pop %v3282
        %v3292 = vmul.f32 1.0, %v3291
        %v3293 = vrcp.pop %v3283
        %v3294 = vmul.f32 1.0, %v3293
        %v3295 = vrcp.pop %v3284
        %v3296 = vmul.f32 1.0, %v3295
        %v3297 = vrcp.pop %v3285
        %v3298 = vmul.f32 1.0, %v3297
        %v3299 = vrcp.pop %v3286
        %v3300 = vmul.f32 1.0, %v3299
        %v3301 = vrcp.pop %v3287
        %v3302 = vmul.f32 1.0, %v3301
        %v3303 = vrcp.pop %v3288
        %v3304 = vmul.f32 1.0, %v3303
        %v3313 = vrot.slane %v3290, 7
        %v3314 = vrot.slane %v3292, 7
        %v3315 = vrot.slane %v3294, 7
        %v3316 = vrot.slane %v3296, 7
        %v3317 = vrot.slane %v3298, 7
        %v3318 = vrot.slane %v3300, 7
        %v3319 = vrot.slane %v3302, 7
        %v3320 = vrot.slane %v3304, 7
        %v3329 = vsel %vm2098, %v1063, %v3313
        %v3330 = vsel %vm2098, %v1065, %v3314
        %v3331 = vsel %vm2098, %v1067, %v3315
        %v3332 = vsel %vm2098, %v1069, %v3316
        %v3333 = vsel %vm2098, %v1071, %v3317
        %v3334 = vsel %vm2098, %v1073, %v3318
        %v3335 = vsel %vm2098, %v1075, %v3319
        %v3336 = vsel %vm2098, %v1077, %v3320
        %v3337 = vsel %vm2125, %v3329, 0.0
        %v3338 = vsel %vm2125, %v3330, 0.0
        %v3339 = vsel %vm2125, %v3331, 0.0
        %v3340 = vsel %vm2125, %v3332, 0.0
        %v3341 = vsel %vm2125, %v3333, 0.0
        %v3342 = vsel %vm2125, %v3334, 0.0
        %v3343 = vsel %vm2125, %v3335, 0.0
        %v3344 = vsel %vm2125, %v3336, 0.0
        %3345 = vst [vmem:[%s351] sm:$0xff] %v3337
        %3346 = vst [vmem:[%s351 + $0x8] sm:$0xff] %v3338
        %3347 = vst [vmem:[%s351 + $0x10] sm:$0xff] %v3339
        %3348 = vst [vmem:[%s351 + $0x18] sm:$0xff] %v3340
        %3349 = vst [vmem:[%s351 + $0x20] sm:$0xff] %v3341
        %3350 = vst [vmem:[%s351 + $0x28] sm:$0xff] %v3342
        %3351 = vst [vmem:[%s351 + $0x30] sm:$0xff] %v3343
        %3352 = vst [vmem:[%s351 + $0x38] sm:$0xff] %v3344
        %s3353 = smul.u32 8, %s18
        %p3354 = scmp.lt.s32.totalorder %s3353, 63
        %s3355 = scalar_select %p3354, %s3353, 63
        %s3356 = smul.addr %s3355, 8
        %s3357 = scalar_lea.vmem %s7, %s3356
        // Predicated region
        $region72: #{ngp_forward.1} parent=66 // pred_check
          %p3358 = pneg %p193
        $region73: #{ngp_forward.1} parent=66 // pred_check_branch
          %3360 = sbr.rel (%p3358) target = $region75
        $region74: #{ngp_forward.1} parent=66 // pred_region
          %s3361 = smul.u32 8, %s18
        $region75: #{ngp_forward.1} parent=66 // pred_fallthru
          _
      $region67: #{ngp_forward.1} parent=5 // pred_fallthru
        _
      %p3362 = scmp.le.s32.totalorder 2, %s13
      // Predicated region
      $region76: #{ngp_forward.1} parent=5 // pred_check
        %p3363 = pneg %p3362
      $region77: #{ngp_forward.1} parent=5 // pred_check_branch
        %3365 = sbr.rel (%p3363) target = $region79
      $region78: #{ngp_forward.1} parent=5 // pred_region
        %s3366 = ssub.s32 %s13, 2
        // Predicated region
        $region80: #{ngp_forward.1} parent=78 // pred_check
          %p3367 = pneg %p199
        $region81: #{ngp_forward.1} parent=78 // pred_check_branch
          %3369 = sbr.rel (%p3367) target = $region83
        $region82: #{ngp_forward.1} parent=78 // pred_region
          %s3370 = smul.u32 8, %s19
          %p3371 = scmp.lt.s32.totalorder %s3370, 63
          %s3372 = scalar_select %p3371, %s3370, 63
          %s3373 = smul.addr %s3372, 8
          %s3374 = scalar_lea.vmem %s7, %s3373
        $region83: #{ngp_forward.1} parent=78 // pred_fallthru
          _
      $region79: #{ngp_forward.1} parent=5 // pred_fallthru
        _
    $region6: #{ngp_forward.1} parent=1 // loop_footer
      %s17 = sadd.s32 1, %s13
    $region7: #{ngp_forward.1} parent=1 // loop_footer_branch
      %12 = sbr.rel target = $region3
    $region8: #{ngp_forward.1} parent=1 // loop_exit
      _

</llo_original>
